<compile_context>
chip_gen: v7x
topology: tpu7x:2x2x1
jax: 0.10.0
libtpu: 0.0.40
codegen_flags: <defaults>
</compile_context>

<pallas_src>
import functools
import math

import numpy as np

import jax
import jax.numpy as jnp
from jax import lax
from jax.experimental import pallas as pl
from jax.experimental.pallas import tpu as pltpu

LANE = 128  # padded channel width carried through the whole fused kernel


def _round_up(x, m):
    return (x + m - 1) // m * m


# ----------------------------- fused Pallas kernel ---------------------------

def _rnd_fused_kernel(pm_ref, w1_ref, b1_ref, g2_ref, w2_ref, b2_ref,
                      g3_ref, w3_ref, b3_ref, wf1_ref, bf1_ref,
                      wo_ref, bo_ref, out_ref, *, n_k2, n_k3):
    f32 = jnp.float32
    bf16 = jnp.bfloat16

    # conv1 (im2col'd outside): [M1, K1] @ [K1, 128]  + bias, ReLU.
    h1 = jnp.dot(pm_ref[...], w1_ref[...], preferred_element_type=f32)
    h1 = jnp.maximum(h1 + b1_ref[...], 0.0).astype(bf16)          # [M1, 128]

    # conv2: spatial gather via constant 0/1 selection matmuls (MXU), then one
    # dense matmul against the (kh, kw, c)-ordered, lane-padded conv2 weight.
    p2 = jnp.concatenate(
        [jnp.dot(g2_ref[k], h1, preferred_element_type=f32).astype(bf16)
         for k in range(n_k2)], axis=-1)                           # [M2p, n_k2*128]
    h2 = jnp.dot(p2, w2_ref[...], preferred_element_type=f32)
    h2 = jnp.maximum(h2 + b2_ref[...], 0.0).astype(bf16)          # [M2p, 128]

    # conv3 (3x3 kernel on a 3x3 map -> full-window): same gather trick.
    p3 = jnp.concatenate(
        [jnp.dot(g3_ref[k], h2, preferred_element_type=f32).astype(bf16)
         for k in range(n_k3)], axis=-1)                           # [N, n_k3*128]
    h3 = jnp.dot(p3, w3_ref[...], preferred_element_type=f32)
    h3 = jnp.maximum(h3 + b3_ref[...], 0.0).astype(bf16)          # [N, 128]

    # fc1 + ReLU + out_layer (lane-dense 512-wide output).
    h4 = jnp.dot(h3, wf1_ref[...], preferred_element_type=f32)
    h4 = jnp.maximum(h4 + bf1_ref[...], 0.0).astype(bf16)         # [N, 512]
    out = jnp.dot(h4, wo_ref[...], preferred_element_type=f32) + bo_ref[...]
    out_ref[...] = out.astype(out_ref.dtype)


def rnd_fused_call(pm, p):
    """Single pallas_call for the whole network; everything VMEM-resident."""
    n_k2 = p["g2"].shape[0]
    n_k3 = p["g3"].shape[0]
    n_batch = p["g3"].shape[1]
    out_dim = p["wo"].shape[1]

    args = (pm, p["w1"], p["b1"], p["g2"], p["w2"], p["b2"],
            p["g3"], p["w3"], p["b3"], p["wf1"], p["bf1"], p["wo"], p["bo"])
    in_bytes = sum(int(a.size) * a.dtype.itemsize for a in args)
    out_bytes = n_batch * out_dim * 4
    flops = 2 * (
        pm.shape[0] * pm.shape[1] * p["w1"].shape[1]
        + n_k2 * p["g2"].shape[1] * p["g2"].shape[2] * p["w1"].shape[1]
        + p["g2"].shape[1] * p["w2"].shape[0] * p["w2"].shape[1]
        + n_k3 * p["g3"].shape[1] * p["g3"].shape[2] * p["w2"].shape[1]
        + n_batch * p["w3"].shape[0] * p["w3"].shape[1]
        + n_batch * p["wf1"].shape[0] * p["wf1"].shape[1]
        + n_batch * p["wo"].shape[0] * p["wo"].shape[1])
    vmem_limit = int(min(2 * (in_bytes + out_bytes) + (8 << 20), 32 << 20))

    return pl.pallas_call(
        functools.partial(_rnd_fused_kernel, n_k2=n_k2, n_k3=n_k3),
        out_shape=jax.ShapeDtypeStruct((n_batch, out_dim), jnp.float32),
        compiler_params=pltpu.CompilerParams(vmem_limit_bytes=vmem_limit),
        cost_estimate=pl.CostEstimate(flops=int(flops), transcendentals=0,
                                      bytes_accessed=int(in_bytes + out_bytes)),
    )(*args)


# ------------------------------ forward (JAX glue) ----------------------------

def rnd_forward(x_nchw, p):
    """x: [N, C, H, W] float32 in [0, 255]; returns [N, 512] float32."""
    n, c, _, _ = x_nchw.shape
    x_nhwc = jnp.transpose(x_nchw, (0, 2, 3, 1))
    # conv1 im2col: the only remaining non-Pallas op on the critical path.
    patches = lax.conv_general_dilated_patches(
        x_nhwc, filter_shape=(8, 8), window_strides=(4, 4), padding='VALID',
        dimension_numbers=('NHWC', 'HWIO', 'NHWC'))
    oh1, ow1 = patches.shape[1], patches.shape[2]
    pm = patches.reshape(n * oh1 * ow1, c * 64).astype(jnp.bfloat16)
    return rnd_fused_call(pm, p)


# --------------------------- parameter preparation ---------------------------

def _conv1_patch_perm(c_in, kh, kw):
    """Empirically discover conv_general_dilated_patches' feature ordering.

    Returns perm s.t. patch feature f corresponds to (c, p, q)-major flat
    index perm[f] (the ordering of PyTorch's weight.reshape(OC, -1) columns).
    """
    probe = np.arange(c_in * kh * kw, dtype=np.float32).reshape(c_in, kh, kw)
    probe_nhwc = jnp.asarray(probe.transpose(1, 2, 0))[None]      # [1, kh, kw, c]
    feat = lax.conv_general_dilated_patches(
        probe_nhwc, filter_shape=(kh, kw), window_strides=(1, 1),
        padding='VALID', dimension_numbers=('NHWC', 'HWIO', 'NHWC'),
        precision=lax.Precision.HIGHEST)
    return np.rint(np.asarray(feat, np.float32).reshape(-1)).astype(np.int64)


def prepare_params(raw, input_shape, n_batch):
    c_in, h_in, w_in = input_shape
    oh1, ow1 = (h_in - 8) // 4 + 1, (w_in - 8) // 4 + 1
    oh2, ow2 = (oh1 - 4) // 2 + 1, (ow1 - 4) // 2 + 1
    oh3, ow3 = (oh2 - 3) // 1 + 1, (ow2 - 3) // 1 + 1
    assert oh3 == 1 and ow3 == 1, "fused kernel assumes a 1x1 conv3 output map"

    CH = LANE

    # conv1: x/255 folded into the weight; rows reordered to match the
    # empirically-probed patch feature ordering; OC lane-padded to 128.
    w1 = np.asarray(raw["w1"], np.float32)                # [32, C, 8, 8]
    oc1 = w1.shape[0]
    k1 = c_in * 64
    assert oc1 <= CH
    perm = _conv1_patch_perm(c_in, 8, 8)
    w1_mat = (w1 / 255.0).reshape(oc1, k1).T              # rows in (c, p, q) order
    W1 = np.zeros((k1, CH), np.float32)
    W1[:, :oc1] = w1_mat[perm]
    b1 = np.zeros((1, CH), np.float32); b1[0, :oc1] = np.asarray(raw["b1"])

    # conv2: 0/1 spatial gather matrices + (kh, kw, c)-ordered lane-padded weight.
    w2 = np.asarray(raw["w2"], np.float32)                # [64, 32, 4, 4]
    oc2, ic2, kh2, kw2 = w2.shape
    assert oc2 <= CH and ic2 <= CH
    m1 = n_batch * oh1 * ow1
    m2 = n_batch * oh2 * ow2
    m2p = _round_up(m2, 8)
    G2 = np.zeros((kh2 * kw2, m2p, m1), np.float32)
    W2 = np.zeros((kh2 * kw2 * CH, CH), np.float32)
    for i in range(kh2):
        for j in range(kw2):
            k = i * kw2 + j
            W2[k * CH:k * CH + ic2, :oc2] = w2[:, :, i, j].T
            for nb in range(n_batch):
                for oh in range(oh2):
                    for ow in range(ow2):
                        r = nb * oh2 * ow2 + oh * ow2 + ow
                        s = nb * oh1 * ow1 + (2 * oh + i) * ow1 + (2 * ow + j)
                        G2[k, r, s] = 1.0
    b2 = np.zeros((1, CH), np.float32); b2[0, :oc2] = np.asarray(raw["b2"])

    # conv3 (full window, 1x1 output): same gather trick.
    w3 = np.asarray(raw["w3"], np.float32)                # [64, 64, 3, 3]
    oc3, ic3, kh3, kw3 = w3.shape
    assert oc3 <= CH and ic3 <= CH
    G3 = np.zeros((kh3 * kw3, n_batch, m2p), np.float32)
    W3 = np.zeros((kh3 * kw3 * CH, CH), np.float32)
    for i in range(kh3):
        for j in range(kw3):
            k = i * kw3 + j
            W3[k * CH:k * CH + ic3, :oc3] = w3[:, :, i, j].T
            for nb in range(n_batch):
                G3[k, nb, nb * oh2 * ow2 + i * ow2 + j] = 1.0
    b3 = np.zeros((1, CH), np.float32); b3[0, :oc3] = np.asarray(raw["b3"])

    # fc1 (flat size == oc3 since the conv3 map is 1x1) + out_layer.
    fc1_w = np.asarray(raw["fc1_w"], np.float32)          # [512, flat]
    hid, flat = fc1_w.shape
    assert flat == oc3 * oh3 * ow3
    Wf1 = np.zeros((CH, hid), np.float32)
    Wf1[:flat, :] = fc1_w.T
    bf1 = np.asarray(raw["fc1_b"], np.float32).reshape(1, hid)
    Wo = np.asarray(raw["out_w"], np.float32).T           # [512, 512]
    bo = np.asarray(raw["out_b"], np.float32).reshape(1, -1)

    bf = lambda a: jnp.asarray(a, jnp.bfloat16)
    f32 = lambda a: jnp.asarray(a, jnp.float32)
    return {
        "w1": bf(W1), "b1": f32(b1),
        "g2": bf(G2), "w2": bf(W2), "b2": f32(b2),
        "g3": bf(G3), "w3": bf(W3), "b3": f32(b3),
        "wf1": bf(Wf1), "bf1": f32(bf1),
        "wo": bf(Wo), "bo": f32(bo),
    }


# ------------------------------ f32 reference --------------------------------

def rnd_reference(x_nchw, raw):
    x = x_nchw.astype(jnp.float32) / 255.0

    def conv(h, w, b, stride):
        o = lax.conv_general_dilated(
            h, jnp.asarray(w, jnp.float32), (stride, stride), 'VALID',
            dimension_numbers=('NCHW', 'OIHW', 'NCHW'),
            precision=lax.Precision.HIGHEST)
        return jnp.maximum(o + jnp.asarray(b, jnp.float32)[None, :, None, None], 0.0)

    h = conv(x, raw["w1"], raw["b1"], 4)
    h = conv(h, raw["w2"], raw["b2"], 2)
    h = conv(h, raw["w3"], raw["b3"], 1)
    flat = h.reshape(h.shape[0], -1)
    h = jnp.maximum(flat @ jnp.asarray(raw["fc1_w"]).T + jnp.asarray(raw["fc1_b"]), 0.0)
    return h @ jnp.asarray(raw["out_w"]).T + jnp.asarray(raw["out_b"])


# ------------------------------------ main -----------------------------------

if __name__ == "__main__":
    # 36x36 is the smallest spatial size that survives the 8/4 -> 4/2 -> 3/1
    # conv stack (final feature map 1x1, flat size 64), matching the module.
    N, C, H, W = 2, 4, 36, 36

    key = jax.random.PRNGKey(0)
    keys = jax.random.split(key, 11)
    x = jax.random.uniform(keys[0], (N, C, H, W), jnp.float32, 0.0, 255.0)

    def _w(k, shape, fan_in):
        return jax.random.normal(k, shape, jnp.float32) / math.sqrt(fan_in)

    oh1, ow1 = (H - 8) // 4 + 1, (W - 8) // 4 + 1
    oh2, ow2 = (oh1 - 4) // 2 + 1, (ow1 - 4) // 2 + 1
    oh3, ow3 = (oh2 - 3) // 1 + 1, (ow2 - 3) // 1 + 1
    flat_size = 64 * oh3 * ow3                 # == get_flat_size(...)

    raw = {
        "w1": _w(keys[1], (32, C, 8, 8), C * 64),   "b1": _w(keys[2], (32,), C * 64),
        "w2": _w(keys[3], (64, 32, 4, 4), 32 * 16), "b2": _w(keys[4], (64,), 32 * 16),
        "w3": _w(keys[5], (64, 64, 3, 3), 64 * 9),  "b3": _w(keys[6], (64,), 64 * 9),
        "fc1_w": _w(keys[7], (512, flat_size), flat_size),
        "fc1_b": _w(keys[8], (512,), flat_size),
        "out_w": _w(keys[9], (512, 512), 512),
        "out_b": _w(keys[10], (512,), 512),
    }
    params = prepare_params(raw, (C, H, W), N)

    fwd = jax.jit(rnd_forward)
    out = jax.block_until_ready(fwd(x, params))
    assert out.shape == (N, 512), out.shape
    assert bool(jnp.all(jnp.isfinite(out)))

    # Sanity check against a pure-JAX f32 reference (loose tolerance: the
    # kernel path quantizes activations/weights to bf16 for the MXU).
    ref = rnd_reference(x, raw)
    err = float(jnp.max(jnp.abs(out - ref)))
    scale = float(jnp.max(jnp.abs(ref)))
    assert err <= 0.2 * scale + 1e-3, (err, scale)

    print("KERNEL_OK")
</pallas_src>

<mosaic_0001>
module attributes {stable_mosaic.version = 11 : i64} {
  func.func @_rnd_fused_kernel(%arg0: memref<128x256xbf16, #tpu.memory_space<vmem>>, %arg1: memref<256x128xbf16, #tpu.memory_space<vmem>>, %arg2: memref<1x128xf32, #tpu.memory_space<vmem>>, %arg3: memref<16x24x128xbf16, #tpu.memory_space<vmem>>, %arg4: memref<2048x128xbf16, #tpu.memory_space<vmem>>, %arg5: memref<1x128xf32, #tpu.memory_space<vmem>>, %arg6: memref<9x2x24xbf16, #tpu.memory_space<vmem>>, %arg7: memref<1152x128xbf16, #tpu.memory_space<vmem>>, %arg8: memref<1x128xf32, #tpu.memory_space<vmem>>, %arg9: memref<128x512xbf16, #tpu.memory_space<vmem>>, %arg10: memref<1x512xf32, #tpu.memory_space<vmem>>, %arg11: memref<512x512xbf16, #tpu.memory_space<vmem>>, %arg12: memref<1x512xf32, #tpu.memory_space<vmem>>, %arg13: memref<2x512xf32, #tpu.memory_space<vmem>>) attributes {dimension_semantics = [], scalar_prefetch = 0 : i64, scratch_operands = 0 : i64, tpu.core_type = #tpu.core_type<tc>} {
    %c0 = arith.constant 0 : index
    %c0_0 = arith.constant 0 : index
    %0 = vector.load %arg0[%c0, %c0_0] : memref<128x256xbf16, #tpu.memory_space<vmem>>, vector<128x256xbf16>
    %c0_1 = arith.constant 0 : index
    %c0_2 = arith.constant 0 : index
    %1 = vector.load %arg1[%c0_1, %c0_2] : memref<256x128xbf16, #tpu.memory_space<vmem>>, vector<256x128xbf16>
    %cst = arith.constant dense<0.000000e+00> : vector<128x128xf32>
    %2 = tpu.matmul %0, %1, %cst {dimension_numbers = #tpu.dot_dimension_numbers<[1], [0], [0], [1], [0, 0, 1, 1], [], []>} : vector<128x256xbf16>, vector<256x128xbf16>, vector<128x128xf32> -> vector<128x128xf32>
    %c0_3 = arith.constant 0 : index
    %c0_4 = arith.constant 0 : index
    %3 = vector.load %arg2[%c0_3, %c0_4] : memref<1x128xf32, #tpu.memory_space<vmem>>, vector<1x128xf32>
    %4 = vector.broadcast %3 : vector<1x128xf32> to vector<128x128xf32>
    %5 = arith.addf %2, %4 : vector<128x128xf32>
    %cst_5 = arith.constant 0.000000e+00 : f32
    %6 = vector.broadcast %cst_5 : f32 to vector<128x128xf32>
    %7 = arith.maximumf %5, %6 : vector<128x128xf32>
    %8 = arith.truncf %7 : vector<128x128xf32> to vector<128x128xbf16>
    %c0_6 = arith.constant 0 : index
    %c0_7 = arith.constant 0 : index
    %c0_8 = arith.constant 0 : index
    %9 = vector.load %arg3[%c0_6, %c0_7, %c0_8] : memref<16x24x128xbf16, #tpu.memory_space<vmem>>, vector<1x24x128xbf16>
    %10 = vector.shape_cast %9 : vector<1x24x128xbf16> to vector<24x128xbf16>
    %cst_9 = arith.constant dense<0.000000e+00> : vector<24x128xf32>
    %11 = tpu.matmul %10, %8, %cst_9 {dimension_numbers = #tpu.dot_dimension_numbers<[1], [0], [0], [1], [0, 0, 1, 1], [], []>} : vector<24x128xbf16>, vector<128x128xbf16>, vector<24x128xf32> -> vector<24x128xf32>
    %12 = arith.truncf %11 : vector<24x128xf32> to vector<24x128xbf16>
    %c1 = arith.constant 1 : index
    %c0_10 = arith.constant 0 : index
    %c0_11 = arith.constant 0 : index
    %13 = vector.load %arg3[%c1, %c0_10, %c0_11] : memref<16x24x128xbf16, #tpu.memory_space<vmem>>, vector<1x24x128xbf16>
    %14 = vector.shape_cast %13 : vector<1x24x128xbf16> to vector<24x128xbf16>
    %cst_12 = arith.constant dense<0.000000e+00> : vector<24x128xf32>
    %15 = tpu.matmul %14, %8, %cst_12 {dimension_numbers = #tpu.dot_dimension_numbers<[1], [0], [0], [1], [0, 0, 1, 1], [], []>} : vector<24x128xbf16>, vector<128x128xbf16>, vector<24x128xf32> -> vector<24x128xf32>
    %16 = arith.truncf %15 : vector<24x128xf32> to vector<24x128xbf16>
    %c2 = arith.constant 2 : index
    %c0_13 = arith.constant 0 : index
    %c0_14 = arith.constant 0 : index
    %17 = vector.load %arg3[%c2, %c0_13, %c0_14] : memref<16x24x128xbf16, #tpu.memory_space<vmem>>, vector<1x24x128xbf16>
    %18 = vector.shape_cast %17 : vector<1x24x128xbf16> to vector<24x128xbf16>
    %cst_15 = arith.constant dense<0.000000e+00> : vector<24x128xf32>
    %19 = tpu.matmul %18, %8, %cst_15 {dimension_numbers = #tpu.dot_dimension_numbers<[1], [0], [0], [1], [0, 0, 1, 1], [], []>} : vector<24x128xbf16>, vector<128x128xbf16>, vector<24x128xf32> -> vector<24x128xf32>
    %20 = arith.truncf %19 : vector<24x128xf32> to vector<24x128xbf16>
    %c3 = arith.constant 3 : index
    %c0_16 = arith.constant 0 : index
    %c0_17 = arith.constant 0 : index
    %21 = vector.load %arg3[%c3, %c0_16, %c0_17] : memref<16x24x128xbf16, #tpu.memory_space<vmem>>, vector<1x24x128xbf16>
    %22 = vector.shape_cast %21 : vector<1x24x128xbf16> to vector<24x128xbf16>
    %cst_18 = arith.constant dense<0.000000e+00> : vector<24x128xf32>
    %23 = tpu.matmul %22, %8, %cst_18 {dimension_numbers = #tpu.dot_dimension_numbers<[1], [0], [0], [1], [0, 0, 1, 1], [], []>} : vector<24x128xbf16>, vector<128x128xbf16>, vector<24x128xf32> -> vector<24x128xf32>
    %24 = arith.truncf %23 : vector<24x128xf32> to vector<24x128xbf16>
    %c4 = arith.constant 4 : index
    %c0_19 = arith.constant 0 : index
    %c0_20 = arith.constant 0 : index
    %25 = vector.load %arg3[%c4, %c0_19, %c0_20] : memref<16x24x128xbf16, #tpu.memory_space<vmem>>, vector<1x24x128xbf16>
    %26 = vector.shape_cast %25 : vector<1x24x128xbf16> to vector<24x128xbf16>
    %cst_21 = arith.constant dense<0.000000e+00> : vector<24x128xf32>
    %27 = tpu.matmul %26, %8, %cst_21 {dimension_numbers = #tpu.dot_dimension_numbers<[1], [0], [0], [1], [0, 0, 1, 1], [], []>} : vector<24x128xbf16>, vector<128x128xbf16>, vector<24x128xf32> -> vector<24x128xf32>
    %28 = arith.truncf %27 : vector<24x128xf32> to vector<24x128xbf16>
    %c5 = arith.constant 5 : index
    %c0_22 = arith.constant 0 : index
    %c0_23 = arith.constant 0 : index
    %29 = vector.load %arg3[%c5, %c0_22, %c0_23] : memref<16x24x128xbf16, #tpu.memory_space<vmem>>, vector<1x24x128xbf16>
    %30 = vector.shape_cast %29 : vector<1x24x128xbf16> to vector<24x128xbf16>
    %cst_24 = arith.constant dense<0.000000e+00> : vector<24x128xf32>
    %31 = tpu.matmul %30, %8, %cst_24 {dimension_numbers = #tpu.dot_dimension_numbers<[1], [0], [0], [1], [0, 0, 1, 1], [], []>} : vector<24x128xbf16>, vector<128x128xbf16>, vector<24x128xf32> -> vector<24x128xf32>
    %32 = arith.truncf %31 : vector<24x128xf32> to vector<24x128xbf16>
    %c6 = arith.constant 6 : index
    %c0_25 = arith.constant 0 : index
    %c0_26 = arith.constant 0 : index
    %33 = vector.load %arg3[%c6, %c0_25, %c0_26] : memref<16x24x128xbf16, #tpu.memory_space<vmem>>, vector<1x24x128xbf16>
    %34 = vector.shape_cast %33 : vector<1x24x128xbf16> to vector<24x128xbf16>
    %cst_27 = arith.constant dense<0.000000e+00> : vector<24x128xf32>
    %35 = tpu.matmul %34, %8, %cst_27 {dimension_numbers = #tpu.dot_dimension_numbers<[1], [0], [0], [1], [0, 0, 1, 1], [], []>} : vector<24x128xbf16>, vector<128x128xbf16>, vector<24x128xf32> -> vector<24x128xf32>
    %36 = arith.truncf %35 : vector<24x128xf32> to vector<24x128xbf16>
    %c7 = arith.constant 7 : index
    %c0_28 = arith.constant 0 : index
    %c0_29 = arith.constant 0 : index
    %37 = vector.load %arg3[%c7, %c0_28, %c0_29] : memref<16x24x128xbf16, #tpu.memory_space<vmem>>, vector<1x24x128xbf16>
    %38 = vector.shape_cast %37 : vector<1x24x128xbf16> to vector<24x128xbf16>
    %cst_30 = arith.constant dense<0.000000e+00> : vector<24x128xf32>
    %39 = tpu.matmul %38, %8, %cst_30 {dimension_numbers = #tpu.dot_dimension_numbers<[1], [0], [0], [1], [0, 0, 1, 1], [], []>} : vector<24x128xbf16>, vector<128x128xbf16>, vector<24x128xf32> -> vector<24x128xf32>
    %40 = arith.truncf %39 : vector<24x128xf32> to vector<24x128xbf16>
    %c8 = arith.constant 8 : index
    %c0_31 = arith.constant 0 : index
    %c0_32 = arith.constant 0 : index
    %41 = vector.load %arg3[%c8, %c0_31, %c0_32] : memref<16x24x128xbf16, #tpu.memory_space<vmem>>, vector<1x24x128xbf16>
    %42 = vector.shape_cast %41 : vector<1x24x128xbf16> to vector<24x128xbf16>
    %cst_33 = arith.constant dense<0.000000e+00> : vector<24x128xf32>
    %43 = tpu.matmul %42, %8, %cst_33 {dimension_numbers = #tpu.dot_dimension_numbers<[1], [0], [0], [1], [0, 0, 1, 1], [], []>} : vector<24x128xbf16>, vector<128x128xbf16>, vector<24x128xf32> -> vector<24x128xf32>
    %44 = arith.truncf %43 : vector<24x128xf32> to vector<24x128xbf16>
    %c9 = arith.constant 9 : index
    %c0_34 = arith.constant 0 : index
    %c0_35 = arith.constant 0 : index
    %45 = vector.load %arg3[%c9, %c0_34, %c0_35] : memref<16x24x128xbf16, #tpu.memory_space<vmem>>, vector<1x24x128xbf16>
    %46 = vector.shape_cast %45 : vector<1x24x128xbf16> to vector<24x128xbf16>
    %cst_36 = arith.constant dense<0.000000e+00> : vector<24x128xf32>
    %47 = tpu.matmul %46, %8, %cst_36 {dimension_numbers = #tpu.dot_dimension_numbers<[1], [0], [0], [1], [0, 0, 1, 1], [], []>} : vector<24x128xbf16>, vector<128x128xbf16>, vector<24x128xf32> -> vector<24x128xf32>
    %48 = arith.truncf %47 : vector<24x128xf32> to vector<24x128xbf16>
    %c10 = arith.constant 10 : index
    %c0_37 = arith.constant 0 : index
    %c0_38 = arith.constant 0 : index
    %49 = vector.load %arg3[%c10, %c0_37, %c0_38] : memref<16x24x128xbf16, #tpu.memory_space<vmem>>, vector<1x24x128xbf16>
    %50 = vector.shape_cast %49 : vector<1x24x128xbf16> to vector<24x128xbf16>
    %cst_39 = arith.constant dense<0.000000e+00> : vector<24x128xf32>
    %51 = tpu.matmul %50, %8, %cst_39 {dimension_numbers = #tpu.dot_dimension_numbers<[1], [0], [0], [1], [0, 0, 1, 1], [], []>} : vector<24x128xbf16>, vector<128x128xbf16>, vector<24x128xf32> -> vector<24x128xf32>
    %52 = arith.truncf %51 : vector<24x128xf32> to vector<24x128xbf16>
    %c11 = arith.constant 11 : index
    %c0_40 = arith.constant 0 : index
    %c0_41 = arith.constant 0 : index
    %53 = vector.load %arg3[%c11, %c0_40, %c0_41] : memref<16x24x128xbf16, #tpu.memory_space<vmem>>, vector<1x24x128xbf16>
    %54 = vector.shape_cast %53 : vector<1x24x128xbf16> to vector<24x128xbf16>
    %cst_42 = arith.constant dense<0.000000e+00> : vector<24x128xf32>
    %55 = tpu.matmul %54, %8, %cst_42 {dimension_numbers = #tpu.dot_dimension_numbers<[1], [0], [0], [1], [0, 0, 1, 1], [], []>} : vector<24x128xbf16>, vector<128x128xbf16>, vector<24x128xf32> -> vector<24x128xf32>
    %56 = arith.truncf %55 : vector<24x128xf32> to vector<24x128xbf16>
    %c12 = arith.constant 12 : index
    %c0_43 = arith.constant 0 : index
    %c0_44 = arith.constant 0 : index
    %57 = vector.load %arg3[%c12, %c0_43, %c0_44] : memref<16x24x128xbf16, #tpu.memory_space<vmem>>, vector<1x24x128xbf16>
    %58 = vector.shape_cast %57 : vector<1x24x128xbf16> to vector<24x128xbf16>
    %cst_45 = arith.constant dense<0.000000e+00> : vector<24x128xf32>
    %59 = tpu.matmul %58, %8, %cst_45 {dimension_numbers = #tpu.dot_dimension_numbers<[1], [0], [0], [1], [0, 0, 1, 1], [], []>} : vector<24x128xbf16>, vector<128x128xbf16>, vector<24x128xf32> -> vector<24x128xf32>
    %60 = arith.truncf %59 : vector<24x128xf32> to vector<24x128xbf16>
    %c13 = arith.constant 13 : index
    %c0_46 = arith.constant 0 : index
    %c0_47 = arith.constant 0 : index
    %61 = vector.load %arg3[%c13, %c0_46, %c0_47] : memref<16x24x128xbf16, #tpu.memory_space<vmem>>, vector<1x24x128xbf16>
    %62 = vector.shape_cast %61 : vector<1x24x128xbf16> to vector<24x128xbf16>
    %cst_48 = arith.constant dense<0.000000e+00> : vector<24x128xf32>
    %63 = tpu.matmul %62, %8, %cst_48 {dimension_numbers = #tpu.dot_dimension_numbers<[1], [0], [0], [1], [0, 0, 1, 1], [], []>} : vector<24x128xbf16>, vector<128x128xbf16>, vector<24x128xf32> -> vector<24x128xf32>
    %64 = arith.truncf %63 : vector<24x128xf32> to vector<24x128xbf16>
    %c14 = arith.constant 14 : index
    %c0_49 = arith.constant 0 : index
    %c0_50 = arith.constant 0 : index
    %65 = vector.load %arg3[%c14, %c0_49, %c0_50] : memref<16x24x128xbf16, #tpu.memory_space<vmem>>, vector<1x24x128xbf16>
    %66 = vector.shape_cast %65 : vector<1x24x128xbf16> to vector<24x128xbf16>
    %cst_51 = arith.constant dense<0.000000e+00> : vector<24x128xf32>
    %67 = tpu.matmul %66, %8, %cst_51 {dimension_numbers = #tpu.dot_dimension_numbers<[1], [0], [0], [1], [0, 0, 1, 1], [], []>} : vector<24x128xbf16>, vector<128x128xbf16>, vector<24x128xf32> -> vector<24x128xf32>
    %68 = arith.truncf %67 : vector<24x128xf32> to vector<24x128xbf16>
    %c15 = arith.constant 15 : index
    %c0_52 = arith.constant 0 : index
    %c0_53 = arith.constant 0 : index
    %69 = vector.load %arg3[%c15, %c0_52, %c0_53] : memref<16x24x128xbf16, #tpu.memory_space<vmem>>, vector<1x24x128xbf16>
    %70 = vector.shape_cast %69 : vector<1x24x128xbf16> to vector<24x128xbf16>
    %cst_54 = arith.constant dense<0.000000e+00> : vector<24x128xf32>
    %71 = tpu.matmul %70, %8, %cst_54 {dimension_numbers = #tpu.dot_dimension_numbers<[1], [0], [0], [1], [0, 0, 1, 1], [], []>} : vector<24x128xbf16>, vector<128x128xbf16>, vector<24x128xf32> -> vector<24x128xf32>
    %72 = arith.truncf %71 : vector<24x128xf32> to vector<24x128xbf16>
    %73 = tpu.concatenate %12, %16, %20, %24, %28, %32, %36, %40, %44, %48, %52, %56, %60, %64, %68, %72 in 1 : vector<24x128xbf16>, vector<24x128xbf16>, vector<24x128xbf16>, vector<24x128xbf16>, vector<24x128xbf16>, vector<24x128xbf16>, vector<24x128xbf16>, vector<24x128xbf16>, vector<24x128xbf16>, vector<24x128xbf16>, vector<24x128xbf16>, vector<24x128xbf16>, vector<24x128xbf16>, vector<24x128xbf16>, vector<24x128xbf16>, vector<24x128xbf16> -> vector<24x2048xbf16>
    %c0_55 = arith.constant 0 : index
    %c0_56 = arith.constant 0 : index
    %74 = vector.load %arg4[%c0_55, %c0_56] : memref<2048x128xbf16, #tpu.memory_space<vmem>>, vector<2048x128xbf16>
    %cst_57 = arith.constant dense<0.000000e+00> : vector<24x128xf32>
    %75 = tpu.matmul %73, %74, %cst_57 {dimension_numbers = #tpu.dot_dimension_numbers<[1], [0], [0], [1], [0, 0, 1, 1], [], []>} : vector<24x2048xbf16>, vector<2048x128xbf16>, vector<24x128xf32> -> vector<24x128xf32>
    %c0_58 = arith.constant 0 : index
    %c0_59 = arith.constant 0 : index
    %76 = vector.load %arg5[%c0_58, %c0_59] : memref<1x128xf32, #tpu.memory_space<vmem>>, vector<1x128xf32>
    %77 = vector.broadcast %76 : vector<1x128xf32> to vector<24x128xf32>
    %78 = arith.addf %75, %77 : vector<24x128xf32>
    %cst_60 = arith.constant 0.000000e+00 : f32
    %79 = vector.broadcast %cst_60 : f32 to vector<24x128xf32>
    %80 = arith.maximumf %78, %79 : vector<24x128xf32>
    %81 = arith.truncf %80 : vector<24x128xf32> to vector<24x128xbf16>
    %c0_61 = arith.constant 0 : index
    %c0_62 = arith.constant 0 : index
    %c0_63 = arith.constant 0 : index
    %82 = vector.load %arg6[%c0_61, %c0_62, %c0_63] : memref<9x2x24xbf16, #tpu.memory_space<vmem>>, vector<1x2x24xbf16>
    %83 = vector.shape_cast %82 : vector<1x2x24xbf16> to vector<2x24xbf16>
    %cst_64 = arith.constant dense<0.000000e+00> : vector<2x128xf32>
    %84 = tpu.matmul %83, %81, %cst_64 {dimension_numbers = #tpu.dot_dimension_numbers<[1], [0], [0], [1], [0, 0, 1, 1], [], []>} : vector<2x24xbf16>, vector<24x128xbf16>, vector<2x128xf32> -> vector<2x128xf32>
    %85 = arith.truncf %84 : vector<2x128xf32> to vector<2x128xbf16>
    %c1_65 = arith.constant 1 : index
    %c0_66 = arith.constant 0 : index
    %c0_67 = arith.constant 0 : index
    %86 = vector.load %arg6[%c1_65, %c0_66, %c0_67] : memref<9x2x24xbf16, #tpu.memory_space<vmem>>, vector<1x2x24xbf16>
    %87 = vector.shape_cast %86 : vector<1x2x24xbf16> to vector<2x24xbf16>
    %cst_68 = arith.constant dense<0.000000e+00> : vector<2x128xf32>
    %88 = tpu.matmul %87, %81, %cst_68 {dimension_numbers = #tpu.dot_dimension_numbers<[1], [0], [0], [1], [0, 0, 1, 1], [], []>} : vector<2x24xbf16>, vector<24x128xbf16>, vector<2x128xf32> -> vector<2x128xf32>
    %89 = arith.truncf %88 : vector<2x128xf32> to vector<2x128xbf16>
    %c2_69 = arith.constant 2 : index
    %c0_70 = arith.constant 0 : index
    %c0_71 = arith.constant 0 : index
    %90 = vector.load %arg6[%c2_69, %c0_70, %c0_71] : memref<9x2x24xbf16, #tpu.memory_space<vmem>>, vector<1x2x24xbf16>
    %91 = vector.shape_cast %90 : vector<1x2x24xbf16> to vector<2x24xbf16>
    %cst_72 = arith.constant dense<0.000000e+00> : vector<2x128xf32>
    %92 = tpu.matmul %91, %81, %cst_72 {dimension_numbers = #tpu.dot_dimension_numbers<[1], [0], [0], [1], [0, 0, 1, 1], [], []>} : vector<2x24xbf16>, vector<24x128xbf16>, vector<2x128xf32> -> vector<2x128xf32>
    %93 = arith.truncf %92 : vector<2x128xf32> to vector<2x128xbf16>
    %c3_73 = arith.constant 3 : index
    %c0_74 = arith.constant 0 : index
    %c0_75 = arith.constant 0 : index
    %94 = vector.load %arg6[%c3_73, %c0_74, %c0_75] : memref<9x2x24xbf16, #tpu.memory_space<vmem>>, vector<1x2x24xbf16>
    %95 = vector.shape_cast %94 : vector<1x2x24xbf16> to vector<2x24xbf16>
    %cst_76 = arith.constant dense<0.000000e+00> : vector<2x128xf32>
    %96 = tpu.matmul %95, %81, %cst_76 {dimension_numbers = #tpu.dot_dimension_numbers<[1], [0], [0], [1], [0, 0, 1, 1], [], []>} : vector<2x24xbf16>, vector<24x128xbf16>, vector<2x128xf32> -> vector<2x128xf32>
    %97 = arith.truncf %96 : vector<2x128xf32> to vector<2x128xbf16>
    %c4_77 = arith.constant 4 : index
    %c0_78 = arith.constant 0 : index
    %c0_79 = arith.constant 0 : index
    %98 = vector.load %arg6[%c4_77, %c0_78, %c0_79] : memref<9x2x24xbf16, #tpu.memory_space<vmem>>, vector<1x2x24xbf16>
    %99 = vector.shape_cast %98 : vector<1x2x24xbf16> to vector<2x24xbf16>
    %cst_80 = arith.constant dense<0.000000e+00> : vector<2x128xf32>
    %100 = tpu.matmul %99, %81, %cst_80 {dimension_numbers = #tpu.dot_dimension_numbers<[1], [0], [0], [1], [0, 0, 1, 1], [], []>} : vector<2x24xbf16>, vector<24x128xbf16>, vector<2x128xf32> -> vector<2x128xf32>
    %101 = arith.truncf %100 : vector<2x128xf32> to vector<2x128xbf16>
    %c5_81 = arith.constant 5 : index
    %c0_82 = arith.constant 0 : index
    %c0_83 = arith.constant 0 : index
    %102 = vector.load %arg6[%c5_81, %c0_82, %c0_83] : memref<9x2x24xbf16, #tpu.memory_space<vmem>>, vector<1x2x24xbf16>
    %103 = vector.shape_cast %102 : vector<1x2x24xbf16> to vector<2x24xbf16>
    %cst_84 = arith.constant dense<0.000000e+00> : vector<2x128xf32>
    %104 = tpu.matmul %103, %81, %cst_84 {dimension_numbers = #tpu.dot_dimension_numbers<[1], [0], [0], [1], [0, 0, 1, 1], [], []>} : vector<2x24xbf16>, vector<24x128xbf16>, vector<2x128xf32> -> vector<2x128xf32>
    %105 = arith.truncf %104 : vector<2x128xf32> to vector<2x128xbf16>
    %c6_85 = arith.constant 6 : index
    %c0_86 = arith.constant 0 : index
    %c0_87 = arith.constant 0 : index
    %106 = vector.load %arg6[%c6_85, %c0_86, %c0_87] : memref<9x2x24xbf16, #tpu.memory_space<vmem>>, vector<1x2x24xbf16>
    %107 = vector.shape_cast %106 : vector<1x2x24xbf16> to vector<2x24xbf16>
    %cst_88 = arith.constant dense<0.000000e+00> : vector<2x128xf32>
    %108 = tpu.matmul %107, %81, %cst_88 {dimension_numbers = #tpu.dot_dimension_numbers<[1], [0], [0], [1], [0, 0, 1, 1], [], []>} : vector<2x24xbf16>, vector<24x128xbf16>, vector<2x128xf32> -> vector<2x128xf32>
    %109 = arith.truncf %108 : vector<2x128xf32> to vector<2x128xbf16>
    %c7_89 = arith.constant 7 : index
    %c0_90 = arith.constant 0 : index
    %c0_91 = arith.constant 0 : index
    %110 = vector.load %arg6[%c7_89, %c0_90, %c0_91] : memref<9x2x24xbf16, #tpu.memory_space<vmem>>, vector<1x2x24xbf16>
    %111 = vector.shape_cast %110 : vector<1x2x24xbf16> to vector<2x24xbf16>
    %cst_92 = arith.constant dense<0.000000e+00> : vector<2x128xf32>
    %112 = tpu.matmul %111, %81, %cst_92 {dimension_numbers = #tpu.dot_dimension_numbers<[1], [0], [0], [1], [0, 0, 1, 1], [], []>} : vector<2x24xbf16>, vector<24x128xbf16>, vector<2x128xf32> -> vector<2x128xf32>
    %113 = arith.truncf %112 : vector<2x128xf32> to vector<2x128xbf16>
    %c8_93 = arith.constant 8 : index
    %c0_94 = arith.constant 0 : index
    %c0_95 = arith.constant 0 : index
    %114 = vector.load %arg6[%c8_93, %c0_94, %c0_95] : memref<9x2x24xbf16, #tpu.memory_space<vmem>>, vector<1x2x24xbf16>
    %115 = vector.shape_cast %114 : vector<1x2x24xbf16> to vector<2x24xbf16>
    %cst_96 = arith.constant dense<0.000000e+00> : vector<2x128xf32>
    %116 = tpu.matmul %115, %81, %cst_96 {dimension_numbers = #tpu.dot_dimension_numbers<[1], [0], [0], [1], [0, 0, 1, 1], [], []>} : vector<2x24xbf16>, vector<24x128xbf16>, vector<2x128xf32> -> vector<2x128xf32>
    %117 = arith.truncf %116 : vector<2x128xf32> to vector<2x128xbf16>
    %118 = tpu.concatenate %85, %89, %93, %97, %101, %105, %109, %113, %117 in 1 : vector<2x128xbf16>, vector<2x128xbf16>, vector<2x128xbf16>, vector<2x128xbf16>, vector<2x128xbf16>, vector<2x128xbf16>, vector<2x128xbf16>, vector<2x128xbf16>, vector<2x128xbf16> -> vector<2x1152xbf16>
    %c0_97 = arith.constant 0 : index
    %c0_98 = arith.constant 0 : index
    %119 = vector.load %arg7[%c0_97, %c0_98] : memref<1152x128xbf16, #tpu.memory_space<vmem>>, vector<1152x128xbf16>
    %cst_99 = arith.constant dense<0.000000e+00> : vector<2x128xf32>
    %120 = tpu.matmul %118, %119, %cst_99 {dimension_numbers = #tpu.dot_dimension_numbers<[1], [0], [0], [1], [0, 0, 1, 1], [], []>} : vector<2x1152xbf16>, vector<1152x128xbf16>, vector<2x128xf32> -> vector<2x128xf32>
    %c0_100 = arith.constant 0 : index
    %c0_101 = arith.constant 0 : index
    %121 = vector.load %arg8[%c0_100, %c0_101] : memref<1x128xf32, #tpu.memory_space<vmem>>, vector<1x128xf32>
    %122 = vector.broadcast %121 : vector<1x128xf32> to vector<2x128xf32>
    %123 = arith.addf %120, %122 : vector<2x128xf32>
    %cst_102 = arith.constant 0.000000e+00 : f32
    %124 = vector.broadcast %cst_102 : f32 to vector<2x128xf32>
    %125 = arith.maximumf %123, %124 : vector<2x128xf32>
    %126 = arith.truncf %125 : vector<2x128xf32> to vector<2x128xbf16>
    %c0_103 = arith.constant 0 : index
    %c0_104 = arith.constant 0 : index
    %127 = vector.load %arg9[%c0_103, %c0_104] : memref<128x512xbf16, #tpu.memory_space<vmem>>, vector<128x512xbf16>
    %cst_105 = arith.constant dense<0.000000e+00> : vector<2x512xf32>
    %128 = tpu.matmul %126, %127, %cst_105 {dimension_numbers = #tpu.dot_dimension_numbers<[1], [0], [0], [1], [0, 0, 1, 1], [], []>} : vector<2x128xbf16>, vector<128x512xbf16>, vector<2x512xf32> -> vector<2x512xf32>
    %c0_106 = arith.constant 0 : index
    %c0_107 = arith.constant 0 : index
    %129 = vector.load %arg10[%c0_106, %c0_107] : memref<1x512xf32, #tpu.memory_space<vmem>>, vector<1x512xf32>
    %130 = vector.broadcast %129 : vector<1x512xf32> to vector<2x512xf32>
    %131 = arith.addf %128, %130 : vector<2x512xf32>
    %cst_108 = arith.constant 0.000000e+00 : f32
    %132 = vector.broadcast %cst_108 : f32 to vector<2x512xf32>
    %133 = arith.maximumf %131, %132 : vector<2x512xf32>
    %134 = arith.truncf %133 : vector<2x512xf32> to vector<2x512xbf16>
    %c0_109 = arith.constant 0 : index
    %c0_110 = arith.constant 0 : index
    %135 = vector.load %arg11[%c0_109, %c0_110] : memref<512x512xbf16, #tpu.memory_space<vmem>>, vector<512x512xbf16>
    %cst_111 = arith.constant dense<0.000000e+00> : vector<2x512xf32>
    %136 = tpu.matmul %134, %135, %cst_111 {dimension_numbers = #tpu.dot_dimension_numbers<[1], [0], [0], [1], [0, 0, 1, 1], [], []>} : vector<2x512xbf16>, vector<512x512xbf16>, vector<2x512xf32> -> vector<2x512xf32>
    %c0_112 = arith.constant 0 : index
    %c0_113 = arith.constant 0 : index
    %137 = vector.load %arg12[%c0_112, %c0_113] : memref<1x512xf32, #tpu.memory_space<vmem>>, vector<1x512xf32>
    %138 = vector.broadcast %137 : vector<1x512xf32> to vector<2x512xf32>
    %139 = arith.addf %136, %138 : vector<2x512xf32>
    %c0_114 = arith.constant 0 : index
    %c0_115 = arith.constant 0 : index
    %140 = vector.load %arg13[%c0_114, %c0_115] : memref<2x512xf32, #tpu.memory_space<vmem>>, vector<2x512xf32>
    tpu.vector_store %arg13[%c0_114, %c0_115], %139 {strides = array<i32>} : memref<2x512xf32, #tpu.memory_space<vmem>>, vector<2x512xf32>,
    return
  }
}

</mosaic_0001>

<llo_original>
// kernel: rnd_forward.1
$region0: #{rnd_forward.1}
  #allocation0 [shape = 'u32[]', space=smem, size = 0x4, offset = 0x4, fixed_abs, tag = 'smem constant byte address 0x4 - core index']
  #allocation1 [shape = 'u32[144,128]{1,0:T(1,128)}', space=vmem, size = 0x12000, scoped, tag = 'internal scratch']
  %s0 = inlined_call_operand.vmem [shape: bf16[128,256], index: 0, kind: input, shape index: {}]
  %s1 = inlined_call_operand.vmem [shape: bf16[256,128], index: 1, kind: input, shape index: {}]
  %s2 = inlined_call_operand.vmem [shape: f32[1,128], index: 2, kind: input, shape index: {}]
  %s3 = inlined_call_operand.vmem [shape: bf16[16,24,128], index: 3, kind: input, shape index: {}]
  %s4 = inlined_call_operand.vmem [shape: bf16[2048,128], index: 4, kind: input, shape index: {}]
  %s5 = inlined_call_operand.vmem [shape: f32[1,128], index: 5, kind: input, shape index: {}]
  %s6 = inlined_call_operand.vmem [shape: bf16[9,2,24], index: 6, kind: input, shape index: {}]
  %s7 = inlined_call_operand.vmem [shape: bf16[1152,128], index: 7, kind: input, shape index: {}]
  %s8 = inlined_call_operand.vmem [shape: f32[1,128], index: 8, kind: input, shape index: {}]
  %s9 = inlined_call_operand.vmem [shape: bf16[128,512], index: 9, kind: input, shape index: {}]
  %s10 = inlined_call_operand.vmem [shape: f32[1,512], index: 10, kind: input, shape index: {}]
  %s11 = inlined_call_operand.vmem [shape: bf16[512,512], index: 11, kind: input, shape index: {}]
  %s12 = inlined_call_operand.vmem [shape: f32[1,512], index: 12, kind: input, shape index: {}]
  %s13 = inlined_call_operand.hbm [shape: f32[2,512], index: 13, kind: output, shape index: {}]
  %s14 = sld [smem:[#allocation0]]
  $region62: #{rnd_forward.1} parent=0
    _
  %s16 = ssub.s32 1, %s14
  %s17 = scalar_select 0, %s16, %s14
  $region1: #{rnd_forward.1} parent=0
    #allocation2 [shape = 'u8[4096]{0}', space=vmem, size = 0x1000, scoped, tag = 'output window, operand 0, single buffered']
    #allocation3 [shape = 's32[1]{0}', space=sflag, size = 0x4, scoped, tag = 'scoped memory for rnd_forward.1']
    %18 = vsyncpa [#allocation3], 0
    // Predicated region
    $region2: #{rnd_forward.1} parent=1 // pred_check
      _
    $region3: #{rnd_forward.1} parent=1 // pred_check_branch
      %20 = sbr.rel (0) target = $region5
    $region4: #{rnd_forward.1} parent=1 // pred_region
      _
    $region5: #{rnd_forward.1} parent=1 // pred_fallthru
      _
    // Predicated region
    $region6: #{rnd_forward.1} parent=1 // pred_check
      _
    $region7: #{rnd_forward.1} parent=1 // pred_check_branch
      %22 = sbr.rel (0) target = $region9
    $region8: #{rnd_forward.1} parent=1 // pred_region
      _
    $region9: #{rnd_forward.1} parent=1 // pred_fallthru
      _
    // Predicated region
    $region10: #{rnd_forward.1} parent=1 // pred_check
      _
    $region11: #{rnd_forward.1} parent=1 // pred_check_branch
      %24 = sbr.rel (0) target = $region13
    $region12: #{rnd_forward.1} parent=1 // pred_region
      _
    $region13: #{rnd_forward.1} parent=1 // pred_fallthru
      _
    // Predicated region
    $region14: #{rnd_forward.1} parent=1 // pred_check
      _
    $region15: #{rnd_forward.1} parent=1 // pred_check_branch
      %26 = sbr.rel (0) target = $region17
    $region16: #{rnd_forward.1} parent=1 // pred_region
      _
    $region17: #{rnd_forward.1} parent=1 // pred_fallthru
      _
    // Predicated region
    $region18: #{rnd_forward.1} parent=1 // pred_check
      _
    $region19: #{rnd_forward.1} parent=1 // pred_check_branch
      %28 = sbr.rel (0) target = $region21
    $region20: #{rnd_forward.1} parent=1 // pred_region
      _
    $region21: #{rnd_forward.1} parent=1 // pred_fallthru
      _
    // Predicated region
    $region22: #{rnd_forward.1} parent=1 // pred_check
      _
    $region23: #{rnd_forward.1} parent=1 // pred_check_branch
      %30 = sbr.rel (0) target = $region25
    $region24: #{rnd_forward.1} parent=1 // pred_region
      _
    $region25: #{rnd_forward.1} parent=1 // pred_fallthru
      _
    // Predicated region
    $region26: #{rnd_forward.1} parent=1 // pred_check
      _
    $region27: #{rnd_forward.1} parent=1 // pred_check_branch
      %32 = sbr.rel (0) target = $region29
    $region28: #{rnd_forward.1} parent=1 // pred_region
      _
    $region29: #{rnd_forward.1} parent=1 // pred_fallthru
      _
    // Predicated region
    $region30: #{rnd_forward.1} parent=1 // pred_check
      _
    $region31: #{rnd_forward.1} parent=1 // pred_check_branch
      %34 = sbr.rel (0) target = $region33
    $region32: #{rnd_forward.1} parent=1 // pred_region
      _
    $region33: #{rnd_forward.1} parent=1 // pred_fallthru
      _
    // Predicated region
    $region34: #{rnd_forward.1} parent=1 // pred_check
      _
    $region35: #{rnd_forward.1} parent=1 // pred_check_branch
      %36 = sbr.rel (0) target = $region37
    $region36: #{rnd_forward.1} parent=1 // pred_region
      _
    $region37: #{rnd_forward.1} parent=1 // pred_fallthru
      _
    // Predicated region
    $region38: #{rnd_forward.1} parent=1 // pred_check
      _
    $region39: #{rnd_forward.1} parent=1 // pred_check_branch
      %38 = sbr.rel (0) target = $region41
    $region40: #{rnd_forward.1} parent=1 // pred_region
      _
    $region41: #{rnd_forward.1} parent=1 // pred_fallthru
      _
    // Predicated region
    $region42: #{rnd_forward.1} parent=1 // pred_check
      _
    $region43: #{rnd_forward.1} parent=1 // pred_check_branch
      %40 = sbr.rel (0) target = $region45
    $region44: #{rnd_forward.1} parent=1 // pred_region
      _
    $region45: #{rnd_forward.1} parent=1 // pred_fallthru
      _
    // Predicated region
    $region46: #{rnd_forward.1} parent=1 // pred_check
      _
    $region47: #{rnd_forward.1} parent=1 // pred_check_branch
      %42 = sbr.rel (0) target = $region49
    $region48: #{rnd_forward.1} parent=1 // pred_region
      _
    $region49: #{rnd_forward.1} parent=1 // pred_fallthru
      _
    // Predicated region
    $region50: #{rnd_forward.1} parent=1 // pred_check
      _
    $region51: #{rnd_forward.1} parent=1 // pred_check_branch
      %44 = sbr.rel (0) target = $region53
    $region52: #{rnd_forward.1} parent=1 // pred_region
      _
    $region53: #{rnd_forward.1} parent=1 // pred_fallthru
      _
    %v46 = vld [vmem:[%s0] sm:$0xff]
    %v47 = vld [vmem:[%s0 + $0x8] sm:$0xff]
    %v48 = vld [vmem:[%s0 + $0x10] sm:$0xff]
    %v49 = vld [vmem:[%s0 + $0x18] sm:$0xff]
    %v50 = vld [vmem:[%s0 + $0x20] sm:$0xff]
    %v51 = vld [vmem:[%s0 + $0x28] sm:$0xff]
    %v52 = vld [vmem:[%s0 + $0x30] sm:$0xff]
    %v53 = vld [vmem:[%s0 + $0x38] sm:$0xff]
    %v54 = vld [vmem:[%s0 + $0x40] sm:$0xff]
    %v55 = vld [vmem:[%s0 + $0x48] sm:$0xff]
    %v56 = vld [vmem:[%s0 + $0x50] sm:$0xff]
    %v57 = vld [vmem:[%s0 + $0x58] sm:$0xff]
    %v58 = vld [vmem:[%s0 + $0x60] sm:$0xff]
    %v59 = vld [vmem:[%s0 + $0x68] sm:$0xff]
    %v60 = vld [vmem:[%s0 + $0x70] sm:$0xff]
    %v61 = vld [vmem:[%s0 + $0x78] sm:$0xff]
    %v62 = vld [vmem:[%s1] sm:$0xf]
    %v63 = vld [vmem:[%s1 + $0x4] sm:$0xf]
    %v64 = vld [vmem:[%s1 + $0x8] sm:$0xf]
    %v65 = vld [vmem:[%s1 + $0xc] sm:$0xf]
    %v66 = vld [vmem:[%s1 + $0x10] sm:$0xf]
    %v67 = vld [vmem:[%s1 + $0x14] sm:$0xf]
    %v68 = vld [vmem:[%s1 + $0x18] sm:$0xf]
    %v69 = vld [vmem:[%s1 + $0x1c] sm:$0xf]
    %v70 = vld [vmem:[%s1 + $0x20] sm:$0xf]
    %v71 = vld [vmem:[%s1 + $0x24] sm:$0xf]
    %v72 = vld [vmem:[%s1 + $0x28] sm:$0xf]
    %v73 = vld [vmem:[%s1 + $0x2c] sm:$0xf]
    %v74 = vld [vmem:[%s1 + $0x30] sm:$0xf]
    %v75 = vld [vmem:[%s1 + $0x34] sm:$0xf]
    %v76 = vld [vmem:[%s1 + $0x38] sm:$0xf]
    %v77 = vld [vmem:[%s1 + $0x3c] sm:$0xf]
    %v78 = vld [vmem:[%s1 + $0x40] sm:$0xf]
    %v79 = vld [vmem:[%s1 + $0x44] sm:$0xf]
    %v80 = vld [vmem:[%s1 + $0x48] sm:$0xf]
    %v81 = vld [vmem:[%s1 + $0x4c] sm:$0xf]
    %v82 = vld [vmem:[%s1 + $0x50] sm:$0xf]
    %v83 = vld [vmem:[%s1 + $0x54] sm:$0xf]
    %v84 = vld [vmem:[%s1 + $0x58] sm:$0xf]
    %v85 = vld [vmem:[%s1 + $0x5c] sm:$0xf]
    %v86 = vld [vmem:[%s1 + $0x60] sm:$0xf]
    %v87 = vld [vmem:[%s1 + $0x64] sm:$0xf]
    %v88 = vld [vmem:[%s1 + $0x68] sm:$0xf]
    %v89 = vld [vmem:[%s1 + $0x6c] sm:$0xf]
    %v90 = vld [vmem:[%s1 + $0x70] sm:$0xf]
    %v91 = vld [vmem:[%s1 + $0x74] sm:$0xf]
    %v92 = vld [vmem:[%s1 + $0x78] sm:$0xf]
    %v93 = vld [vmem:[%s1 + $0x7c] sm:$0xf]
    %v94 = vld [vmem:[%s2] sm:$0x1]
    %v96 = vlaneseq
    %v97 = vshrl.u32 %v96, 7
    %v98 = vsub.s32 0, %v97
    %v99 = vrot.slane %v94, %v98
    %v117 = vunpack.c.l.b16 %v46
    %v118 = vunpack.c.h.b16 %v46
    %v119 = vunpack.c.l.b16 %v47
    %v120 = vunpack.c.h.b16 %v47
    %v121 = vunpack.c.l.b16 %v48
    %v122 = vunpack.c.h.b16 %v48
    %v123 = vunpack.c.l.b16 %v49
    %v124 = vunpack.c.h.b16 %v49
    %v125 = vunpack.c.l.b16 %v50
    %v126 = vunpack.c.h.b16 %v50
    %v127 = vunpack.c.l.b16 %v51
    %v128 = vunpack.c.h.b16 %v51
    %v129 = vunpack.c.l.b16 %v52
    %v130 = vunpack.c.h.b16 %v52
    %v131 = vunpack.c.l.b16 %v53
    %v132 = vunpack.c.h.b16 %v53
    %v133 = vunpack.c.l.b16 %v54
    %v134 = vunpack.c.h.b16 %v54
    %v135 = vunpack.c.l.b16 %v55
    %v136 = vunpack.c.h.b16 %v55
    %v137 = vunpack.c.l.b16 %v56
    %v138 = vunpack.c.h.b16 %v56
    %v139 = vunpack.c.l.b16 %v57
    %v140 = vunpack.c.h.b16 %v57
    %v141 = vunpack.c.l.b16 %v58
    %v142 = vunpack.c.h.b16 %v58
    %v143 = vunpack.c.l.b16 %v59
    %v144 = vunpack.c.h.b16 %v59
    %v145 = vunpack.c.l.b16 %v60
    %v146 = vunpack.c.h.b16 %v60
    %v147 = vunpack.c.l.b16 %v61
    %v148 = vunpack.c.h.b16 %v61
    %v149 = vpack.c.b16 %v119, %v117
    %v150 = vpack.c.b16 %v120, %v118
    %v151 = vpack.c.b16 %v123, %v121
    %v152 = vpack.c.b16 %v124, %v122
    %v153 = vpack.c.b16 %v127, %v125
    %v154 = vpack.c.b16 %v128, %v126
    %v155 = vpack.c.b16 %v131, %v129
    %v156 = vpack.c.b16 %v132, %v130
    %v157 = vpack.c.b16 %v135, %v133
    %v158 = vpack.c.b16 %v136, %v134
    %v159 = vpack.c.b16 %v139, %v137
    %v160 = vpack.c.b16 %v140, %v138
    %v161 = vpack.c.b16 %v143, %v141
    %v162 = vpack.c.b16 %v144, %v142
    %v163 = vpack.c.b16 %v147, %v145
    %v164 = vpack.c.b16 %v148, %v146
    %v213 = vunpack.c.l.b16 %v62
    %v214 = vunpack.c.l.b16 %v63
    %v215 = vunpack.c.l.b16 %v64
    %v216 = vunpack.c.l.b16 %v65
    %v217 = vunpack.c.l.b16 %v66
    %v218 = vunpack.c.l.b16 %v67
    %v219 = vunpack.c.l.b16 %v68
    %v220 = vunpack.c.l.b16 %v69
    %v221 = vunpack.c.l.b16 %v70
    %v222 = vunpack.c.l.b16 %v71
    %v223 = vunpack.c.l.b16 %v72
    %v224 = vunpack.c.l.b16 %v73
    %v225 = vunpack.c.l.b16 %v74
    %v226 = vunpack.c.l.b16 %v75
    %v227 = vunpack.c.l.b16 %v76
    %v228 = vunpack.c.l.b16 %v77
    %v229 = vunpack.c.l.b16 %v78
    %v230 = vunpack.c.l.b16 %v79
    %v231 = vunpack.c.l.b16 %v80
    %v232 = vunpack.c.l.b16 %v81
    %v233 = vunpack.c.l.b16 %v82
    %v234 = vunpack.c.l.b16 %v83
    %v235 = vunpack.c.l.b16 %v84
    %v236 = vunpack.c.l.b16 %v85
    %v237 = vunpack.c.l.b16 %v86
    %v238 = vunpack.c.l.b16 %v87
    %v239 = vunpack.c.l.b16 %v88
    %v240 = vunpack.c.l.b16 %v89
    %v241 = vunpack.c.l.b16 %v90
    %v242 = vunpack.c.l.b16 %v91
    %v243 = vunpack.c.l.b16 %v92
    %v244 = vunpack.c.l.b16 %v93
    %v245 = vpack.c.b16 %v214, %v213
    %v246 = vpack.c.b16 %v216, %v215
    %v247 = vpack.c.b16 %v218, %v217
    %v248 = vpack.c.b16 %v220, %v219
    %v249 = vpack.c.b16 %v222, %v221
    %v250 = vpack.c.b16 %v224, %v223
    %v251 = vpack.c.b16 %v226, %v225
    %v252 = vpack.c.b16 %v228, %v227
    %v253 = vpack.c.b16 %v230, %v229
    %v254 = vpack.c.b16 %v232, %v231
    %v255 = vpack.c.b16 %v234, %v233
    %v256 = vpack.c.b16 %v236, %v235
    %v257 = vpack.c.b16 %v238, %v237
    %v258 = vpack.c.b16 %v240, %v239
    %v259 = vpack.c.b16 %v242, %v241
    %v260 = vpack.c.b16 %v244, %v243
    %277 = vmatprep.subr.bf16.mxu0 0
    %278 = vmatpush1.bf16.msra.mxu0 %v245
    %279 = vmatprep.subr.bf16.mxu0 0
    %280 = vmatpush1.bf16.msra.mxu0 %v246
    %281 = vmatprep.subr.bf16.mxu0 0
    %282 = vmatpush1.bf16.msra.mxu0 %v247
    %283 = vmatprep.subr.bf16.mxu0 0
    %284 = vmatpush1.bf16.msra.mxu0 %v248
    %285 = vmatprep.subr.bf16.mxu0 0
    %286 = vmatpush1.bf16.msra.mxu0 %v249
    %287 = vmatprep.subr.bf16.mxu0 0
    %288 = vmatpush1.bf16.msra.mxu0 %v250
    %289 = vmatprep.subr.bf16.mxu0 0
    %290 = vmatpush1.bf16.msra.mxu0 %v251
    %291 = vmatprep.subr.bf16.mxu0 0
    %292 = vmatpush1.bf16.msra.mxu0 %v252
    %293 = vmatprep.subr.bf16.mxu0 0
    %294 = vmatpush1.bf16.msra.mxu0 %v253
    %295 = vmatprep.subr.bf16.mxu0 0
    %296 = vmatpush1.bf16.msra.mxu0 %v254
    %297 = vmatprep.subr.bf16.mxu0 0
    %298 = vmatpush1.bf16.msra.mxu0 %v255
    %299 = vmatprep.subr.bf16.mxu0 0
    %300 = vmatpush1.bf16.msra.mxu0 %v256
    %301 = vmatprep.subr.bf16.mxu0 0
    %302 = vmatpush1.bf16.msra.mxu0 %v257
    %303 = vmatprep.subr.bf16.mxu0 0
    %304 = vmatpush1.bf16.msra.mxu0 %v258
    %305 = vmatprep.subr.bf16.mxu0 0
    %306 = vmatpush1.bf16.msra.mxu0 %v259
    %307 = vmatprep.subr.bf16.mxu0 0
    %308 = vmatpush1.bf16.msra.mxu0 %v260
    %309 = vmatprep.mubr.bf16.mxu0 %v150
    %310 = vmatmul.mubr.bf16.gmra.mrb[0].mxu0 %v149
    %v311 = vpop.f32.mrb[0].mxu0
    %v312 = vadd.f32 %v99, %v311
    %v313 = vpop.f32.mrb[0].mxu0
    %v314 = vpop.f32.mrb[0].mxu0
    %v315 = vadd.f32 %v99, %v314
    %v316 = vpop.f32.mrb[0].mxu0
    %317 = vmatprep.mubr.bf16.mxu0 %v152
    %318 = vmatmul.mubr.bf16.gmra.mrb[0].mxu0 %v151
    %v319 = vpop.f32.mrb[0].mxu0
    %v320 = vadd.f32 %v99, %v319
    %v321 = vpop.f32.mrb[0].mxu0
    %v322 = vpop.f32.mrb[0].mxu0
    %v323 = vadd.f32 %v99, %v322
    %v324 = vpop.f32.mrb[0].mxu0
    %325 = vmatprep.mubr.bf16.mxu0 %v154
    %326 = vmatmul.mubr.bf16.gmra.mrb[0].mxu0 %v153
    %v327 = vpop.f32.mrb[0].mxu0
    %v328 = vadd.f32 %v99, %v327
    %v329 = vpop.f32.mrb[0].mxu0
    %v330 = vpop.f32.mrb[0].mxu0
    %v331 = vadd.f32 %v99, %v330
    %v332 = vpop.f32.mrb[0].mxu0
    %333 = vmatprep.mubr.bf16.mxu0 %v156
    %334 = vmatmul.mubr.bf16.gmra.mrb[0].mxu0 %v155
    %v335 = vpop.f32.mrb[0].mxu0
    %v336 = vadd.f32 %v99, %v335
    %v337 = vpop.f32.mrb[0].mxu0
    %v338 = vpop.f32.mrb[0].mxu0
    %v339 = vadd.f32 %v99, %v338
    %v340 = vpop.f32.mrb[0].mxu0
    %341 = vmatprep.mubr.bf16.mxu0 %v158
    %342 = vmatmul.mubr.bf16.gmra.mrb[0].mxu0 %v157
    %v343 = vpop.f32.mrb[0].mxu0
    %v344 = vadd.f32 %v99, %v343
    %v345 = vpop.f32.mrb[0].mxu0
    %v346 = vpop.f32.mrb[0].mxu0
    %v347 = vadd.f32 %v99, %v346
    %v348 = vpop.f32.mrb[0].mxu0
    %349 = vmatprep.mubr.bf16.mxu0 %v160
    %350 = vmatmul.mubr.bf16.gmra.mrb[0].mxu0 %v159
    %v351 = vpop.f32.mrb[0].mxu0
    %v352 = vadd.f32 %v99, %v351
    %v353 = vpop.f32.mrb[0].mxu0
    %v354 = vpop.f32.mrb[0].mxu0
    %v355 = vadd.f32 %v99, %v354
    %v356 = vpop.f32.mrb[0].mxu0
    %357 = vmatprep.mubr.bf16.mxu0 %v162
    %358 = vmatmul.mubr.bf16.gmra.mrb[0].mxu0 %v161
    %v359 = vpop.f32.mrb[0].mxu0
    %v360 = vadd.f32 %v99, %v359
    %v361 = vpop.f32.mrb[0].mxu0
    %v362 = vpop.f32.mrb[0].mxu0
    %v363 = vadd.f32 %v99, %v362
    %v364 = vpop.f32.mrb[0].mxu0
    %365 = vmatprep.mubr.bf16.mxu0 %v164
    %366 = vmatmul.mubr.bf16.gmra.mrb[0].mxu0 %v163
    %v367 = vpop.f32.mrb[0].mxu0
    %v368 = vadd.f32 %v99, %v367
    %v369 = vpop.f32.mrb[0].mxu0
    %v370 = vpop.f32.mrb[0].mxu0
    %v371 = vadd.f32 %v99, %v370
    %v372 = vpop.f32.mrb[0].mxu0
    %373 = vdwg.mxu0
    %v374 = vmax.f32 %v312, 0.0
    %v375 = vmax.f32 %v315, 0.0
    %v376 = vmax.f32 %v320, 0.0
    %v377 = vmax.f32 %v323, 0.0
    %v378 = vmax.f32 %v328, 0.0
    %v379 = vmax.f32 %v331, 0.0
    %v380 = vmax.f32 %v336, 0.0
    %v381 = vmax.f32 %v339, 0.0
    %v382 = vmax.f32 %v344, 0.0
    %v383 = vmax.f32 %v347, 0.0
    %v384 = vmax.f32 %v352, 0.0
    %v385 = vmax.f32 %v355, 0.0
    %v386 = vmax.f32 %v360, 0.0
    %v387 = vmax.f32 %v363, 0.0
    %v388 = vmax.f32 %v368, 0.0
    %v389 = vmax.f32 %v371, 0.0
    %v390 = vpack.c.bf16 %v375, %v374
    %v391 = vpack.c.bf16 %v377, %v376
    %v392 = vpack.c.bf16 %v379, %v378
    %v393 = vpack.c.bf16 %v381, %v380
    %v394 = vpack.c.bf16 %v383, %v382
    %v395 = vpack.c.bf16 %v385, %v384
    %v396 = vpack.c.bf16 %v387, %v386
    %v397 = vpack.c.bf16 %v389, %v388
    %v398 = vld [vmem:[%s3] sm:$0xf]
    %v399 = vld [vmem:[%s3 + $0x4] sm:$0xf]
    %v400 = vld [vmem:[%s3 + $0x8] sm:$0xf]
    %v404 = vunpack.c.l.b16 %v398
    %v405 = vunpack.c.l.b16 %v399
    %v406 = vunpack.c.l.b16 %v400
    %v407 = vpack.c.b16 %v405, %v404
    %v408 = vpack.c.b16 %v406, %v406
    %411 = vmatprep.subr.bf16.mxu0 0
    %412 = vmatpush1.bf16.msra.mxu0 %v390
    %413 = vmatprep.subr.bf16.mxu0 0
    %414 = vmatpush1.bf16.msra.mxu0 %v391
    %415 = vmatprep.subr.bf16.mxu0 0
    %416 = vmatpush1.bf16.msra.mxu0 %v392
    %417 = vmatprep.subr.bf16.mxu0 0
    %418 = vmatpush1.bf16.msra.mxu0 %v393
    %419 = vmatprep.subr.bf16.mxu0 0
    %420 = vmatpush1.bf16.msra.mxu0 %v394
    %421 = vmatprep.subr.bf16.mxu0 0
    %422 = vmatpush1.bf16.msra.mxu0 %v395
    %423 = vmatprep.subr.bf16.mxu0 0
    %424 = vmatpush1.bf16.msra.mxu0 %v396
    %425 = vmatprep.subr.bf16.mxu0 0
    %426 = vmatpush1.bf16.msra.mxu0 %v397
    %427 = vmatprep.subr.bf16.mxu0 0
    %428 = vmatpush1.bf16.msra.mxu0 0
    %429 = vmatprep.subr.bf16.mxu0 0
    %430 = vmatpush1.bf16.msra.mxu0 0
    %431 = vmatprep.subr.bf16.mxu0 0
    %432 = vmatpush1.bf16.msra.mxu0 0
    %433 = vmatprep.subr.bf16.mxu0 0
    %434 = vmatpush1.bf16.msra.mxu0 0
    %435 = vmatprep.subr.bf16.mxu0 0
    %436 = vmatpush1.bf16.msra.mxu0 0
    %437 = vmatprep.subr.bf16.mxu0 0
    %438 = vmatpush1.bf16.msra.mxu0 0
    %439 = vmatprep.subr.bf16.mxu0 0
    %440 = vmatpush1.bf16.msra.mxu0 0
    %441 = vmatprep.subr.bf16.mxu0 0
    %442 = vmatpush1.bf16.msra.mxu0 0
    %443 = vmatprep.mubr.bf16.mxu0 0
    %444 = vmatmul.mubr.bf16.gmra.mrb[0].mxu0 %v407
    %v445 = vpop.f32.mrb[0].mxu0
    %v446 = vadd.f32 0.0, %v445
    %v447 = vpop.f32.mrb[0].mxu0
    %v448 = vpop.f32.mrb[0].mxu0
    %v449 = vadd.f32 0.0, %v448
    %v450 = vpop.f32.mrb[0].mxu0
    %451 = vmatprep.mubr.bf16.mxu0 0
    %452 = vmatmul.mubr.bf16.gmra.mrb[0].mxu0 %v408
    %v453 = vpop.f32.mrb[0].mxu0
    %v454 = vadd.f32 0.0, %v453
    %v455 = vpop.f32.mrb[0].mxu0
    %v456 = vpop.f32.mrb[0].mxu0
    %v457 = vpop.f32.mrb[0].mxu0
    %458 = vdwg.mxu0
    %v459 = vpack.c.bf16 %v449, %v446
    %v460 = vpack.c.bf16 %v454, %v454
    %s461 = scalar_lea.vmem %s3, 12
    %v462 = vld [vmem:[%s461] sm:$0xf]
    %v463 = vld [vmem:[%s461 + $0x4] sm:$0xf]
    %v464 = vld [vmem:[%s461 + $0x8] sm:$0xf]
    %v468 = vunpack.c.l.b16 %v462
    %v469 = vunpack.c.l.b16 %v463
    %v470 = vunpack.c.l.b16 %v464
    %v471 = vpack.c.b16 %v469, %v468
    %v472 = vpack.c.b16 %v470, %v470
    %475 = vmatprep.subr.bf16.mxu0 0
    %476 = vmatpush1.bf16.msra.mxu0 %v390
    %477 = vmatprep.subr.bf16.mxu0 0
    %478 = vmatpush1.bf16.msra.mxu0 %v391
    %479 = vmatprep.subr.bf16.mxu0 0
    %480 = vmatpush1.bf16.msra.mxu0 %v392
    %481 = vmatprep.subr.bf16.mxu0 0
    %482 = vmatpush1.bf16.msra.mxu0 %v393
    %483 = vmatprep.subr.bf16.mxu0 0
    %484 = vmatpush1.bf16.msra.mxu0 %v394
    %485 = vmatprep.subr.bf16.mxu0 0
    %486 = vmatpush1.bf16.msra.mxu0 %v395
    %487 = vmatprep.subr.bf16.mxu0 0
    %488 = vmatpush1.bf16.msra.mxu0 %v396
    %489 = vmatprep.subr.bf16.mxu0 0
    %490 = vmatpush1.bf16.msra.mxu0 %v397
    %491 = vmatprep.subr.bf16.mxu0 0
    %492 = vmatpush1.bf16.msra.mxu0 0
    %493 = vmatprep.subr.bf16.mxu0 0
    %494 = vmatpush1.bf16.msra.mxu0 0
    %495 = vmatprep.subr.bf16.mxu0 0
    %496 = vmatpush1.bf16.msra.mxu0 0
    %497 = vmatprep.subr.bf16.mxu0 0
    %498 = vmatpush1.bf16.msra.mxu0 0
    %499 = vmatprep.subr.bf16.mxu0 0
    %500 = vmatpush1.bf16.msra.mxu0 0
    %501 = vmatprep.subr.bf16.mxu0 0
    %502 = vmatpush1.bf16.msra.mxu0 0
    %503 = vmatprep.subr.bf16.mxu0 0
    %504 = vmatpush1.bf16.msra.mxu0 0
    %505 = vmatprep.subr.bf16.mxu0 0
    %506 = vmatpush1.bf16.msra.mxu0 0
    %507 = vmatprep.mubr.bf16.mxu0 0
    %508 = vmatmul.mubr.bf16.gmra.mrb[0].mxu0 %v471
    %v509 = vpop.f32.mrb[0].mxu0
    %v510 = vadd.f32 0.0, %v509
    %v511 = vpop.f32.mrb[0].mxu0
    %v512 = vpop.f32.mrb[0].mxu0
    %v513 = vadd.f32 0.0, %v512
    %v514 = vpop.f32.mrb[0].mxu0
    %515 = vmatprep.mubr.bf16.mxu0 0
    %516 = vmatmul.mubr.bf16.gmra.mrb[0].mxu0 %v472
    %v517 = vpop.f32.mrb[0].mxu0
    %v518 = vadd.f32 0.0, %v517
    %v519 = vpop.f32.mrb[0].mxu0
    %v520 = vpop.f32.mrb[0].mxu0
    %v521 = vpop.f32.mrb[0].mxu0
    %522 = vdwg.mxu0
    %v523 = vpack.c.bf16 %v513, %v510
    %v524 = vpack.c.bf16 %v518, %v518
    %s525 = scalar_lea.vmem %s3, 24
    %v526 = vld [vmem:[%s525] sm:$0xf]
    %v527 = vld [vmem:[%s525 + $0x4] sm:$0xf]
    %v528 = vld [vmem:[%s525 + $0x8] sm:$0xf]
    %v532 = vunpack.c.l.b16 %v526
    %v533 = vunpack.c.l.b16 %v527
    %v534 = vunpack.c.l.b16 %v528
    %v535 = vpack.c.b16 %v533, %v532
    %v536 = vpack.c.b16 %v534, %v534
    %539 = vmatprep.subr.bf16.mxu0 0
    %540 = vmatpush1.bf16.msra.mxu0 %v390
    %541 = vmatprep.subr.bf16.mxu0 0
    %542 = vmatpush1.bf16.msra.mxu0 %v391
    %543 = vmatprep.subr.bf16.mxu0 0
    %544 = vmatpush1.bf16.msra.mxu0 %v392
    %545 = vmatprep.subr.bf16.mxu0 0
    %546 = vmatpush1.bf16.msra.mxu0 %v393
    %547 = vmatprep.subr.bf16.mxu0 0
    %548 = vmatpush1.bf16.msra.mxu0 %v394
    %549 = vmatprep.subr.bf16.mxu0 0
    %550 = vmatpush1.bf16.msra.mxu0 %v395
    %551 = vmatprep.subr.bf16.mxu0 0
    %552 = vmatpush1.bf16.msra.mxu0 %v396
    %553 = vmatprep.subr.bf16.mxu0 0
    %554 = vmatpush1.bf16.msra.mxu0 %v397
    %555 = vmatprep.subr.bf16.mxu0 0
    %556 = vmatpush1.bf16.msra.mxu0 0
    %557 = vmatprep.subr.bf16.mxu0 0
    %558 = vmatpush1.bf16.msra.mxu0 0
    %559 = vmatprep.subr.bf16.mxu0 0
    %560 = vmatpush1.bf16.msra.mxu0 0
    %561 = vmatprep.subr.bf16.mxu0 0
    %562 = vmatpush1.bf16.msra.mxu0 0
    %563 = vmatprep.subr.bf16.mxu0 0
    %564 = vmatpush1.bf16.msra.mxu0 0
    %565 = vmatprep.subr.bf16.mxu0 0
    %566 = vmatpush1.bf16.msra.mxu0 0
    %567 = vmatprep.subr.bf16.mxu0 0
    %568 = vmatpush1.bf16.msra.mxu0 0
    %569 = vmatprep.subr.bf16.mxu0 0
    %570 = vmatpush1.bf16.msra.mxu0 0
    %571 = vmatprep.mubr.bf16.mxu0 0
    %572 = vmatmul.mubr.bf16.gmra.mrb[0].mxu0 %v535
    %v573 = vpop.f32.mrb[0].mxu0
    %v574 = vadd.f32 0.0, %v573
    %v575 = vpop.f32.mrb[0].mxu0
    %v576 = vpop.f32.mrb[0].mxu0
    %v577 = vadd.f32 0.0, %v576
    %v578 = vpop.f32.mrb[0].mxu0
    %579 = vmatprep.mubr.bf16.mxu0 0
    %580 = vmatmul.mubr.bf16.gmra.mrb[0].mxu0 %v536
    %v581 = vpop.f32.mrb[0].mxu0
    %v582 = vadd.f32 0.0, %v581
    %v583 = vpop.f32.mrb[0].mxu0
    %v584 = vpop.f32.mrb[0].mxu0
    %v585 = vpop.f32.mrb[0].mxu0
    %586 = vdwg.mxu0
    %v587 = vpack.c.bf16 %v577, %v574
    %v588 = vpack.c.bf16 %v582, %v582
    %s589 = scalar_lea.vmem %s3, 36
    %v590 = vld [vmem:[%s589] sm:$0xf]
    %v591 = vld [vmem:[%s589 + $0x4] sm:$0xf]
    %v592 = vld [vmem:[%s589 + $0x8] sm:$0xf]
    %v596 = vunpack.c.l.b16 %v590
    %v597 = vunpack.c.l.b16 %v591
    %v598 = vunpack.c.l.b16 %v592
    %v599 = vpack.c.b16 %v597, %v596
    %v600 = vpack.c.b16 %v598, %v598
    %603 = vmatprep.subr.bf16.mxu0 0
    %604 = vmatpush1.bf16.msra.mxu0 %v390
    %605 = vmatprep.subr.bf16.mxu0 0
    %606 = vmatpush1.bf16.msra.mxu0 %v391
    %607 = vmatprep.subr.bf16.mxu0 0
    %608 = vmatpush1.bf16.msra.mxu0 %v392
    %609 = vmatprep.subr.bf16.mxu0 0
    %610 = vmatpush1.bf16.msra.mxu0 %v393
    %611 = vmatprep.subr.bf16.mxu0 0
    %612 = vmatpush1.bf16.msra.mxu0 %v394
    %613 = vmatprep.subr.bf16.mxu0 0
    %614 = vmatpush1.bf16.msra.mxu0 %v395
    %615 = vmatprep.subr.bf16.mxu0 0
    %616 = vmatpush1.bf16.msra.mxu0 %v396
    %617 = vmatprep.subr.bf16.mxu0 0
    %618 = vmatpush1.bf16.msra.mxu0 %v397
    %619 = vmatprep.subr.bf16.mxu0 0
    %620 = vmatpush1.bf16.msra.mxu0 0
    %621 = vmatprep.subr.bf16.mxu0 0
    %622 = vmatpush1.bf16.msra.mxu0 0
    %623 = vmatprep.subr.bf16.mxu0 0
    %624 = vmatpush1.bf16.msra.mxu0 0
    %625 = vmatprep.subr.bf16.mxu0 0
    %626 = vmatpush1.bf16.msra.mxu0 0
    %627 = vmatprep.subr.bf16.mxu0 0
    %628 = vmatpush1.bf16.msra.mxu0 0
    %629 = vmatprep.subr.bf16.mxu0 0
    %630 = vmatpush1.bf16.msra.mxu0 0
    %631 = vmatprep.subr.bf16.mxu0 0
    %632 = vmatpush1.bf16.msra.mxu0 0
    %633 = vmatprep.subr.bf16.mxu0 0
    %634 = vmatpush1.bf16.msra.mxu0 0
    %635 = vmatprep.mubr.bf16.mxu0 0
    %636 = vmatmul.mubr.bf16.gmra.mrb[0].mxu0 %v599
    %v637 = vpop.f32.mrb[0].mxu0
    %v638 = vadd.f32 0.0, %v637
    %v639 = vpop.f32.mrb[0].mxu0
    %v640 = vpop.f32.mrb[0].mxu0
    %v641 = vadd.f32 0.0, %v640
    %v642 = vpop.f32.mrb[0].mxu0
    %643 = vmatprep.mubr.bf16.mxu0 0
    %644 = vmatmul.mubr.bf16.gmra.mrb[0].mxu0 %v600
    %v645 = vpop.f32.mrb[0].mxu0
    %v646 = vadd.f32 0.0, %v645
    %v647 = vpop.f32.mrb[0].mxu0
    %v648 = vpop.f32.mrb[0].mxu0
    %v649 = vpop.f32.mrb[0].mxu0
    %650 = vdwg.mxu0
    %v651 = vpack.c.bf16 %v641, %v638
    %v652 = vpack.c.bf16 %v646, %v646
    %s653 = scalar_lea.vmem %s3, 48
    %v654 = vld [vmem:[%s653] sm:$0xf]
    %v655 = vld [vmem:[%s653 + $0x4] sm:$0xf]
    %v656 = vld [vmem:[%s653 + $0x8] sm:$0xf]
    %v660 = vunpack.c.l.b16 %v654
    %v661 = vunpack.c.l.b16 %v655
    %v662 = vunpack.c.l.b16 %v656
    %v663 = vpack.c.b16 %v661, %v660
    %v664 = vpack.c.b16 %v662, %v662
    %667 = vmatprep.subr.bf16.mxu0 0
    %668 = vmatpush1.bf16.msra.mxu0 %v390
    %669 = vmatprep.subr.bf16.mxu0 0
    %670 = vmatpush1.bf16.msra.mxu0 %v391
    %671 = vmatprep.subr.bf16.mxu0 0
    %672 = vmatpush1.bf16.msra.mxu0 %v392
    %673 = vmatprep.subr.bf16.mxu0 0
    %674 = vmatpush1.bf16.msra.mxu0 %v393
    %675 = vmatprep.subr.bf16.mxu0 0
    %676 = vmatpush1.bf16.msra.mxu0 %v394
    %677 = vmatprep.subr.bf16.mxu0 0
    %678 = vmatpush1.bf16.msra.mxu0 %v395
    %679 = vmatprep.subr.bf16.mxu0 0
    %680 = vmatpush1.bf16.msra.mxu0 %v396
    %681 = vmatprep.subr.bf16.mxu0 0
    %682 = vmatpush1.bf16.msra.mxu0 %v397
    %683 = vmatprep.subr.bf16.mxu0 0
    %684 = vmatpush1.bf16.msra.mxu0 0
    %685 = vmatprep.subr.bf16.mxu0 0
    %686 = vmatpush1.bf16.msra.mxu0 0
    %687 = vmatprep.subr.bf16.mxu0 0
    %688 = vmatpush1.bf16.msra.mxu0 0
    %689 = vmatprep.subr.bf16.mxu0 0
    %690 = vmatpush1.bf16.msra.mxu0 0
    %691 = vmatprep.subr.bf16.mxu0 0
    %692 = vmatpush1.bf16.msra.mxu0 0
    %693 = vmatprep.subr.bf16.mxu0 0
    %694 = vmatpush1.bf16.msra.mxu0 0
    %695 = vmatprep.subr.bf16.mxu0 0
    %696 = vmatpush1.bf16.msra.mxu0 0
    %697 = vmatprep.subr.bf16.mxu0 0
    %698 = vmatpush1.bf16.msra.mxu0 0
    %699 = vmatprep.mubr.bf16.mxu0 0
    %700 = vmatmul.mubr.bf16.gmra.mrb[0].mxu0 %v663
    %v701 = vpop.f32.mrb[0].mxu0
    %v702 = vadd.f32 0.0, %v701
    %v703 = vpop.f32.mrb[0].mxu0
    %v704 = vpop.f32.mrb[0].mxu0
    %v705 = vadd.f32 0.0, %v704
    %v706 = vpop.f32.mrb[0].mxu0
    %707 = vmatprep.mubr.bf16.mxu0 0
    %708 = vmatmul.mubr.bf16.gmra.mrb[0].mxu0 %v664
    %v709 = vpop.f32.mrb[0].mxu0
    %v710 = vadd.f32 0.0, %v709
    %v711 = vpop.f32.mrb[0].mxu0
    %v712 = vpop.f32.mrb[0].mxu0
    %v713 = vpop.f32.mrb[0].mxu0
    %714 = vdwg.mxu0
    %v715 = vpack.c.bf16 %v705, %v702
    %v716 = vpack.c.bf16 %v710, %v710
    %s717 = scalar_lea.vmem %s3, 60
    %v718 = vld [vmem:[%s717] sm:$0xf]
    %v719 = vld [vmem:[%s717 + $0x4] sm:$0xf]
    %v720 = vld [vmem:[%s717 + $0x8] sm:$0xf]
    %v724 = vunpack.c.l.b16 %v718
    %v725 = vunpack.c.l.b16 %v719
    %v726 = vunpack.c.l.b16 %v720
    %v727 = vpack.c.b16 %v725, %v724
    %v728 = vpack.c.b16 %v726, %v726
    %731 = vmatprep.subr.bf16.mxu0 0
    %732 = vmatpush1.bf16.msra.mxu0 %v390
    %733 = vmatprep.subr.bf16.mxu0 0
    %734 = vmatpush1.bf16.msra.mxu0 %v391
    %735 = vmatprep.subr.bf16.mxu0 0
    %736 = vmatpush1.bf16.msra.mxu0 %v392
    %737 = vmatprep.subr.bf16.mxu0 0
    %738 = vmatpush1.bf16.msra.mxu0 %v393
    %739 = vmatprep.subr.bf16.mxu0 0
    %740 = vmatpush1.bf16.msra.mxu0 %v394
    %741 = vmatprep.subr.bf16.mxu0 0
    %742 = vmatpush1.bf16.msra.mxu0 %v395
    %743 = vmatprep.subr.bf16.mxu0 0
    %744 = vmatpush1.bf16.msra.mxu0 %v396
    %745 = vmatprep.subr.bf16.mxu0 0
    %746 = vmatpush1.bf16.msra.mxu0 %v397
    %747 = vmatprep.subr.bf16.mxu0 0
    %748 = vmatpush1.bf16.msra.mxu0 0
    %749 = vmatprep.subr.bf16.mxu0 0
    %750 = vmatpush1.bf16.msra.mxu0 0
    %751 = vmatprep.subr.bf16.mxu0 0
    %752 = vmatpush1.bf16.msra.mxu0 0
    %753 = vmatprep.subr.bf16.mxu0 0
    %754 = vmatpush1.bf16.msra.mxu0 0
    %755 = vmatprep.subr.bf16.mxu0 0
    %756 = vmatpush1.bf16.msra.mxu0 0
    %757 = vmatprep.subr.bf16.mxu0 0
    %758 = vmatpush1.bf16.msra.mxu0 0
    %759 = vmatprep.subr.bf16.mxu0 0
    %760 = vmatpush1.bf16.msra.mxu0 0
    %761 = vmatprep.subr.bf16.mxu0 0
    %762 = vmatpush1.bf16.msra.mxu0 0
    %763 = vmatprep.mubr.bf16.mxu0 0
    %764 = vmatmul.mubr.bf16.gmra.mrb[0].mxu0 %v727
    %v765 = vpop.f32.mrb[0].mxu0
    %v766 = vadd.f32 0.0, %v765
    %v767 = vpop.f32.mrb[0].mxu0
    %v768 = vpop.f32.mrb[0].mxu0
    %v769 = vadd.f32 0.0, %v768
    %v770 = vpop.f32.mrb[0].mxu0
    %771 = vmatprep.mubr.bf16.mxu0 0
    %772 = vmatmul.mubr.bf16.gmra.mrb[0].mxu0 %v728
    %v773 = vpop.f32.mrb[0].mxu0
    %v774 = vadd.f32 0.0, %v773
    %v775 = vpop.f32.mrb[0].mxu0
    %v776 = vpop.f32.mrb[0].mxu0
    %v777 = vpop.f32.mrb[0].mxu0
    %778 = vdwg.mxu0
    %v779 = vpack.c.bf16 %v769, %v766
    %v780 = vpack.c.bf16 %v774, %v774
    %s781 = scalar_lea.vmem %s3, 72
    %v782 = vld [vmem:[%s781] sm:$0xf]
    %v783 = vld [vmem:[%s781 + $0x4] sm:$0xf]
    %v784 = vld [vmem:[%s781 + $0x8] sm:$0xf]
    %v788 = vunpack.c.l.b16 %v782
    %v789 = vunpack.c.l.b16 %v783
    %v790 = vunpack.c.l.b16 %v784
    %v791 = vpack.c.b16 %v789, %v788
    %v792 = vpack.c.b16 %v790, %v790
    %795 = vmatprep.subr.bf16.mxu0 0
    %796 = vmatpush1.bf16.msra.mxu0 %v390
    %797 = vmatprep.subr.bf16.mxu0 0
    %798 = vmatpush1.bf16.msra.mxu0 %v391
    %799 = vmatprep.subr.bf16.mxu0 0
    %800 = vmatpush1.bf16.msra.mxu0 %v392
    %801 = vmatprep.subr.bf16.mxu0 0
    %802 = vmatpush1.bf16.msra.mxu0 %v393
    %803 = vmatprep.subr.bf16.mxu0 0
    %804 = vmatpush1.bf16.msra.mxu0 %v394
    %805 = vmatprep.subr.bf16.mxu0 0
    %806 = vmatpush1.bf16.msra.mxu0 %v395
    %807 = vmatprep.subr.bf16.mxu0 0
    %808 = vmatpush1.bf16.msra.mxu0 %v396
    %809 = vmatprep.subr.bf16.mxu0 0
    %810 = vmatpush1.bf16.msra.mxu0 %v397
    %811 = vmatprep.subr.bf16.mxu0 0
    %812 = vmatpush1.bf16.msra.mxu0 0
    %813 = vmatprep.subr.bf16.mxu0 0
    %814 = vmatpush1.bf16.msra.mxu0 0
    %815 = vmatprep.subr.bf16.mxu0 0
    %816 = vmatpush1.bf16.msra.mxu0 0
    %817 = vmatprep.subr.bf16.mxu0 0
    %818 = vmatpush1.bf16.msra.mxu0 0
    %819 = vmatprep.subr.bf16.mxu0 0
    %820 = vmatpush1.bf16.msra.mxu0 0
    %821 = vmatprep.subr.bf16.mxu0 0
    %822 = vmatpush1.bf16.msra.mxu0 0
    %823 = vmatprep.subr.bf16.mxu0 0
    %824 = vmatpush1.bf16.msra.mxu0 0
    %825 = vmatprep.subr.bf16.mxu0 0
    %826 = vmatpush1.bf16.msra.mxu0 0
    %827 = vmatprep.mubr.bf16.mxu0 0
    %828 = vmatmul.mubr.bf16.gmra.mrb[0].mxu0 %v791
    %v829 = vpop.f32.mrb[0].mxu0
    %v830 = vadd.f32 0.0, %v829
    %v831 = vpop.f32.mrb[0].mxu0
    %v832 = vpop.f32.mrb[0].mxu0
    %v833 = vadd.f32 0.0, %v832
    %v834 = vpop.f32.mrb[0].mxu0
    %835 = vmatprep.mubr.bf16.mxu0 0
    %836 = vmatmul.mubr.bf16.gmra.mrb[0].mxu0 %v792
    %v837 = vpop.f32.mrb[0].mxu0
    %v838 = vadd.f32 0.0, %v837
    %v839 = vpop.f32.mrb[0].mxu0
    %v840 = vpop.f32.mrb[0].mxu0
    %v841 = vpop.f32.mrb[0].mxu0
    %842 = vdwg.mxu0
    %v843 = vpack.c.bf16 %v833, %v830
    %v844 = vpack.c.bf16 %v838, %v838
    %s845 = scalar_lea.vmem %s3, 84
    %v846 = vld [vmem:[%s845] sm:$0xf]
    %v847 = vld [vmem:[%s845 + $0x4] sm:$0xf]
    %v848 = vld [vmem:[%s845 + $0x8] sm:$0xf]
    %v852 = vunpack.c.l.b16 %v846
    %v853 = vunpack.c.l.b16 %v847
    %v854 = vunpack.c.l.b16 %v848
    %v855 = vpack.c.b16 %v853, %v852
    %v856 = vpack.c.b16 %v854, %v854
    %859 = vmatprep.subr.bf16.mxu0 0
    %860 = vmatpush1.bf16.msra.mxu0 %v390
    %861 = vmatprep.subr.bf16.mxu0 0
    %862 = vmatpush1.bf16.msra.mxu0 %v391
    %863 = vmatprep.subr.bf16.mxu0 0
    %864 = vmatpush1.bf16.msra.mxu0 %v392
    %865 = vmatprep.subr.bf16.mxu0 0
    %866 = vmatpush1.bf16.msra.mxu0 %v393
    %867 = vmatprep.subr.bf16.mxu0 0
    %868 = vmatpush1.bf16.msra.mxu0 %v394
    %869 = vmatprep.subr.bf16.mxu0 0
    %870 = vmatpush1.bf16.msra.mxu0 %v395
    %871 = vmatprep.subr.bf16.mxu0 0
    %872 = vmatpush1.bf16.msra.mxu0 %v396
    %873 = vmatprep.subr.bf16.mxu0 0
    %874 = vmatpush1.bf16.msra.mxu0 %v397
    %875 = vmatprep.subr.bf16.mxu0 0
    %876 = vmatpush1.bf16.msra.mxu0 0
    %877 = vmatprep.subr.bf16.mxu0 0
    %878 = vmatpush1.bf16.msra.mxu0 0
    %879 = vmatprep.subr.bf16.mxu0 0
    %880 = vmatpush1.bf16.msra.mxu0 0
    %881 = vmatprep.subr.bf16.mxu0 0
    %882 = vmatpush1.bf16.msra.mxu0 0
    %883 = vmatprep.subr.bf16.mxu0 0
    %884 = vmatpush1.bf16.msra.mxu0 0
    %885 = vmatprep.subr.bf16.mxu0 0
    %886 = vmatpush1.bf16.msra.mxu0 0
    %887 = vmatprep.subr.bf16.mxu0 0
    %888 = vmatpush1.bf16.msra.mxu0 0
    %889 = vmatprep.subr.bf16.mxu0 0
    %890 = vmatpush1.bf16.msra.mxu0 0
    %891 = vmatprep.mubr.bf16.mxu0 0
    %892 = vmatmul.mubr.bf16.gmra.mrb[0].mxu0 %v855
    %v893 = vpop.f32.mrb[0].mxu0
    %v894 = vadd.f32 0.0, %v893
    %v895 = vpop.f32.mrb[0].mxu0
    %v896 = vpop.f32.mrb[0].mxu0
    %v897 = vadd.f32 0.0, %v896
    %v898 = vpop.f32.mrb[0].mxu0
    %899 = vmatprep.mubr.bf16.mxu0 0
    %900 = vmatmul.mubr.bf16.gmra.mrb[0].mxu0 %v856
    %v901 = vpop.f32.mrb[0].mxu0
    %v902 = vadd.f32 0.0, %v901
    %v903 = vpop.f32.mrb[0].mxu0
    %v904 = vpop.f32.mrb[0].mxu0
    %v905 = vpop.f32.mrb[0].mxu0
    %906 = vdwg.mxu0
    %v907 = vpack.c.bf16 %v897, %v894
    %v908 = vpack.c.bf16 %v902, %v902
    %s909 = scalar_lea.vmem %s3, 96
    %v910 = vld [vmem:[%s909] sm:$0xf]
    %v911 = vld [vmem:[%s909 + $0x4] sm:$0xf]
    %v912 = vld [vmem:[%s909 + $0x8] sm:$0xf]
    %v916 = vunpack.c.l.b16 %v910
    %v917 = vunpack.c.l.b16 %v911
    %v918 = vunpack.c.l.b16 %v912
    %v919 = vpack.c.b16 %v917, %v916
    %v920 = vpack.c.b16 %v918, %v918
    %923 = vmatprep.subr.bf16.mxu0 0
    %924 = vmatpush1.bf16.msra.mxu0 %v390
    %925 = vmatprep.subr.bf16.mxu0 0
    %926 = vmatpush1.bf16.msra.mxu0 %v391
    %927 = vmatprep.subr.bf16.mxu0 0
    %928 = vmatpush1.bf16.msra.mxu0 %v392
    %929 = vmatprep.subr.bf16.mxu0 0
    %930 = vmatpush1.bf16.msra.mxu0 %v393
    %931 = vmatprep.subr.bf16.mxu0 0
    %932 = vmatpush1.bf16.msra.mxu0 %v394
    %933 = vmatprep.subr.bf16.mxu0 0
    %934 = vmatpush1.bf16.msra.mxu0 %v395
    %935 = vmatprep.subr.bf16.mxu0 0
    %936 = vmatpush1.bf16.msra.mxu0 %v396
    %937 = vmatprep.subr.bf16.mxu0 0
    %938 = vmatpush1.bf16.msra.mxu0 %v397
    %939 = vmatprep.subr.bf16.mxu0 0
    %940 = vmatpush1.bf16.msra.mxu0 0
    %941 = vmatprep.subr.bf16.mxu0 0
    %942 = vmatpush1.bf16.msra.mxu0 0
    %943 = vmatprep.subr.bf16.mxu0 0
    %944 = vmatpush1.bf16.msra.mxu0 0
    %945 = vmatprep.subr.bf16.mxu0 0
    %946 = vmatpush1.bf16.msra.mxu0 0
    %947 = vmatprep.subr.bf16.mxu0 0
    %948 = vmatpush1.bf16.msra.mxu0 0
    %949 = vmatprep.subr.bf16.mxu0 0
    %950 = vmatpush1.bf16.msra.mxu0 0
    %951 = vmatprep.subr.bf16.mxu0 0
    %952 = vmatpush1.bf16.msra.mxu0 0
    %953 = vmatprep.subr.bf16.mxu0 0
    %954 = vmatpush1.bf16.msra.mxu0 0
    %955 = vmatprep.mubr.bf16.mxu0 0
    %956 = vmatmul.mubr.bf16.gmra.mrb[0].mxu0 %v919
    %v957 = vpop.f32.mrb[0].mxu0
    %v958 = vadd.f32 0.0, %v957
    %v959 = vpop.f32.mrb[0].mxu0
    %v960 = vpop.f32.mrb[0].mxu0
    %v961 = vadd.f32 0.0, %v960
    %v962 = vpop.f32.mrb[0].mxu0
    %963 = vmatprep.mubr.bf16.mxu0 0
    %964 = vmatmul.mubr.bf16.gmra.mrb[0].mxu0 %v920
    %v965 = vpop.f32.mrb[0].mxu0
    %v966 = vadd.f32 0.0, %v965
    %v967 = vpop.f32.mrb[0].mxu0
    %v968 = vpop.f32.mrb[0].mxu0
    %v969 = vpop.f32.mrb[0].mxu0
    %970 = vdwg.mxu0
    %v971 = vpack.c.bf16 %v961, %v958
    %v972 = vpack.c.bf16 %v966, %v966
    %s973 = scalar_lea.vmem %s3, 108
    %v974 = vld [vmem:[%s973] sm:$0xf]
    %v975 = vld [vmem:[%s973 + $0x4] sm:$0xf]
    %v976 = vld [vmem:[%s973 + $0x8] sm:$0xf]
    %v980 = vunpack.c.l.b16 %v974
    %v981 = vunpack.c.l.b16 %v975
    %v982 = vunpack.c.l.b16 %v976
    %v983 = vpack.c.b16 %v981, %v980
    %v984 = vpack.c.b16 %v982, %v982
    %987 = vmatprep.subr.bf16.mxu0 0
    %988 = vmatpush1.bf16.msra.mxu0 %v390
    %989 = vmatprep.subr.bf16.mxu0 0
    %990 = vmatpush1.bf16.msra.mxu0 %v391
    %991 = vmatprep.subr.bf16.mxu0 0
    %992 = vmatpush1.bf16.msra.mxu0 %v392
    %993 = vmatprep.subr.bf16.mxu0 0
    %994 = vmatpush1.bf16.msra.mxu0 %v393
    %995 = vmatprep.subr.bf16.mxu0 0
    %996 = vmatpush1.bf16.msra.mxu0 %v394
    %997 = vmatprep.subr.bf16.mxu0 0
    %998 = vmatpush1.bf16.msra.mxu0 %v395
    %999 = vmatprep.subr.bf16.mxu0 0
    %1000 = vmatpush1.bf16.msra.mxu0 %v396
    %1001 = vmatprep.subr.bf16.mxu0 0
    %1002 = vmatpush1.bf16.msra.mxu0 %v397
    %1003 = vmatprep.subr.bf16.mxu0 0
    %1004 = vmatpush1.bf16.msra.mxu0 0
    %1005 = vmatprep.subr.bf16.mxu0 0
    %1006 = vmatpush1.bf16.msra.mxu0 0
    %1007 = vmatprep.subr.bf16.mxu0 0
    %1008 = vmatpush1.bf16.msra.mxu0 0
    %1009 = vmatprep.subr.bf16.mxu0 0
    %1010 = vmatpush1.bf16.msra.mxu0 0
    %1011 = vmatprep.subr.bf16.mxu0 0
    %1012 = vmatpush1.bf16.msra.mxu0 0
    %1013 = vmatprep.subr.bf16.mxu0 0
    %1014 = vmatpush1.bf16.msra.mxu0 0
    %1015 = vmatprep.subr.bf16.mxu0 0
    %1016 = vmatpush1.bf16.msra.mxu0 0
    %1017 = vmatprep.subr.bf16.mxu0 0
    %1018 = vmatpush1.bf16.msra.mxu0 0
    %1019 = vmatprep.mubr.bf16.mxu0 0
    %1020 = vmatmul.mubr.bf16.gmra.mrb[0].mxu0 %v983
    %v1021 = vpop.f32.mrb[0].mxu0
    %v1022 = vadd.f32 0.0, %v1021
    %v1023 = vpop.f32.mrb[0].mxu0
    %v1024 = vpop.f32.mrb[0].mxu0
    %v1025 = vadd.f32 0.0, %v1024
    %v1026 = vpop.f32.mrb[0].mxu0
    %1027 = vmatprep.mubr.bf16.mxu0 0
    %1028 = vmatmul.mubr.bf16.gmra.mrb[0].mxu0 %v984
    %v1029 = vpop.f32.mrb[0].mxu0
    %v1030 = vadd.f32 0.0, %v1029
    %v1031 = vpop.f32.mrb[0].mxu0
    %v1032 = vpop.f32.mrb[0].mxu0
    %v1033 = vpop.f32.mrb[0].mxu0
    %1034 = vdwg.mxu0
    %v1035 = vpack.c.bf16 %v1025, %v1022
    %v1036 = vpack.c.bf16 %v1030, %v1030
    %s1037 = scalar_lea.vmem %s3, 120
    %v1038 = vld [vmem:[%s1037] sm:$0xf]
    %v1039 = vld [vmem:[%s1037 + $0x4] sm:$0xf]
    %v1040 = vld [vmem:[%s1037 + $0x8] sm:$0xf]
    %v1044 = vunpack.c.l.b16 %v1038
    %v1045 = vunpack.c.l.b16 %v1039
    %v1046 = vunpack.c.l.b16 %v1040
    %v1047 = vpack.c.b16 %v1045, %v1044
    %v1048 = vpack.c.b16 %v1046, %v1046
    %1051 = vmatprep.subr.bf16.mxu0 0
    %1052 = vmatpush1.bf16.msra.mxu0 %v390
    %1053 = vmatprep.subr.bf16.mxu0 0
    %1054 = vmatpush1.bf16.msra.mxu0 %v391
    %1055 = vmatprep.subr.bf16.mxu0 0
    %1056 = vmatpush1.bf16.msra.mxu0 %v392
    %1057 = vmatprep.subr.bf16.mxu0 0
    %1058 = vmatpush1.bf16.msra.mxu0 %v393
    %1059 = vmatprep.subr.bf16.mxu0 0
    %1060 = vmatpush1.bf16.msra.mxu0 %v394
    %1061 = vmatprep.subr.bf16.mxu0 0
    %1062 = vmatpush1.bf16.msra.mxu0 %v395
    %1063 = vmatprep.subr.bf16.mxu0 0
    %1064 = vmatpush1.bf16.msra.mxu0 %v396
    %1065 = vmatprep.subr.bf16.mxu0 0
    %1066 = vmatpush1.bf16.msra.mxu0 %v397
    %1067 = vmatprep.subr.bf16.mxu0 0
    %1068 = vmatpush1.bf16.msra.mxu0 0
    %1069 = vmatprep.subr.bf16.mxu0 0
    %1070 = vmatpush1.bf16.msra.mxu0 0
    %1071 = vmatprep.subr.bf16.mxu0 0
    %1072 = vmatpush1.bf16.msra.mxu0 0
    %1073 = vmatprep.subr.bf16.mxu0 0
    %1074 = vmatpush1.bf16.msra.mxu0 0
    %1075 = vmatprep.subr.bf16.mxu0 0
    %1076 = vmatpush1.bf16.msra.mxu0 0
    %1077 = vmatprep.subr.bf16.mxu0 0
    %1078 = vmatpush1.bf16.msra.mxu0 0
    %1079 = vmatprep.subr.bf16.mxu0 0
    %1080 = vmatpush1.bf16.msra.mxu0 0
    %1081 = vmatprep.subr.bf16.mxu0 0
    %1082 = vmatpush1.bf16.msra.mxu0 0
    %1083 = vmatprep.mubr.bf16.mxu0 0
    %1084 = vmatmul.mubr.bf16.gmra.mrb[0].mxu0 %v1047
    %v1085 = vpop.f32.mrb[0].mxu0
    %v1086 = vadd.f32 0.0, %v1085
    %v1087 = vpop.f32.mrb[0].mxu0
    %v1088 = vpop.f32.mrb[0].mxu0
    %v1089 = vadd.f32 0.0, %v1088
    %v1090 = vpop.f32.mrb[0].mxu0
    %1091 = vmatprep.mubr.bf16.mxu0 0
    %1092 = vmatmul.mubr.bf16.gmra.mrb[0].mxu0 %v1048
    %v1093 = vpop.f32.mrb[0].mxu0
    %v1094 = vadd.f32 0.0, %v1093
    %v1095 = vpop.f32.mrb[0].mxu0
    %v1096 = vpop.f32.mrb[0].mxu0
    %v1097 = vpop.f32.mrb[0].mxu0
    %1098 = vdwg.mxu0
    %v1099 = vpack.c.bf16 %v1089, %v1086
    %v1100 = vpack.c.bf16 %v1094, %v1094
    %s1101 = scalar_lea.vmem %s3, 132
    %v1102 = vld [vmem:[%s1101] sm:$0xf]
    %v1103 = vld [vmem:[%s1101 + $0x4] sm:$0xf]
    %v1104 = vld [vmem:[%s1101 + $0x8] sm:$0xf]
    %v1108 = vunpack.c.l.b16 %v1102
    %v1109 = vunpack.c.l.b16 %v1103
    %v1110 = vunpack.c.l.b16 %v1104
    %v1111 = vpack.c.b16 %v1109, %v1108
    %v1112 = vpack.c.b16 %v1110, %v1110
    %1115 = vmatprep.subr.bf16.mxu0 0
    %1116 = vmatpush1.bf16.msra.mxu0 %v390
    %1117 = vmatprep.subr.bf16.mxu0 0
    %1118 = vmatpush1.bf16.msra.mxu0 %v391
    %1119 = vmatprep.subr.bf16.mxu0 0
    %1120 = vmatpush1.bf16.msra.mxu0 %v392
    %1121 = vmatprep.subr.bf16.mxu0 0
    %1122 = vmatpush1.bf16.msra.mxu0 %v393
    %1123 = vmatprep.subr.bf16.mxu0 0
    %1124 = vmatpush1.bf16.msra.mxu0 %v394
    %1125 = vmatprep.subr.bf16.mxu0 0
    %1126 = vmatpush1.bf16.msra.mxu0 %v395
    %1127 = vmatprep.subr.bf16.mxu0 0
    %1128 = vmatpush1.bf16.msra.mxu0 %v396
    %1129 = vmatprep.subr.bf16.mxu0 0
    %1130 = vmatpush1.bf16.msra.mxu0 %v397
    %1131 = vmatprep.subr.bf16.mxu0 0
    %1132 = vmatpush1.bf16.msra.mxu0 0
    %1133 = vmatprep.subr.bf16.mxu0 0
    %1134 = vmatpush1.bf16.msra.mxu0 0
    %1135 = vmatprep.subr.bf16.mxu0 0
    %1136 = vmatpush1.bf16.msra.mxu0 0
    %1137 = vmatprep.subr.bf16.mxu0 0
    %1138 = vmatpush1.bf16.msra.mxu0 0
    %1139 = vmatprep.subr.bf16.mxu0 0
    %1140 = vmatpush1.bf16.msra.mxu0 0
    %1141 = vmatprep.subr.bf16.mxu0 0
    %1142 = vmatpush1.bf16.msra.mxu0 0
    %1143 = vmatprep.subr.bf16.mxu0 0
    %1144 = vmatpush1.bf16.msra.mxu0 0
    %1145 = vmatprep.subr.bf16.mxu0 0
    %1146 = vmatpush1.bf16.msra.mxu0 0
    %1147 = vmatprep.mubr.bf16.mxu0 0
    %1148 = vmatmul.mubr.bf16.gmra.mrb[0].mxu0 %v1111
    %v1149 = vpop.f32.mrb[0].mxu0
    %v1150 = vadd.f32 0.0, %v1149
    %v1151 = vpop.f32.mrb[0].mxu0
    %v1152 = vpop.f32.mrb[0].mxu0
    %v1153 = vadd.f32 0.0, %v1152
    %v1154 = vpop.f32.mrb[0].mxu0
    %1155 = vmatprep.mubr.bf16.mxu0 0
    %1156 = vmatmul.mubr.bf16.gmra.mrb[0].mxu0 %v1112
    %v1157 = vpop.f32.mrb[0].mxu0
    %v1158 = vadd.f32 0.0, %v1157
    %v1159 = vpop.f32.mrb[0].mxu0
    %v1160 = vpop.f32.mrb[0].mxu0
    %v1161 = vpop.f32.mrb[0].mxu0
    %1162 = vdwg.mxu0
    %v1163 = vpack.c.bf16 %v1153, %v1150
    %v1164 = vpack.c.bf16 %v1158, %v1158
    %s1165 = scalar_lea.vmem %s3, 144
    %v1166 = vld [vmem:[%s1165] sm:$0xf]
    %v1167 = vld [vmem:[%s1165 + $0x4] sm:$0xf]
    %v1168 = vld [vmem:[%s1165 + $0x8] sm:$0xf]
    %v1172 = vunpack.c.l.b16 %v1166
    %v1173 = vunpack.c.l.b16 %v1167
    %v1174 = vunpack.c.l.b16 %v1168
    %v1175 = vpack.c.b16 %v1173, %v1172
    %v1176 = vpack.c.b16 %v1174, %v1174
    %1179 = vmatprep.subr.bf16.mxu0 0
    %1180 = vmatpush1.bf16.msra.mxu0 %v390
    %1181 = vmatprep.subr.bf16.mxu0 0
    %1182 = vmatpush1.bf16.msra.mxu0 %v391
    %1183 = vmatprep.subr.bf16.mxu0 0
    %1184 = vmatpush1.bf16.msra.mxu0 %v392
    %1185 = vmatprep.subr.bf16.mxu0 0
    %1186 = vmatpush1.bf16.msra.mxu0 %v393
    %1187 = vmatprep.subr.bf16.mxu0 0
    %1188 = vmatpush1.bf16.msra.mxu0 %v394
    %1189 = vmatprep.subr.bf16.mxu0 0
    %1190 = vmatpush1.bf16.msra.mxu0 %v395
    %1191 = vmatprep.subr.bf16.mxu0 0
    %1192 = vmatpush1.bf16.msra.mxu0 %v396
    %1193 = vmatprep.subr.bf16.mxu0 0
    %1194 = vmatpush1.bf16.msra.mxu0 %v397
    %1195 = vmatprep.subr.bf16.mxu0 0
    %1196 = vmatpush1.bf16.msra.mxu0 0
    %1197 = vmatprep.subr.bf16.mxu0 0
    %1198 = vmatpush1.bf16.msra.mxu0 0
    %1199 = vmatprep.subr.bf16.mxu0 0
    %1200 = vmatpush1.bf16.msra.mxu0 0
    %1201 = vmatprep.subr.bf16.mxu0 0
    %1202 = vmatpush1.bf16.msra.mxu0 0
    %1203 = vmatprep.subr.bf16.mxu0 0
    %1204 = vmatpush1.bf16.msra.mxu0 0
    %1205 = vmatprep.subr.bf16.mxu0 0
    %1206 = vmatpush1.bf16.msra.mxu0 0
    %1207 = vmatprep.subr.bf16.mxu0 0
    %1208 = vmatpush1.bf16.msra.mxu0 0
    %1209 = vmatprep.subr.bf16.mxu0 0
    %1210 = vmatpush1.bf16.msra.mxu0 0
    %1211 = vmatprep.mubr.bf16.mxu0 0
    %1212 = vmatmul.mubr.bf16.gmra.mrb[0].mxu0 %v1175
    %v1213 = vpop.f32.mrb[0].mxu0
    %v1214 = vadd.f32 0.0, %v1213
    %v1215 = vpop.f32.mrb[0].mxu0
    %v1216 = vpop.f32.mrb[0].mxu0
    %v1217 = vadd.f32 0.0, %v1216
    %v1218 = vpop.f32.mrb[0].mxu0
    %1219 = vmatprep.mubr.bf16.mxu0 0
    %1220 = vmatmul.mubr.bf16.gmra.mrb[0].mxu0 %v1176
    %v1221 = vpop.f32.mrb[0].mxu0
    %v1222 = vadd.f32 0.0, %v1221
    %v1223 = vpop.f32.mrb[0].mxu0
    %v1224 = vpop.f32.mrb[0].mxu0
    %v1225 = vpop.f32.mrb[0].mxu0
    %1226 = vdwg.mxu0
    %v1227 = vpack.c.bf16 %v1217, %v1214
    %v1228 = vpack.c.bf16 %v1222, %v1222
    %s1229 = scalar_lea.vmem %s3, 156
    %v1230 = vld [vmem:[%s1229] sm:$0xf]
    %v1231 = vld [vmem:[%s1229 + $0x4] sm:$0xf]
    %v1232 = vld [vmem:[%s1229 + $0x8] sm:$0xf]
    %v1236 = vunpack.c.l.b16 %v1230
    %v1237 = vunpack.c.l.b16 %v1231
    %v1238 = vunpack.c.l.b16 %v1232
    %v1239 = vpack.c.b16 %v1237, %v1236
    %v1240 = vpack.c.b16 %v1238, %v1238
    %1243 = vmatprep.subr.bf16.mxu0 0
    %1244 = vmatpush1.bf16.msra.mxu0 %v390
    %1245 = vmatprep.subr.bf16.mxu0 0
    %1246 = vmatpush1.bf16.msra.mxu0 %v391
    %1247 = vmatprep.subr.bf16.mxu0 0
    %1248 = vmatpush1.bf16.msra.mxu0 %v392
    %1249 = vmatprep.subr.bf16.mxu0 0
    %1250 = vmatpush1.bf16.msra.mxu0 %v393
    %1251 = vmatprep.subr.bf16.mxu0 0
    %1252 = vmatpush1.bf16.msra.mxu0 %v394
    %1253 = vmatprep.subr.bf16.mxu0 0
    %1254 = vmatpush1.bf16.msra.mxu0 %v395
    %1255 = vmatprep.subr.bf16.mxu0 0
    %1256 = vmatpush1.bf16.msra.mxu0 %v396
    %1257 = vmatprep.subr.bf16.mxu0 0
    %1258 = vmatpush1.bf16.msra.mxu0 %v397
    %1259 = vmatprep.subr.bf16.mxu0 0
    %1260 = vmatpush1.bf16.msra.mxu0 0
    %1261 = vmatprep.subr.bf16.mxu0 0
    %1262 = vmatpush1.bf16.msra.mxu0 0
    %1263 = vmatprep.subr.bf16.mxu0 0
    %1264 = vmatpush1.bf16.msra.mxu0 0
    %1265 = vmatprep.subr.bf16.mxu0 0
    %1266 = vmatpush1.bf16.msra.mxu0 0
    %1267 = vmatprep.subr.bf16.mxu0 0
    %1268 = vmatpush1.bf16.msra.mxu0 0
    %1269 = vmatprep.subr.bf16.mxu0 0
    %1270 = vmatpush1.bf16.msra.mxu0 0
    %1271 = vmatprep.subr.bf16.mxu0 0
    %1272 = vmatpush1.bf16.msra.mxu0 0
    %1273 = vmatprep.subr.bf16.mxu0 0
    %1274 = vmatpush1.bf16.msra.mxu0 0
    %1275 = vmatprep.mubr.bf16.mxu0 0
    %1276 = vmatmul.mubr.bf16.gmra.mrb[0].mxu0 %v1239
    %v1277 = vpop.f32.mrb[0].mxu0
    %v1278 = vadd.f32 0.0, %v1277
    %v1279 = vpop.f32.mrb[0].mxu0
    %v1280 = vpop.f32.mrb[0].mxu0
    %v1281 = vadd.f32 0.0, %v1280
    %v1282 = vpop.f32.mrb[0].mxu0
    %1283 = vmatprep.mubr.bf16.mxu0 0
    %1284 = vmatmul.mubr.bf16.gmra.mrb[0].mxu0 %v1240
    %v1285 = vpop.f32.mrb[0].mxu0
    %v1286 = vadd.f32 0.0, %v1285
    %v1287 = vpop.f32.mrb[0].mxu0
    %v1288 = vpop.f32.mrb[0].mxu0
    %v1289 = vpop.f32.mrb[0].mxu0
    %1290 = vdwg.mxu0
    %v1291 = vpack.c.bf16 %v1281, %v1278
    %v1292 = vpack.c.bf16 %v1286, %v1286
    %s1293 = scalar_lea.vmem %s3, 168
    %v1294 = vld [vmem:[%s1293] sm:$0xf]
    %v1295 = vld [vmem:[%s1293 + $0x4] sm:$0xf]
    %v1296 = vld [vmem:[%s1293 + $0x8] sm:$0xf]
    %v1300 = vunpack.c.l.b16 %v1294
    %v1301 = vunpack.c.l.b16 %v1295
    %v1302 = vunpack.c.l.b16 %v1296
    %v1303 = vpack.c.b16 %v1301, %v1300
    %v1304 = vpack.c.b16 %v1302, %v1302
    %1307 = vmatprep.subr.bf16.mxu0 0
    %1308 = vmatpush1.bf16.msra.mxu0 %v390
    %1309 = vmatprep.subr.bf16.mxu0 0
    %1310 = vmatpush1.bf16.msra.mxu0 %v391
    %1311 = vmatprep.subr.bf16.mxu0 0
    %1312 = vmatpush1.bf16.msra.mxu0 %v392
    %1313 = vmatprep.subr.bf16.mxu0 0
    %1314 = vmatpush1.bf16.msra.mxu0 %v393
    %1315 = vmatprep.subr.bf16.mxu0 0
    %1316 = vmatpush1.bf16.msra.mxu0 %v394
    %1317 = vmatprep.subr.bf16.mxu0 0
    %1318 = vmatpush1.bf16.msra.mxu0 %v395
    %1319 = vmatprep.subr.bf16.mxu0 0
    %1320 = vmatpush1.bf16.msra.mxu0 %v396
    %1321 = vmatprep.subr.bf16.mxu0 0
    %1322 = vmatpush1.bf16.msra.mxu0 %v397
    %1323 = vmatprep.subr.bf16.mxu0 0
    %1324 = vmatpush1.bf16.msra.mxu0 0
    %1325 = vmatprep.subr.bf16.mxu0 0
    %1326 = vmatpush1.bf16.msra.mxu0 0
    %1327 = vmatprep.subr.bf16.mxu0 0
    %1328 = vmatpush1.bf16.msra.mxu0 0
    %1329 = vmatprep.subr.bf16.mxu0 0
    %1330 = vmatpush1.bf16.msra.mxu0 0
    %1331 = vmatprep.subr.bf16.mxu0 0
    %1332 = vmatpush1.bf16.msra.mxu0 0
    %1333 = vmatprep.subr.bf16.mxu0 0
    %1334 = vmatpush1.bf16.msra.mxu0 0
    %1335 = vmatprep.subr.bf16.mxu0 0
    %1336 = vmatpush1.bf16.msra.mxu0 0
    %1337 = vmatprep.subr.bf16.mxu0 0
    %1338 = vmatpush1.bf16.msra.mxu0 0
    %1339 = vmatprep.mubr.bf16.mxu0 0
    %1340 = vmatmul.mubr.bf16.gmra.mrb[0].mxu0 %v1303
    %v1341 = vpop.f32.mrb[0].mxu0
    %v1342 = vadd.f32 0.0, %v1341
    %v1343 = vpop.f32.mrb[0].mxu0
    %v1344 = vpop.f32.mrb[0].mxu0
    %v1345 = vadd.f32 0.0, %v1344
    %v1346 = vpop.f32.mrb[0].mxu0
    %1347 = vmatprep.mubr.bf16.mxu0 0
    %1348 = vmatmul.mubr.bf16.gmra.mrb[0].mxu0 %v1304
    %v1349 = vpop.f32.mrb[0].mxu0
    %v1350 = vadd.f32 0.0, %v1349
    %v1351 = vpop.f32.mrb[0].mxu0
    %v1352 = vpop.f32.mrb[0].mxu0
    %v1353 = vpop.f32.mrb[0].mxu0
    %1354 = vdwg.mxu0
    %v1355 = vpack.c.bf16 %v1345, %v1342
    %v1356 = vpack.c.bf16 %v1350, %v1350
    %s1357 = scalar_lea.vmem %s3, 180
    %v1358 = vld [vmem:[%s1357] sm:$0xf]
    %v1359 = vld [vmem:[%s1357 + $0x4] sm:$0xf]
    %v1360 = vld [vmem:[%s1357 + $0x8] sm:$0xf]
    %v1364 = vunpack.c.l.b16 %v1358
    %v1365 = vunpack.c.l.b16 %v1359
    %v1366 = vunpack.c.l.b16 %v1360
    %v1367 = vpack.c.b16 %v1365, %v1364
    %v1368 = vpack.c.b16 %v1366, %v1366
    %1371 = vmatprep.subr.bf16.mxu0 0
    %1372 = vmatpush1.bf16.msra.mxu0 %v390
    %1373 = vmatprep.subr.bf16.mxu0 0
    %1374 = vmatpush1.bf16.msra.mxu0 %v391
    %1375 = vmatprep.subr.bf16.mxu0 0
    %1376 = vmatpush1.bf16.msra.mxu0 %v392
    %1377 = vmatprep.subr.bf16.mxu0 0
    %1378 = vmatpush1.bf16.msra.mxu0 %v393
    %1379 = vmatprep.subr.bf16.mxu0 0
    %1380 = vmatpush1.bf16.msra.mxu0 %v394
    %1381 = vmatprep.subr.bf16.mxu0 0
    %1382 = vmatpush1.bf16.msra.mxu0 %v395
    %1383 = vmatprep.subr.bf16.mxu0 0
    %1384 = vmatpush1.bf16.msra.mxu0 %v396
    %1385 = vmatprep.subr.bf16.mxu0 0
    %1386 = vmatpush1.bf16.msra.mxu0 %v397
    %1387 = vmatprep.subr.bf16.mxu0 0
    %1388 = vmatpush1.bf16.msra.mxu0 0
    %1389 = vmatprep.subr.bf16.mxu0 0
    %1390 = vmatpush1.bf16.msra.mxu0 0
    %1391 = vmatprep.subr.bf16.mxu0 0
    %1392 = vmatpush1.bf16.msra.mxu0 0
    %1393 = vmatprep.subr.bf16.mxu0 0
    %1394 = vmatpush1.bf16.msra.mxu0 0
    %1395 = vmatprep.subr.bf16.mxu0 0
    %1396 = vmatpush1.bf16.msra.mxu0 0
    %1397 = vmatprep.subr.bf16.mxu0 0
    %1398 = vmatpush1.bf16.msra.mxu0 0
    %1399 = vmatprep.subr.bf16.mxu0 0
    %1400 = vmatpush1.bf16.msra.mxu0 0
    %1401 = vmatprep.subr.bf16.mxu0 0
    %1402 = vmatpush1.bf16.msra.mxu0 0
    %1403 = vmatprep.mubr.bf16.mxu0 0
    %1404 = vmatmul.mubr.bf16.gmra.mrb[0].mxu0 %v1367
    %v1405 = vpop.f32.mrb[0].mxu0
    %v1406 = vadd.f32 0.0, %v1405
    %v1407 = vpop.f32.mrb[0].mxu0
    %v1408 = vpop.f32.mrb[0].mxu0
    %v1409 = vadd.f32 0.0, %v1408
    %v1410 = vpop.f32.mrb[0].mxu0
    %1411 = vmatprep.mubr.bf16.mxu0 0
    %1412 = vmatmul.mubr.bf16.gmra.mrb[0].mxu0 %v1368
    %v1413 = vpop.f32.mrb[0].mxu0
    %v1414 = vadd.f32 0.0, %v1413
    %v1415 = vpop.f32.mrb[0].mxu0
    %v1416 = vpop.f32.mrb[0].mxu0
    %v1417 = vpop.f32.mrb[0].mxu0
    %1418 = vdwg.mxu0
    %v1419 = vpack.c.bf16 %v1409, %v1406
    %v1420 = vpack.c.bf16 %v1414, %v1414
    %v1421 = vld [vmem:[%s4] sm:$0xf]
    %v1422 = vld [vmem:[%s4 + $0x4] sm:$0xf]
    %v1423 = vld [vmem:[%s4 + $0x8] sm:$0xf]
    %v1424 = vld [vmem:[%s4 + $0xc] sm:$0xf]
    %v1425 = vld [vmem:[%s4 + $0x10] sm:$0xf]
    %v1426 = vld [vmem:[%s4 + $0x14] sm:$0xf]
    %v1427 = vld [vmem:[%s4 + $0x18] sm:$0xf]
    %v1428 = vld [vmem:[%s4 + $0x1c] sm:$0xf]
    %v1429 = vld [vmem:[%s4 + $0x20] sm:$0xf]
    %v1430 = vld [vmem:[%s4 + $0x24] sm:$0xf]
    %v1431 = vld [vmem:[%s4 + $0x28] sm:$0xf]
    %v1432 = vld [vmem:[%s4 + $0x2c] sm:$0xf]
    %v1433 = vld [vmem:[%s4 + $0x30] sm:$0xf]
    %v1434 = vld [vmem:[%s4 + $0x34] sm:$0xf]
    %v1435 = vld [vmem:[%s4 + $0x38] sm:$0xf]
    %v1436 = vld [vmem:[%s4 + $0x3c] sm:$0xf]
    %v1437 = vld [vmem:[%s4 + $0x40] sm:$0xf]
    %v1438 = vld [vmem:[%s4 + $0x44] sm:$0xf]
    %v1439 = vld [vmem:[%s4 + $0x48] sm:$0xf]
    %v1440 = vld [vmem:[%s4 + $0x4c] sm:$0xf]
    %v1441 = vld [vmem:[%s4 + $0x50] sm:$0xf]
    %v1442 = vld [vmem:[%s4 + $0x54] sm:$0xf]
    %v1443 = vld [vmem:[%s4 + $0x58] sm:$0xf]
    %v1444 = vld [vmem:[%s4 + $0x5c] sm:$0xf]
    %v1445 = vld [vmem:[%s4 + $0x60] sm:$0xf]
    %v1446 = vld [vmem:[%s4 + $0x64] sm:$0xf]
    %v1447 = vld [vmem:[%s4 + $0x68] sm:$0xf]
    %v1448 = vld [vmem:[%s4 + $0x6c] sm:$0xf]
    %v1449 = vld [vmem:[%s4 + $0x70] sm:$0xf]
    %v1450 = vld [vmem:[%s4 + $0x74] sm:$0xf]
    %v1451 = vld [vmem:[%s4 + $0x78] sm:$0xf]
    %v1452 = vld [vmem:[%s4 + $0x7c] sm:$0xf]
    %v1453 = vld [vmem:[%s4 + $0x80] sm:$0xf]
    %v1454 = vld [vmem:[%s4 + $0x84] sm:$0xf]
    %v1455 = vld [vmem:[%s4 + $0x88] sm:$0xf]
    %v1456 = vld [vmem:[%s4 + $0x8c] sm:$0xf]
    %v1457 = vld [vmem:[%s4 + $0x90] sm:$0xf]
    %v1458 = vld [vmem:[%s4 + $0x94] sm:$0xf]
    %v1459 = vld [vmem:[%s4 + $0x98] sm:$0xf]
    %v1460 = vld [vmem:[%s4 + $0x9c] sm:$0xf]
    %v1461 = vld [vmem:[%s4 + $0xa0] sm:$0xf]
    %v1462 = vld [vmem:[%s4 + $0xa4] sm:$0xf]
    %v1463 = vld [vmem:[%s4 + $0xa8] sm:$0xf]
    %v1464 = vld [vmem:[%s4 + $0xac] sm:$0xf]
    %v1465 = vld [vmem:[%s4 + $0xb0] sm:$0xf]
    %v1466 = vld [vmem:[%s4 + $0xb4] sm:$0xf]
    %v1467 = vld [vmem:[%s4 + $0xb8] sm:$0xf]
    %v1468 = vld [vmem:[%s4 + $0xbc] sm:$0xf]
    %v1469 = vld [vmem:[%s4 + $0xc0] sm:$0xf]
    %v1470 = vld [vmem:[%s4 + $0xc4] sm:$0xf]
    %v1471 = vld [vmem:[%s4 + $0xc8] sm:$0xf]
    %v1472 = vld [vmem:[%s4 + $0xcc] sm:$0xf]
    %v1473 = vld [vmem:[%s4 + $0xd0] sm:$0xf]
    %v1474 = vld [vmem:[%s4 + $0xd4] sm:$0xf]
    %v1475 = vld [vmem:[%s4 + $0xd8] sm:$0xf]
    %v1476 = vld [vmem:[%s4 + $0xdc] sm:$0xf]
    %v1477 = vld [vmem:[%s4 + $0xe0] sm:$0xf]
    %v1478 = vld [vmem:[%s4 + $0xe4] sm:$0xf]
    %v1479 = vld [vmem:[%s4 + $0xe8] sm:$0xf]
    %v1480 = vld [vmem:[%s4 + $0xec] sm:$0xf]
    %v1481 = vld [vmem:[%s4 + $0xf0] sm:$0xf]
    %v1482 = vld [vmem:[%s4 + $0xf4] sm:$0xf]
    %v1483 = vld [vmem:[%s4 + $0xf8] sm:$0xf]
    %v1484 = vld [vmem:[%s4 + $0xfc] sm:$0xf]
    %v1485 = vld [vmem:[%s4 + $0x100] sm:$0xf]
    %v1486 = vld [vmem:[%s4 + $0x104] sm:$0xf]
    %v1487 = vld [vmem:[%s4 + $0x108] sm:$0xf]
    %v1488 = vld [vmem:[%s4 + $0x10c] sm:$0xf]
    %v1489 = vld [vmem:[%s4 + $0x110] sm:$0xf]
    %v1490 = vld [vmem:[%s4 + $0x114] sm:$0xf]
    %v1491 = vld [vmem:[%s4 + $0x118] sm:$0xf]
    %v1492 = vld [vmem:[%s4 + $0x11c] sm:$0xf]
    %v1493 = vld [vmem:[%s4 + $0x120] sm:$0xf]
    %v1494 = vld [vmem:[%s4 + $0x124] sm:$0xf]
    %v1495 = vld [vmem:[%s4 + $0x128] sm:$0xf]
    %v1496 = vld [vmem:[%s4 + $0x12c] sm:$0xf]
    %v1497 = vld [vmem:[%s4 + $0x130] sm:$0xf]
    %v1498 = vld [vmem:[%s4 + $0x134] sm:$0xf]
    %v1499 = vld [vmem:[%s4 + $0x138] sm:$0xf]
    %v1500 = vld [vmem:[%s4 + $0x13c] sm:$0xf]
    %v1501 = vld [vmem:[%s4 + $0x140] sm:$0xf]
    %v1502 = vld [vmem:[%s4 + $0x144] sm:$0xf]
    %v1503 = vld [vmem:[%s4 + $0x148] sm:$0xf]
    %v1504 = vld [vmem:[%s4 + $0x14c] sm:$0xf]
    %v1505 = vld [vmem:[%s4 + $0x150] sm:$0xf]
    %v1506 = vld [vmem:[%s4 + $0x154] sm:$0xf]
    %v1507 = vld [vmem:[%s4 + $0x158] sm:$0xf]
    %v1508 = vld [vmem:[%s4 + $0x15c] sm:$0xf]
    %v1509 = vld [vmem:[%s4 + $0x160] sm:$0xf]
    %v1510 = vld [vmem:[%s4 + $0x164] sm:$0xf]
    %v1511 = vld [vmem:[%s4 + $0x168] sm:$0xf]
    %v1512 = vld [vmem:[%s4 + $0x16c] sm:$0xf]
    %v1513 = vld [vmem:[%s4 + $0x170] sm:$0xf]
    %v1514 = vld [vmem:[%s4 + $0x174] sm:$0xf]
    %v1515 = vld [vmem:[%s4 + $0x178] sm:$0xf]
    %v1516 = vld [vmem:[%s4 + $0x17c] sm:$0xf]
    %v1517 = vld [vmem:[%s4 + $0x180] sm:$0xf]
    %v1518 = vld [vmem:[%s4 + $0x184] sm:$0xf]
    %v1519 = vld [vmem:[%s4 + $0x188] sm:$0xf]
    %v1520 = vld [vmem:[%s4 + $0x18c] sm:$0xf]
    %v1521 = vld [vmem:[%s4 + $0x190] sm:$0xf]
    %v1522 = vld [vmem:[%s4 + $0x194] sm:$0xf]
    %v1523 = vld [vmem:[%s4 + $0x198] sm:$0xf]
    %v1524 = vld [vmem:[%s4 + $0x19c] sm:$0xf]
    %v1525 = vld [vmem:[%s4 + $0x1a0] sm:$0xf]
    %v1526 = vld [vmem:[%s4 + $0x1a4] sm:$0xf]
    %v1527 = vld [vmem:[%s4 + $0x1a8] sm:$0xf]
    %v1528 = vld [vmem:[%s4 + $0x1ac] sm:$0xf]
    %v1529 = vld [vmem:[%s4 + $0x1b0] sm:$0xf]
    %v1530 = vld [vmem:[%s4 + $0x1b4] sm:$0xf]
    %v1531 = vld [vmem:[%s4 + $0x1b8] sm:$0xf]
    %v1532 = vld [vmem:[%s4 + $0x1bc] sm:$0xf]
    %v1533 = vld [vmem:[%s4 + $0x1c0] sm:$0xf]
    %v1534 = vld [vmem:[%s4 + $0x1c4] sm:$0xf]
    %v1535 = vld [vmem:[%s4 + $0x1c8] sm:$0xf]
    %v1536 = vld [vmem:[%s4 + $0x1cc] sm:$0xf]
    %v1537 = vld [vmem:[%s4 + $0x1d0] sm:$0xf]
    %v1538 = vld [vmem:[%s4 + $0x1d4] sm:$0xf]
    %v1539 = vld [vmem:[%s4 + $0x1d8] sm:$0xf]
    %v1540 = vld [vmem:[%s4 + $0x1dc] sm:$0xf]
    %v1541 = vld [vmem:[%s4 + $0x1e0] sm:$0xf]
    %v1542 = vld [vmem:[%s4 + $0x1e4] sm:$0xf]
    %v1543 = vld [vmem:[%s4 + $0x1e8] sm:$0xf]
    %v1544 = vld [vmem:[%s4 + $0x1ec] sm:$0xf]
    %v1545 = vld [vmem:[%s4 + $0x1f0] sm:$0xf]
    %v1546 = vld [vmem:[%s4 + $0x1f4] sm:$0xf]
    %v1547 = vld [vmem:[%s4 + $0x1f8] sm:$0xf]
    %v1548 = vld [vmem:[%s4 + $0x1fc] sm:$0xf]
    %v1549 = vld [vmem:[%s4 + $0x200] sm:$0xf]
    %v1550 = vld [vmem:[%s4 + $0x204] sm:$0xf]
    %v1551 = vld [vmem:[%s4 + $0x208] sm:$0xf]
    %v1552 = vld [vmem:[%s4 + $0x20c] sm:$0xf]
    %v1553 = vld [vmem:[%s4 + $0x210] sm:$0xf]
    %v1554 = vld [vmem:[%s4 + $0x214] sm:$0xf]
    %v1555 = vld [vmem:[%s4 + $0x218] sm:$0xf]
    %v1556 = vld [vmem:[%s4 + $0x21c] sm:$0xf]
    %v1557 = vld [vmem:[%s4 + $0x220] sm:$0xf]
    %v1558 = vld [vmem:[%s4 + $0x224] sm:$0xf]
    %v1559 = vld [vmem:[%s4 + $0x228] sm:$0xf]
    %v1560 = vld [vmem:[%s4 + $0x22c] sm:$0xf]
    %v1561 = vld [vmem:[%s4 + $0x230] sm:$0xf]
    %v1562 = vld [vmem:[%s4 + $0x234] sm:$0xf]
    %v1563 = vld [vmem:[%s4 + $0x238] sm:$0xf]
    %v1564 = vld [vmem:[%s4 + $0x23c] sm:$0xf]
    %v1565 = vld [vmem:[%s4 + $0x240] sm:$0xf]
    %v1566 = vld [vmem:[%s4 + $0x244] sm:$0xf]
    %v1567 = vld [vmem:[%s4 + $0x248] sm:$0xf]
    %v1568 = vld [vmem:[%s4 + $0x24c] sm:$0xf]
    %v1569 = vld [vmem:[%s4 + $0x250] sm:$0xf]
    %v1570 = vld [vmem:[%s4 + $0x254] sm:$0xf]
    %v1571 = vld [vmem:[%s4 + $0x258] sm:$0xf]
    %v1572 = vld [vmem:[%s4 + $0x25c] sm:$0xf]
    %v1573 = vld [vmem:[%s4 + $0x260] sm:$0xf]
    %v1574 = vld [vmem:[%s4 + $0x264] sm:$0xf]
    %v1575 = vld [vmem:[%s4 + $0x268] sm:$0xf]
    %v1576 = vld [vmem:[%s4 + $0x26c] sm:$0xf]
    %v1577 = vld [vmem:[%s4 + $0x270] sm:$0xf]
    %v1578 = vld [vmem:[%s4 + $0x274] sm:$0xf]
    %v1579 = vld [vmem:[%s4 + $0x278] sm:$0xf]
    %v1580 = vld [vmem:[%s4 + $0x27c] sm:$0xf]
    %v1581 = vld [vmem:[%s4 + $0x280] sm:$0xf]
    %v1582 = vld [vmem:[%s4 + $0x284] sm:$0xf]
    %v1583 = vld [vmem:[%s4 + $0x288] sm:$0xf]
    %v1584 = vld [vmem:[%s4 + $0x28c] sm:$0xf]
    %v1585 = vld [vmem:[%s4 + $0x290] sm:$0xf]
    %v1586 = vld [vmem:[%s4 + $0x294] sm:$0xf]
    %v1587 = vld [vmem:[%s4 + $0x298] sm:$0xf]
    %v1588 = vld [vmem:[%s4 + $0x29c] sm:$0xf]
    %v1589 = vld [vmem:[%s4 + $0x2a0] sm:$0xf]
    %v1590 = vld [vmem:[%s4 + $0x2a4] sm:$0xf]
    %v1591 = vld [vmem:[%s4 + $0x2a8] sm:$0xf]
    %v1592 = vld [vmem:[%s4 + $0x2ac] sm:$0xf]
    %v1593 = vld [vmem:[%s4 + $0x2b0] sm:$0xf]
    %v1594 = vld [vmem:[%s4 + $0x2b4] sm:$0xf]
    %v1595 = vld [vmem:[%s4 + $0x2b8] sm:$0xf]
    %v1596 = vld [vmem:[%s4 + $0x2bc] sm:$0xf]
    %v1597 = vld [vmem:[%s4 + $0x2c0] sm:$0xf]
    %v1598 = vld [vmem:[%s4 + $0x2c4] sm:$0xf]
    %v1599 = vld [vmem:[%s4 + $0x2c8] sm:$0xf]
    %v1600 = vld [vmem:[%s4 + $0x2cc] sm:$0xf]
    %v1601 = vld [vmem:[%s4 + $0x2d0] sm:$0xf]
    %v1602 = vld [vmem:[%s4 + $0x2d4] sm:$0xf]
    %v1603 = vld [vmem:[%s4 + $0x2d8] sm:$0xf]
    %v1604 = vld [vmem:[%s4 + $0x2dc] sm:$0xf]
    %v1605 = vld [vmem:[%s4 + $0x2e0] sm:$0xf]
    %v1606 = vld [vmem:[%s4 + $0x2e4] sm:$0xf]
    %v1607 = vld [vmem:[%s4 + $0x2e8] sm:$0xf]
    %v1608 = vld [vmem:[%s4 + $0x2ec] sm:$0xf]
    %v1609 = vld [vmem:[%s4 + $0x2f0] sm:$0xf]
    %v1610 = vld [vmem:[%s4 + $0x2f4] sm:$0xf]
    %v1611 = vld [vmem:[%s4 + $0x2f8] sm:$0xf]
    %v1612 = vld [vmem:[%s4 + $0x2fc] sm:$0xf]
    %v1613 = vld [vmem:[%s4 + $0x300] sm:$0xf]
    %v1614 = vld [vmem:[%s4 + $0x304] sm:$0xf]
    %v1615 = vld [vmem:[%s4 + $0x308] sm:$0xf]
    %v1616 = vld [vmem:[%s4 + $0x30c] sm:$0xf]
    %v1617 = vld [vmem:[%s4 + $0x310] sm:$0xf]
    %v1618 = vld [vmem:[%s4 + $0x314] sm:$0xf]
    %v1619 = vld [vmem:[%s4 + $0x318] sm:$0xf]
    %v1620 = vld [vmem:[%s4 + $0x31c] sm:$0xf]
    %v1621 = vld [vmem:[%s4 + $0x320] sm:$0xf]
    %v1622 = vld [vmem:[%s4 + $0x324] sm:$0xf]
    %v1623 = vld [vmem:[%s4 + $0x328] sm:$0xf]
    %v1624 = vld [vmem:[%s4 + $0x32c] sm:$0xf]
    %v1625 = vld [vmem:[%s4 + $0x330] sm:$0xf]
    %v1626 = vld [vmem:[%s4 + $0x334] sm:$0xf]
    %v1627 = vld [vmem:[%s4 + $0x338] sm:$0xf]
    %v1628 = vld [vmem:[%s4 + $0x33c] sm:$0xf]
    %v1629 = vld [vmem:[%s4 + $0x340] sm:$0xf]
    %v1630 = vld [vmem:[%s4 + $0x344] sm:$0xf]
    %v1631 = vld [vmem:[%s4 + $0x348] sm:$0xf]
    %v1632 = vld [vmem:[%s4 + $0x34c] sm:$0xf]
    %v1633 = vld [vmem:[%s4 + $0x350] sm:$0xf]
    %v1634 = vld [vmem:[%s4 + $0x354] sm:$0xf]
    %v1635 = vld [vmem:[%s4 + $0x358] sm:$0xf]
    %v1636 = vld [vmem:[%s4 + $0x35c] sm:$0xf]
    %v1637 = vld [vmem:[%s4 + $0x360] sm:$0xf]
    %v1638 = vld [vmem:[%s4 + $0x364] sm:$0xf]
    %v1639 = vld [vmem:[%s4 + $0x368] sm:$0xf]
    %v1640 = vld [vmem:[%s4 + $0x36c] sm:$0xf]
    %v1641 = vld [vmem:[%s4 + $0x370] sm:$0xf]
    %v1642 = vld [vmem:[%s4 + $0x374] sm:$0xf]
    %v1643 = vld [vmem:[%s4 + $0x378] sm:$0xf]
    %v1644 = vld [vmem:[%s4 + $0x37c] sm:$0xf]
    %v1645 = vld [vmem:[%s4 + $0x380] sm:$0xf]
    %v1646 = vld [vmem:[%s4 + $0x384] sm:$0xf]
    %v1647 = vld [vmem:[%s4 + $0x388] sm:$0xf]
    %v1648 = vld [vmem:[%s4 + $0x38c] sm:$0xf]
    %v1649 = vld [vmem:[%s4 + $0x390] sm:$0xf]
    %v1650 = vld [vmem:[%s4 + $0x394] sm:$0xf]
    %v1651 = vld [vmem:[%s4 + $0x398] sm:$0xf]
    %v1652 = vld [vmem:[%s4 + $0x39c] sm:$0xf]
    %v1653 = vld [vmem:[%s4 + $0x3a0] sm:$0xf]
    %v1654 = vld [vmem:[%s4 + $0x3a4] sm:$0xf]
    %v1655 = vld [vmem:[%s4 + $0x3a8] sm:$0xf]
    %v1656 = vld [vmem:[%s4 + $0x3ac] sm:$0xf]
    %v1657 = vld [vmem:[%s4 + $0x3b0] sm:$0xf]
    %v1658 = vld [vmem:[%s4 + $0x3b4] sm:$0xf]
    %v1659 = vld [vmem:[%s4 + $0x3b8] sm:$0xf]
    %v1660 = vld [vmem:[%s4 + $0x3bc] sm:$0xf]
    %v1661 = vld [vmem:[%s4 + $0x3c0] sm:$0xf]
    %v1662 = vld [vmem:[%s4 + $0x3c4] sm:$0xf]
    %v1663 = vld [vmem:[%s4 + $0x3c8] sm:$0xf]
    %v1664 = vld [vmem:[%s4 + $0x3cc] sm:$0xf]
    %v1665 = vld [vmem:[%s4 + $0x3d0] sm:$0xf]
    %v1666 = vld [vmem:[%s4 + $0x3d4] sm:$0xf]
    %v1667 = vld [vmem:[%s4 + $0x3d8] sm:$0xf]
    %v1668 = vld [vmem:[%s4 + $0x3dc] sm:$0xf]
    %v1669 = vld [vmem:[%s4 + $0x3e0] sm:$0xf]
    %v1670 = vld [vmem:[%s4 + $0x3e4] sm:$0xf]
    %v1671 = vld [vmem:[%s4 + $0x3e8] sm:$0xf]
    %v1672 = vld [vmem:[%s4 + $0x3ec] sm:$0xf]
    %v1673 = vld [vmem:[%s4 + $0x3f0] sm:$0xf]
    %v1674 = vld [vmem:[%s4 + $0x3f4] sm:$0xf]
    %v1675 = vld [vmem:[%s4 + $0x3f8] sm:$0xf]
    %v1676 = vld [vmem:[%s4 + $0x3fc] sm:$0xf]
    %v1677 = vld [vmem:[%s5] sm:$0x1]
    %v1679 = vlaneseq
    %v1680 = vshrl.u32 %v1679, 7
    %v1681 = vsub.s32 0, %v1680
    %v1682 = vrot.slane %v1677, %v1681
    %v1940 = vunpack.c.l.b16 %v1421
    %v1941 = vunpack.c.l.b16 %v1422
    %v1942 = vunpack.c.l.b16 %v1423
    %v1943 = vunpack.c.l.b16 %v1424
    %v1944 = vunpack.c.l.b16 %v1425
    %v1945 = vunpack.c.l.b16 %v1426
    %v1946 = vunpack.c.l.b16 %v1427
    %v1947 = vunpack.c.l.b16 %v1428
    %v1948 = vunpack.c.l.b16 %v1429
    %v1949 = vunpack.c.l.b16 %v1430
    %v1950 = vunpack.c.l.b16 %v1431
    %v1951 = vunpack.c.l.b16 %v1432
    %v1952 = vunpack.c.l.b16 %v1433
    %v1953 = vunpack.c.l.b16 %v1434
    %v1954 = vunpack.c.l.b16 %v1435
    %v1955 = vunpack.c.l.b16 %v1436
    %v1956 = vunpack.c.l.b16 %v1437
    %v1957 = vunpack.c.l.b16 %v1438
    %v1958 = vunpack.c.l.b16 %v1439
    %v1959 = vunpack.c.l.b16 %v1440
    %v1960 = vunpack.c.l.b16 %v1441
    %v1961 = vunpack.c.l.b16 %v1442
    %v1962 = vunpack.c.l.b16 %v1443
    %v1963 = vunpack.c.l.b16 %v1444
    %v1964 = vunpack.c.l.b16 %v1445
    %v1965 = vunpack.c.l.b16 %v1446
    %v1966 = vunpack.c.l.b16 %v1447
    %v1967 = vunpack.c.l.b16 %v1448
    %v1968 = vunpack.c.l.b16 %v1449
    %v1969 = vunpack.c.l.b16 %v1450
    %v1970 = vunpack.c.l.b16 %v1451
    %v1971 = vunpack.c.l.b16 %v1452
    %v1972 = vunpack.c.l.b16 %v1453
    %v1973 = vunpack.c.l.b16 %v1454
    %v1974 = vunpack.c.l.b16 %v1455
    %v1975 = vunpack.c.l.b16 %v1456
    %v1976 = vunpack.c.l.b16 %v1457
    %v1977 = vunpack.c.l.b16 %v1458
    %v1978 = vunpack.c.l.b16 %v1459
    %v1979 = vunpack.c.l.b16 %v1460
    %v1980 = vunpack.c.l.b16 %v1461
    %v1981 = vunpack.c.l.b16 %v1462
    %v1982 = vunpack.c.l.b16 %v1463
    %v1983 = vunpack.c.l.b16 %v1464
    %v1984 = vunpack.c.l.b16 %v1465
    %v1985 = vunpack.c.l.b16 %v1466
    %v1986 = vunpack.c.l.b16 %v1467
    %v1987 = vunpack.c.l.b16 %v1468
    %v1988 = vunpack.c.l.b16 %v1469
    %v1989 = vunpack.c.l.b16 %v1470
    %v1990 = vunpack.c.l.b16 %v1471
    %v1991 = vunpack.c.l.b16 %v1472
    %v1992 = vunpack.c.l.b16 %v1473
    %v1993 = vunpack.c.l.b16 %v1474
    %v1994 = vunpack.c.l.b16 %v1475
    %v1995 = vunpack.c.l.b16 %v1476
    %v1996 = vunpack.c.l.b16 %v1477
    %v1997 = vunpack.c.l.b16 %v1478
    %v1998 = vunpack.c.l.b16 %v1479
    %v1999 = vunpack.c.l.b16 %v1480
    %v2000 = vunpack.c.l.b16 %v1481
    %v2001 = vunpack.c.l.b16 %v1482
    %v2002 = vunpack.c.l.b16 %v1483
    %v2003 = vunpack.c.l.b16 %v1484
    %v2004 = vunpack.c.l.b16 %v1485
    %v2005 = vunpack.c.l.b16 %v1486
    %v2006 = vunpack.c.l.b16 %v1487
    %v2007 = vunpack.c.l.b16 %v1488
    %v2008 = vunpack.c.l.b16 %v1489
    %v2009 = vunpack.c.l.b16 %v1490
    %v2010 = vunpack.c.l.b16 %v1491
    %v2011 = vunpack.c.l.b16 %v1492
    %v2012 = vunpack.c.l.b16 %v1493
    %v2013 = vunpack.c.l.b16 %v1494
    %v2014 = vunpack.c.l.b16 %v1495
    %v2015 = vunpack.c.l.b16 %v1496
    %v2016 = vunpack.c.l.b16 %v1497
    %v2017 = vunpack.c.l.b16 %v1498
    %v2018 = vunpack.c.l.b16 %v1499
    %v2019 = vunpack.c.l.b16 %v1500
    %v2020 = vunpack.c.l.b16 %v1501
    %v2021 = vunpack.c.l.b16 %v1502
    %v2022 = vunpack.c.l.b16 %v1503
    %v2023 = vunpack.c.l.b16 %v1504
    %v2024 = vunpack.c.l.b16 %v1505
    %v2025 = vunpack.c.l.b16 %v1506
    %v2026 = vunpack.c.l.b16 %v1507
    %v2027 = vunpack.c.l.b16 %v1508
    %v2028 = vunpack.c.l.b16 %v1509
    %v2029 = vunpack.c.l.b16 %v1510
    %v2030 = vunpack.c.l.b16 %v1511
    %v2031 = vunpack.c.l.b16 %v1512
    %v2032 = vunpack.c.l.b16 %v1513
    %v2033 = vunpack.c.l.b16 %v1514
    %v2034 = vunpack.c.l.b16 %v1515
    %v2035 = vunpack.c.l.b16 %v1516
    %v2036 = vunpack.c.l.b16 %v1517
    %v2037 = vunpack.c.l.b16 %v1518
    %v2038 = vunpack.c.l.b16 %v1519
    %v2039 = vunpack.c.l.b16 %v1520
    %v2040 = vunpack.c.l.b16 %v1521
    %v2041 = vunpack.c.l.b16 %v1522
    %v2042 = vunpack.c.l.b16 %v1523
    %v2043 = vunpack.c.l.b16 %v1524
    %v2044 = vunpack.c.l.b16 %v1525
    %v2045 = vunpack.c.l.b16 %v1526
    %v2046 = vunpack.c.l.b16 %v1527
    %v2047 = vunpack.c.l.b16 %v1528
    %v2048 = vunpack.c.l.b16 %v1529
    %v2049 = vunpack.c.l.b16 %v1530
    %v2050 = vunpack.c.l.b16 %v1531
    %v2051 = vunpack.c.l.b16 %v1532
    %v2052 = vunpack.c.l.b16 %v1533
    %v2053 = vunpack.c.l.b16 %v1534
    %v2054 = vunpack.c.l.b16 %v1535
    %v2055 = vunpack.c.l.b16 %v1536
    %v2056 = vunpack.c.l.b16 %v1537
    %v2057 = vunpack.c.l.b16 %v1538
    %v2058 = vunpack.c.l.b16 %v1539
    %v2059 = vunpack.c.l.b16 %v1540
    %v2060 = vunpack.c.l.b16 %v1541
    %v2061 = vunpack.c.l.b16 %v1542
    %v2062 = vunpack.c.l.b16 %v1543
    %v2063 = vunpack.c.l.b16 %v1544
    %v2064 = vunpack.c.l.b16 %v1545
    %v2065 = vunpack.c.l.b16 %v1546
    %v2066 = vunpack.c.l.b16 %v1547
    %v2067 = vunpack.c.l.b16 %v1548
    %v2068 = vunpack.c.l.b16 %v1549
    %v2069 = vunpack.c.l.b16 %v1550
    %v2070 = vunpack.c.l.b16 %v1551
    %v2071 = vunpack.c.l.b16 %v1552
    %v2072 = vunpack.c.l.b16 %v1553
    %v2073 = vunpack.c.l.b16 %v1554
    %v2074 = vunpack.c.l.b16 %v1555
    %v2075 = vunpack.c.l.b16 %v1556
    %v2076 = vunpack.c.l.b16 %v1557
    %v2077 = vunpack.c.l.b16 %v1558
    %v2078 = vunpack.c.l.b16 %v1559
    %v2079 = vunpack.c.l.b16 %v1560
    %v2080 = vunpack.c.l.b16 %v1561
    %v2081 = vunpack.c.l.b16 %v1562
    %v2082 = vunpack.c.l.b16 %v1563
    %v2083 = vunpack.c.l.b16 %v1564
    %v2084 = vunpack.c.l.b16 %v1565
    %v2085 = vunpack.c.l.b16 %v1566
    %v2086 = vunpack.c.l.b16 %v1567
    %v2087 = vunpack.c.l.b16 %v1568
    %v2088 = vunpack.c.l.b16 %v1569
    %v2089 = vunpack.c.l.b16 %v1570
    %v2090 = vunpack.c.l.b16 %v1571
    %v2091 = vunpack.c.l.b16 %v1572
    %v2092 = vunpack.c.l.b16 %v1573
    %v2093 = vunpack.c.l.b16 %v1574
    %v2094 = vunpack.c.l.b16 %v1575
    %v2095 = vunpack.c.l.b16 %v1576
    %v2096 = vunpack.c.l.b16 %v1577
    %v2097 = vunpack.c.l.b16 %v1578
    %v2098 = vunpack.c.l.b16 %v1579
    %v2099 = vunpack.c.l.b16 %v1580
    %v2100 = vunpack.c.l.b16 %v1581
    %v2101 = vunpack.c.l.b16 %v1582
    %v2102 = vunpack.c.l.b16 %v1583
    %v2103 = vunpack.c.l.b16 %v1584
    %v2104 = vunpack.c.l.b16 %v1585
    %v2105 = vunpack.c.l.b16 %v1586
    %v2106 = vunpack.c.l.b16 %v1587
    %v2107 = vunpack.c.l.b16 %v1588
    %v2108 = vunpack.c.l.b16 %v1589
    %v2109 = vunpack.c.l.b16 %v1590
    %v2110 = vunpack.c.l.b16 %v1591
    %v2111 = vunpack.c.l.b16 %v1592
    %v2112 = vunpack.c.l.b16 %v1593
    %v2113 = vunpack.c.l.b16 %v1594
    %v2114 = vunpack.c.l.b16 %v1595
    %v2115 = vunpack.c.l.b16 %v1596
    %v2116 = vunpack.c.l.b16 %v1597
    %v2117 = vunpack.c.l.b16 %v1598
    %v2118 = vunpack.c.l.b16 %v1599
    %v2119 = vunpack.c.l.b16 %v1600
    %v2120 = vunpack.c.l.b16 %v1601
    %v2121 = vunpack.c.l.b16 %v1602
    %v2122 = vunpack.c.l.b16 %v1603
    %v2123 = vunpack.c.l.b16 %v1604
    %v2124 = vunpack.c.l.b16 %v1605
    %v2125 = vunpack.c.l.b16 %v1606
    %v2126 = vunpack.c.l.b16 %v1607
    %v2127 = vunpack.c.l.b16 %v1608
    %v2128 = vunpack.c.l.b16 %v1609
    %v2129 = vunpack.c.l.b16 %v1610
    %v2130 = vunpack.c.l.b16 %v1611
    %v2131 = vunpack.c.l.b16 %v1612
    %v2132 = vunpack.c.l.b16 %v1613
    %v2133 = vunpack.c.l.b16 %v1614
    %v2134 = vunpack.c.l.b16 %v1615
    %v2135 = vunpack.c.l.b16 %v1616
    %v2136 = vunpack.c.l.b16 %v1617
    %v2137 = vunpack.c.l.b16 %v1618
    %v2138 = vunpack.c.l.b16 %v1619
    %v2139 = vunpack.c.l.b16 %v1620
    %v2140 = vunpack.c.l.b16 %v1621
    %v2141 = vunpack.c.l.b16 %v1622
    %v2142 = vunpack.c.l.b16 %v1623
    %v2143 = vunpack.c.l.b16 %v1624
    %v2144 = vunpack.c.l.b16 %v1625
    %v2145 = vunpack.c.l.b16 %v1626
    %v2146 = vunpack.c.l.b16 %v1627
    %v2147 = vunpack.c.l.b16 %v1628
    %v2148 = vunpack.c.l.b16 %v1629
    %v2149 = vunpack.c.l.b16 %v1630
    %v2150 = vunpack.c.l.b16 %v1631
    %v2151 = vunpack.c.l.b16 %v1632
    %v2152 = vunpack.c.l.b16 %v1633
    %v2153 = vunpack.c.l.b16 %v1634
    %v2154 = vunpack.c.l.b16 %v1635
    %v2155 = vunpack.c.l.b16 %v1636
    %v2156 = vunpack.c.l.b16 %v1637
    %v2157 = vunpack.c.l.b16 %v1638
    %v2158 = vunpack.c.l.b16 %v1639
    %v2159 = vunpack.c.l.b16 %v1640
    %v2160 = vunpack.c.l.b16 %v1641
    %v2161 = vunpack.c.l.b16 %v1642
    %v2162 = vunpack.c.l.b16 %v1643
    %v2163 = vunpack.c.l.b16 %v1644
    %v2164 = vunpack.c.l.b16 %v1645
    %v2165 = vunpack.c.l.b16 %v1646
    %v2166 = vunpack.c.l.b16 %v1647
    %v2167 = vunpack.c.l.b16 %v1648
    %v2168 = vunpack.c.l.b16 %v1649
    %v2169 = vunpack.c.l.b16 %v1650
    %v2170 = vunpack.c.l.b16 %v1651
    %v2171 = vunpack.c.l.b16 %v1652
    %v2172 = vunpack.c.l.b16 %v1653
    %v2173 = vunpack.c.l.b16 %v1654
    %v2174 = vunpack.c.l.b16 %v1655
    %v2175 = vunpack.c.l.b16 %v1656
    %v2176 = vunpack.c.l.b16 %v1657
    %v2177 = vunpack.c.l.b16 %v1658
    %v2178 = vunpack.c.l.b16 %v1659
    %v2179 = vunpack.c.l.b16 %v1660
    %v2180 = vunpack.c.l.b16 %v1661
    %v2181 = vunpack.c.l.b16 %v1662
    %v2182 = vunpack.c.l.b16 %v1663
    %v2183 = vunpack.c.l.b16 %v1664
    %v2184 = vunpack.c.l.b16 %v1665
    %v2185 = vunpack.c.l.b16 %v1666
    %v2186 = vunpack.c.l.b16 %v1667
    %v2187 = vunpack.c.l.b16 %v1668
    %v2188 = vunpack.c.l.b16 %v1669
    %v2189 = vunpack.c.l.b16 %v1670
    %v2190 = vunpack.c.l.b16 %v1671
    %v2191 = vunpack.c.l.b16 %v1672
    %v2192 = vunpack.c.l.b16 %v1673
    %v2193 = vunpack.c.l.b16 %v1674
    %v2194 = vunpack.c.l.b16 %v1675
    %v2195 = vunpack.c.l.b16 %v1676
    %v2196 = vpack.c.b16 %v1941, %v1940
    %v2197 = vpack.c.b16 %v1943, %v1942
    %v2198 = vpack.c.b16 %v1945, %v1944
    %v2199 = vpack.c.b16 %v1947, %v1946
    %v2200 = vpack.c.b16 %v1949, %v1948
    %v2201 = vpack.c.b16 %v1951, %v1950
    %v2202 = vpack.c.b16 %v1953, %v1952
    %v2203 = vpack.c.b16 %v1955, %v1954
    %v2204 = vpack.c.b16 %v1957, %v1956
    %v2205 = vpack.c.b16 %v1959, %v1958
    %v2206 = vpack.c.b16 %v1961, %v1960
    %v2207 = vpack.c.b16 %v1963, %v1962
    %v2208 = vpack.c.b16 %v1965, %v1964
    %v2209 = vpack.c.b16 %v1967, %v1966
    %v2210 = vpack.c.b16 %v1969, %v1968
    %v2211 = vpack.c.b16 %v1971, %v1970
    %v2212 = vpack.c.b16 %v1973, %v1972
    %v2213 = vpack.c.b16 %v1975, %v1974
    %v2214 = vpack.c.b16 %v1977, %v1976
    %v2215 = vpack.c.b16 %v1979, %v1978
    %v2216 = vpack.c.b16 %v1981, %v1980
    %v2217 = vpack.c.b16 %v1983, %v1982
    %v2218 = vpack.c.b16 %v1985, %v1984
    %v2219 = vpack.c.b16 %v1987, %v1986
    %v2220 = vpack.c.b16 %v1989, %v1988
    %v2221 = vpack.c.b16 %v1991, %v1990
    %v2222 = vpack.c.b16 %v1993, %v1992
    %v2223 = vpack.c.b16 %v1995, %v1994
    %v2224 = vpack.c.b16 %v1997, %v1996
    %v2225 = vpack.c.b16 %v1999, %v1998
    %v2226 = vpack.c.b16 %v2001, %v2000
    %v2227 = vpack.c.b16 %v2003, %v2002
    %v2228 = vpack.c.b16 %v2005, %v2004
    %v2229 = vpack.c.b16 %v2007, %v2006
    %v2230 = vpack.c.b16 %v2009, %v2008
    %v2231 = vpack.c.b16 %v2011, %v2010
    %v2232 = vpack.c.b16 %v2013, %v2012
    %v2233 = vpack.c.b16 %v2015, %v2014
    %v2234 = vpack.c.b16 %v2017, %v2016
    %v2235 = vpack.c.b16 %v2019, %v2018
    %v2236 = vpack.c.b16 %v2021, %v2020
    %v2237 = vpack.c.b16 %v2023, %v2022
    %v2238 = vpack.c.b16 %v2025, %v2024
    %v2239 = vpack.c.b16 %v2027, %v2026
    %v2240 = vpack.c.b16 %v2029, %v2028
    %v2241 = vpack.c.b16 %v2031, %v2030
    %v2242 = vpack.c.b16 %v2033, %v2032
    %v2243 = vpack.c.b16 %v2035, %v2034
    %v2244 = vpack.c.b16 %v2037, %v2036
    %v2245 = vpack.c.b16 %v2039, %v2038
    %v2246 = vpack.c.b16 %v2041, %v2040
    %v2247 = vpack.c.b16 %v2043, %v2042
    %v2248 = vpack.c.b16 %v2045, %v2044
    %v2249 = vpack.c.b16 %v2047, %v2046
    %v2250 = vpack.c.b16 %v2049, %v2048
    %v2251 = vpack.c.b16 %v2051, %v2050
    %v2252 = vpack.c.b16 %v2053, %v2052
    %v2253 = vpack.c.b16 %v2055, %v2054
    %v2254 = vpack.c.b16 %v2057, %v2056
    %v2255 = vpack.c.b16 %v2059, %v2058
    %v2256 = vpack.c.b16 %v2061, %v2060
    %v2257 = vpack.c.b16 %v2063, %v2062
    %v2258 = vpack.c.b16 %v2065, %v2064
    %v2259 = vpack.c.b16 %v2067, %v2066
    %v2260 = vpack.c.b16 %v2069, %v2068
    %v2261 = vpack.c.b16 %v2071, %v2070
    %v2262 = vpack.c.b16 %v2073, %v2072
    %v2263 = vpack.c.b16 %v2075, %v2074
    %v2264 = vpack.c.b16 %v2077, %v2076
    %v2265 = vpack.c.b16 %v2079, %v2078
    %v2266 = vpack.c.b16 %v2081, %v2080
    %v2267 = vpack.c.b16 %v2083, %v2082
    %v2268 = vpack.c.b16 %v2085, %v2084
    %v2269 = vpack.c.b16 %v2087, %v2086
    %v2270 = vpack.c.b16 %v2089, %v2088
    %v2271 = vpack.c.b16 %v2091, %v2090
    %v2272 = vpack.c.b16 %v2093, %v2092
    %v2273 = vpack.c.b16 %v2095, %v2094
    %v2274 = vpack.c.b16 %v2097, %v2096
    %v2275 = vpack.c.b16 %v2099, %v2098
    %v2276 = vpack.c.b16 %v2101, %v2100
    %v2277 = vpack.c.b16 %v2103, %v2102
    %v2278 = vpack.c.b16 %v2105, %v2104
    %v2279 = vpack.c.b16 %v2107, %v2106
    %v2280 = vpack.c.b16 %v2109, %v2108
    %v2281 = vpack.c.b16 %v2111, %v2110
    %v2282 = vpack.c.b16 %v2113, %v2112
    %v2283 = vpack.c.b16 %v2115, %v2114
    %v2284 = vpack.c.b16 %v2117, %v2116
    %v2285 = vpack.c.b16 %v2119, %v2118
    %v2286 = vpack.c.b16 %v2121, %v2120
    %v2287 = vpack.c.b16 %v2123, %v2122
    %v2288 = vpack.c.b16 %v2125, %v2124
    %v2289 = vpack.c.b16 %v2127, %v2126
    %v2290 = vpack.c.b16 %v2129, %v2128
    %v2291 = vpack.c.b16 %v2131, %v2130
    %v2292 = vpack.c.b16 %v2133, %v2132
    %v2293 = vpack.c.b16 %v2135, %v2134
    %v2294 = vpack.c.b16 %v2137, %v2136
    %v2295 = vpack.c.b16 %v2139, %v2138
    %v2296 = vpack.c.b16 %v2141, %v2140
    %v2297 = vpack.c.b16 %v2143, %v2142
    %v2298 = vpack.c.b16 %v2145, %v2144
    %v2299 = vpack.c.b16 %v2147, %v2146
    %v2300 = vpack.c.b16 %v2149, %v2148
    %v2301 = vpack.c.b16 %v2151, %v2150
    %v2302 = vpack.c.b16 %v2153, %v2152
    %v2303 = vpack.c.b16 %v2155, %v2154
    %v2304 = vpack.c.b16 %v2157, %v2156
    %v2305 = vpack.c.b16 %v2159, %v2158
    %v2306 = vpack.c.b16 %v2161, %v2160
    %v2307 = vpack.c.b16 %v2163, %v2162
    %v2308 = vpack.c.b16 %v2165, %v2164
    %v2309 = vpack.c.b16 %v2167, %v2166
    %v2310 = vpack.c.b16 %v2169, %v2168
    %v2311 = vpack.c.b16 %v2171, %v2170
    %v2312 = vpack.c.b16 %v2173, %v2172
    %v2313 = vpack.c.b16 %v2175, %v2174
    %v2314 = vpack.c.b16 %v2177, %v2176
    %v2315 = vpack.c.b16 %v2179, %v2178
    %v2316 = vpack.c.b16 %v2181, %v2180
    %v2317 = vpack.c.b16 %v2183, %v2182
    %v2318 = vpack.c.b16 %v2185, %v2184
    %v2319 = vpack.c.b16 %v2187, %v2186
    %v2320 = vpack.c.b16 %v2189, %v2188
    %v2321 = vpack.c.b16 %v2191, %v2190
    %v2322 = vpack.c.b16 %v2193, %v2192
    %v2323 = vpack.c.b16 %v2195, %v2194
    %2452 = vmatprep.subr.bf16.mxu0 0
    %2453 = vmatpush1.bf16.msra.mxu0 %v2196
    %2454 = vmatprep.subr.bf16.mxu0 0
    %2455 = vmatpush1.bf16.msra.mxu0 %v2197
    %2456 = vmatprep.subr.bf16.mxu0 0
    %2457 = vmatpush1.bf16.msra.mxu0 %v2198
    %2458 = vmatprep.subr.bf16.mxu0 0
    %2459 = vmatpush1.bf16.msra.mxu0 %v2199
    %2460 = vmatprep.subr.bf16.mxu0 0
    %2461 = vmatpush1.bf16.msra.mxu0 %v2200
    %2462 = vmatprep.subr.bf16.mxu0 0
    %2463 = vmatpush1.bf16.msra.mxu0 %v2201
    %2464 = vmatprep.subr.bf16.mxu0 0
    %2465 = vmatpush1.bf16.msra.mxu0 %v2202
    %2466 = vmatprep.subr.bf16.mxu0 0
    %2467 = vmatpush1.bf16.msra.mxu0 %v2203
    %2468 = vmatprep.subr.bf16.mxu0 0
    %2469 = vmatpush1.bf16.msra.mxu0 %v2204
    %2470 = vmatprep.subr.bf16.mxu0 0
    %2471 = vmatpush1.bf16.msra.mxu0 %v2205
    %2472 = vmatprep.subr.bf16.mxu0 0
    %2473 = vmatpush1.bf16.msra.mxu0 %v2206
    %2474 = vmatprep.subr.bf16.mxu0 0
    %2475 = vmatpush1.bf16.msra.mxu0 %v2207
    %2476 = vmatprep.subr.bf16.mxu0 0
    %2477 = vmatpush1.bf16.msra.mxu0 %v2208
    %2478 = vmatprep.subr.bf16.mxu0 0
    %2479 = vmatpush1.bf16.msra.mxu0 %v2209
    %2480 = vmatprep.subr.bf16.mxu0 0
    %2481 = vmatpush1.bf16.msra.mxu0 %v2210
    %2482 = vmatprep.subr.bf16.mxu0 0
    %2483 = vmatpush1.bf16.msra.mxu0 %v2211
    %2484 = vmatprep.mubr.bf16.mxu0 %v523
    %2485 = vmatmul.mubr.bf16.gmra.mrb[0].mxu0 %v459
    %v2486 = vpop.f32.mrb[0].mxu0
    %v2487 = vadd.f32 %v1682, %v2486
    %v2488 = vpop.f32.mrb[0].mxu0
    %v2489 = vpop.f32.mrb[0].mxu0
    %v2490 = vadd.f32 %v1682, %v2489
    %v2491 = vpop.f32.mrb[0].mxu0
    %2492 = vmatprep.mubr.bf16.mxu0 %v524
    %2493 = vmatmul.mubr.bf16.gmra.mrb[0].mxu0 %v460
    %v2494 = vpop.f32.mrb[0].mxu0
    %v2495 = vadd.f32 %v1682, %v2494
    %v2496 = vpop.f32.mrb[0].mxu0
    %v2497 = vpop.f32.mrb[0].mxu0
    %v2498 = vpop.f32.mrb[0].mxu0
    %2499 = vdwg.mxu0
    %2500 = vmatprep.subr.bf16.mxu0 0
    %2501 = vmatpush1.bf16.msra.mxu0 %v2212
    %2502 = vmatprep.subr.bf16.mxu0 0
    %2503 = vmatpush1.bf16.msra.mxu0 %v2213
    %2504 = vmatprep.subr.bf16.mxu0 0
    %2505 = vmatpush1.bf16.msra.mxu0 %v2214
    %2506 = vmatprep.subr.bf16.mxu0 0
    %2507 = vmatpush1.bf16.msra.mxu0 %v2215
    %2508 = vmatprep.subr.bf16.mxu0 0
    %2509 = vmatpush1.bf16.msra.mxu0 %v2216
    %2510 = vmatprep.subr.bf16.mxu0 0
    %2511 = vmatpush1.bf16.msra.mxu0 %v2217
    %2512 = vmatprep.subr.bf16.mxu0 0
    %2513 = vmatpush1.bf16.msra.mxu0 %v2218
    %2514 = vmatprep.subr.bf16.mxu0 0
    %2515 = vmatpush1.bf16.msra.mxu0 %v2219
    %2516 = vmatprep.subr.bf16.mxu0 0
    %2517 = vmatpush1.bf16.msra.mxu0 %v2220
    %2518 = vmatprep.subr.bf16.mxu0 0
    %2519 = vmatpush1.bf16.msra.mxu0 %v2221
    %2520 = vmatprep.subr.bf16.mxu0 0
    %2521 = vmatpush1.bf16.msra.mxu0 %v2222
    %2522 = vmatprep.subr.bf16.mxu0 0
    %2523 = vmatpush1.bf16.msra.mxu0 %v2223
    %2524 = vmatprep.subr.bf16.mxu0 0
    %2525 = vmatpush1.bf16.msra.mxu0 %v2224
    %2526 = vmatprep.subr.bf16.mxu0 0
    %2527 = vmatpush1.bf16.msra.mxu0 %v2225
    %2528 = vmatprep.subr.bf16.mxu0 0
    %2529 = vmatpush1.bf16.msra.mxu0 %v2226
    %2530 = vmatprep.subr.bf16.mxu0 0
    %2531 = vmatpush1.bf16.msra.mxu0 %v2227
    %2532 = vmatprep.mubr.bf16.mxu0 %v651
    %2533 = vmatmul.mubr.bf16.gmra.mrb[0].mxu0 %v587
    %v2534 = vpop.f32.mrb[0].mxu0
    %v2535 = vadd.f32 %v2487, %v2534
    %v2536 = vpop.f32.mrb[0].mxu0
    %v2537 = vpop.f32.mrb[0].mxu0
    %v2538 = vadd.f32 %v2490, %v2537
    %v2539 = vpop.f32.mrb[0].mxu0
    %2540 = vmatprep.mubr.bf16.mxu0 %v652
    %2541 = vmatmul.mubr.bf16.gmra.mrb[0].mxu0 %v588
    %v2542 = vpop.f32.mrb[0].mxu0
    %v2543 = vadd.f32 %v2495, %v2542
    %v2544 = vpop.f32.mrb[0].mxu0
    %v2545 = vpop.f32.mrb[0].mxu0
    %v2546 = vpop.f32.mrb[0].mxu0
    %2547 = vdwg.mxu0
    %2548 = vmatprep.subr.bf16.mxu0 0
    %2549 = vmatpush1.bf16.msra.mxu0 %v2228
    %2550 = vmatprep.subr.bf16.mxu0 0
    %2551 = vmatpush1.bf16.msra.mxu0 %v2229
    %2552 = vmatprep.subr.bf16.mxu0 0
    %2553 = vmatpush1.bf16.msra.mxu0 %v2230
    %2554 = vmatprep.subr.bf16.mxu0 0
    %2555 = vmatpush1.bf16.msra.mxu0 %v2231
    %2556 = vmatprep.subr.bf16.mxu0 0
    %2557 = vmatpush1.bf16.msra.mxu0 %v2232
    %2558 = vmatprep.subr.bf16.mxu0 0
    %2559 = vmatpush1.bf16.msra.mxu0 %v2233
    %2560 = vmatprep.subr.bf16.mxu0 0
    %2561 = vmatpush1.bf16.msra.mxu0 %v2234
    %2562 = vmatprep.subr.bf16.mxu0 0
    %2563 = vmatpush1.bf16.msra.mxu0 %v2235
    %2564 = vmatprep.subr.bf16.mxu0 0
    %2565 = vmatpush1.bf16.msra.mxu0 %v2236
    %2566 = vmatprep.subr.bf16.mxu0 0
    %2567 = vmatpush1.bf16.msra.mxu0 %v2237
    %2568 = vmatprep.subr.bf16.mxu0 0
    %2569 = vmatpush1.bf16.msra.mxu0 %v2238
    %2570 = vmatprep.subr.bf16.mxu0 0
    %2571 = vmatpush1.bf16.msra.mxu0 %v2239
    %2572 = vmatprep.subr.bf16.mxu0 0
    %2573 = vmatpush1.bf16.msra.mxu0 %v2240
    %2574 = vmatprep.subr.bf16.mxu0 0
    %2575 = vmatpush1.bf16.msra.mxu0 %v2241
    %2576 = vmatprep.subr.bf16.mxu0 0
    %2577 = vmatpush1.bf16.msra.mxu0 %v2242
    %2578 = vmatprep.subr.bf16.mxu0 0
    %2579 = vmatpush1.bf16.msra.mxu0 %v2243
    %2580 = vmatprep.mubr.bf16.mxu0 %v779
    %2581 = vmatmul.mubr.bf16.gmra.mrb[0].mxu0 %v715
    %v2582 = vpop.f32.mrb[0].mxu0
    %v2583 = vadd.f32 %v2535, %v2582
    %v2584 = vpop.f32.mrb[0].mxu0
    %v2585 = vpop.f32.mrb[0].mxu0
    %v2586 = vadd.f32 %v2538, %v2585
    %v2587 = vpop.f32.mrb[0].mxu0
    %2588 = vmatprep.mubr.bf16.mxu0 %v780
    %2589 = vmatmul.mubr.bf16.gmra.mrb[0].mxu0 %v716
    %v2590 = vpop.f32.mrb[0].mxu0
    %v2591 = vadd.f32 %v2543, %v2590
    %v2592 = vpop.f32.mrb[0].mxu0
    %v2593 = vpop.f32.mrb[0].mxu0
    %v2594 = vpop.f32.mrb[0].mxu0
    %2595 = vdwg.mxu0
    %2596 = vmatprep.subr.bf16.mxu0 0
    %2597 = vmatpush1.bf16.msra.mxu0 %v2244
    %2598 = vmatprep.subr.bf16.mxu0 0
    %2599 = vmatpush1.bf16.msra.mxu0 %v2245
    %2600 = vmatprep.subr.bf16.mxu0 0
    %2601 = vmatpush1.bf16.msra.mxu0 %v2246
    %2602 = vmatprep.subr.bf16.mxu0 0
    %2603 = vmatpush1.bf16.msra.mxu0 %v2247
    %2604 = vmatprep.subr.bf16.mxu0 0
    %2605 = vmatpush1.bf16.msra.mxu0 %v2248
    %2606 = vmatprep.subr.bf16.mxu0 0
    %2607 = vmatpush1.bf16.msra.mxu0 %v2249
    %2608 = vmatprep.subr.bf16.mxu0 0
    %2609 = vmatpush1.bf16.msra.mxu0 %v2250
    %2610 = vmatprep.subr.bf16.mxu0 0
    %2611 = vmatpush1.bf16.msra.mxu0 %v2251
    %2612 = vmatprep.subr.bf16.mxu0 0
    %2613 = vmatpush1.bf16.msra.mxu0 %v2252
    %2614 = vmatprep.subr.bf16.mxu0 0
    %2615 = vmatpush1.bf16.msra.mxu0 %v2253
    %2616 = vmatprep.subr.bf16.mxu0 0
    %2617 = vmatpush1.bf16.msra.mxu0 %v2254
    %2618 = vmatprep.subr.bf16.mxu0 0
    %2619 = vmatpush1.bf16.msra.mxu0 %v2255
    %2620 = vmatprep.subr.bf16.mxu0 0
    %2621 = vmatpush1.bf16.msra.mxu0 %v2256
    %2622 = vmatprep.subr.bf16.mxu0 0
    %2623 = vmatpush1.bf16.msra.mxu0 %v2257
    %2624 = vmatprep.subr.bf16.mxu0 0
    %2625 = vmatpush1.bf16.msra.mxu0 %v2258
    %2626 = vmatprep.subr.bf16.mxu0 0
    %2627 = vmatpush1.bf16.msra.mxu0 %v2259
    %2628 = vmatprep.mubr.bf16.mxu0 %v907
    %2629 = vmatmul.mubr.bf16.gmra.mrb[0].mxu0 %v843
    %v2630 = vpop.f32.mrb[0].mxu0
    %v2631 = vadd.f32 %v2583, %v2630
    %v2632 = vpop.f32.mrb[0].mxu0
    %v2633 = vpop.f32.mrb[0].mxu0
    %v2634 = vadd.f32 %v2586, %v2633
    %v2635 = vpop.f32.mrb[0].mxu0
    %2636 = vmatprep.mubr.bf16.mxu0 %v908
    %2637 = vmatmul.mubr.bf16.gmra.mrb[0].mxu0 %v844
    %v2638 = vpop.f32.mrb[0].mxu0
    %v2639 = vadd.f32 %v2591, %v2638
    %v2640 = vpop.f32.mrb[0].mxu0
    %v2641 = vpop.f32.mrb[0].mxu0
    %v2642 = vpop.f32.mrb[0].mxu0
    %2643 = vdwg.mxu0
    %2644 = vmatprep.subr.bf16.mxu0 0
    %2645 = vmatpush1.bf16.msra.mxu0 %v2260
    %2646 = vmatprep.subr.bf16.mxu0 0
    %2647 = vmatpush1.bf16.msra.mxu0 %v2261
    %2648 = vmatprep.subr.bf16.mxu0 0
    %2649 = vmatpush1.bf16.msra.mxu0 %v2262
    %2650 = vmatprep.subr.bf16.mxu0 0
    %2651 = vmatpush1.bf16.msra.mxu0 %v2263
    %2652 = vmatprep.subr.bf16.mxu0 0
    %2653 = vmatpush1.bf16.msra.mxu0 %v2264
    %2654 = vmatprep.subr.bf16.mxu0 0
    %2655 = vmatpush1.bf16.msra.mxu0 %v2265
    %2656 = vmatprep.subr.bf16.mxu0 0
    %2657 = vmatpush1.bf16.msra.mxu0 %v2266
    %2658 = vmatprep.subr.bf16.mxu0 0
    %2659 = vmatpush1.bf16.msra.mxu0 %v2267
    %2660 = vmatprep.subr.bf16.mxu0 0
    %2661 = vmatpush1.bf16.msra.mxu0 %v2268
    %2662 = vmatprep.subr.bf16.mxu0 0
    %2663 = vmatpush1.bf16.msra.mxu0 %v2269
    %2664 = vmatprep.subr.bf16.mxu0 0
    %2665 = vmatpush1.bf16.msra.mxu0 %v2270
    %2666 = vmatprep.subr.bf16.mxu0 0
    %2667 = vmatpush1.bf16.msra.mxu0 %v2271
    %2668 = vmatprep.subr.bf16.mxu0 0
    %2669 = vmatpush1.bf16.msra.mxu0 %v2272
    %2670 = vmatprep.subr.bf16.mxu0 0
    %2671 = vmatpush1.bf16.msra.mxu0 %v2273
    %2672 = vmatprep.subr.bf16.mxu0 0
    %2673 = vmatpush1.bf16.msra.mxu0 %v2274
    %2674 = vmatprep.subr.bf16.mxu0 0
    %2675 = vmatpush1.bf16.msra.mxu0 %v2275
    %2676 = vmatprep.mubr.bf16.mxu0 %v1035
    %2677 = vmatmul.mubr.bf16.gmra.mrb[0].mxu0 %v971
    %v2678 = vpop.f32.mrb[0].mxu0
    %v2679 = vadd.f32 %v2631, %v2678
    %v2680 = vpop.f32.mrb[0].mxu0
    %v2681 = vpop.f32.mrb[0].mxu0
    %v2682 = vadd.f32 %v2634, %v2681
    %v2683 = vpop.f32.mrb[0].mxu0
    %2684 = vmatprep.mubr.bf16.mxu0 %v1036
    %2685 = vmatmul.mubr.bf16.gmra.mrb[0].mxu0 %v972
    %v2686 = vpop.f32.mrb[0].mxu0
    %v2687 = vadd.f32 %v2639, %v2686
    %v2688 = vpop.f32.mrb[0].mxu0
    %v2689 = vpop.f32.mrb[0].mxu0
    %v2690 = vpop.f32.mrb[0].mxu0
    %2691 = vdwg.mxu0
    %2692 = vmatprep.subr.bf16.mxu0 0
    %2693 = vmatpush1.bf16.msra.mxu0 %v2276
    %2694 = vmatprep.subr.bf16.mxu0 0
    %2695 = vmatpush1.bf16.msra.mxu0 %v2277
    %2696 = vmatprep.subr.bf16.mxu0 0
    %2697 = vmatpush1.bf16.msra.mxu0 %v2278
    %2698 = vmatprep.subr.bf16.mxu0 0
    %2699 = vmatpush1.bf16.msra.mxu0 %v2279
    %2700 = vmatprep.subr.bf16.mxu0 0
    %2701 = vmatpush1.bf16.msra.mxu0 %v2280
    %2702 = vmatprep.subr.bf16.mxu0 0
    %2703 = vmatpush1.bf16.msra.mxu0 %v2281
    %2704 = vmatprep.subr.bf16.mxu0 0
    %2705 = vmatpush1.bf16.msra.mxu0 %v2282
    %2706 = vmatprep.subr.bf16.mxu0 0
    %2707 = vmatpush1.bf16.msra.mxu0 %v2283
    %2708 = vmatprep.subr.bf16.mxu0 0
    %2709 = vmatpush1.bf16.msra.mxu0 %v2284
    %2710 = vmatprep.subr.bf16.mxu0 0
    %2711 = vmatpush1.bf16.msra.mxu0 %v2285
    %2712 = vmatprep.subr.bf16.mxu0 0
    %2713 = vmatpush1.bf16.msra.mxu0 %v2286
    %2714 = vmatprep.subr.bf16.mxu0 0
    %2715 = vmatpush1.bf16.msra.mxu0 %v2287
    %2716 = vmatprep.subr.bf16.mxu0 0
    %2717 = vmatpush1.bf16.msra.mxu0 %v2288
    %2718 = vmatprep.subr.bf16.mxu0 0
    %2719 = vmatpush1.bf16.msra.mxu0 %v2289
    %2720 = vmatprep.subr.bf16.mxu0 0
    %2721 = vmatpush1.bf16.msra.mxu0 %v2290
    %2722 = vmatprep.subr.bf16.mxu0 0
    %2723 = vmatpush1.bf16.msra.mxu0 %v2291
    %2724 = vmatprep.mubr.bf16.mxu0 %v1163
    %2725 = vmatmul.mubr.bf16.gmra.mrb[0].mxu0 %v1099
    %v2726 = vpop.f32.mrb[0].mxu0
    %v2727 = vadd.f32 %v2679, %v2726
    %v2728 = vpop.f32.mrb[0].mxu0
    %v2729 = vpop.f32.mrb[0].mxu0
    %v2730 = vadd.f32 %v2682, %v2729
    %v2731 = vpop.f32.mrb[0].mxu0
    %2732 = vmatprep.mubr.bf16.mxu0 %v1164
    %2733 = vmatmul.mubr.bf16.gmra.mrb[0].mxu0 %v1100
    %v2734 = vpop.f32.mrb[0].mxu0
    %v2735 = vadd.f32 %v2687, %v2734
    %v2736 = vpop.f32.mrb[0].mxu0
    %v2737 = vpop.f32.mrb[0].mxu0
    %v2738 = vpop.f32.mrb[0].mxu0
    %2739 = vdwg.mxu0
    %2740 = vmatprep.subr.bf16.mxu0 0
    %2741 = vmatpush1.bf16.msra.mxu0 %v2292
    %2742 = vmatprep.subr.bf16.mxu0 0
    %2743 = vmatpush1.bf16.msra.mxu0 %v2293
    %2744 = vmatprep.subr.bf16.mxu0 0
    %2745 = vmatpush1.bf16.msra.mxu0 %v2294
    %2746 = vmatprep.subr.bf16.mxu0 0
    %2747 = vmatpush1.bf16.msra.mxu0 %v2295
    %2748 = vmatprep.subr.bf16.mxu0 0
    %2749 = vmatpush1.bf16.msra.mxu0 %v2296
    %2750 = vmatprep.subr.bf16.mxu0 0
    %2751 = vmatpush1.bf16.msra.mxu0 %v2297
    %2752 = vmatprep.subr.bf16.mxu0 0
    %2753 = vmatpush1.bf16.msra.mxu0 %v2298
    %2754 = vmatprep.subr.bf16.mxu0 0
    %2755 = vmatpush1.bf16.msra.mxu0 %v2299
    %2756 = vmatprep.subr.bf16.mxu0 0
    %2757 = vmatpush1.bf16.msra.mxu0 %v2300
    %2758 = vmatprep.subr.bf16.mxu0 0
    %2759 = vmatpush1.bf16.msra.mxu0 %v2301
    %2760 = vmatprep.subr.bf16.mxu0 0
    %2761 = vmatpush1.bf16.msra.mxu0 %v2302
    %2762 = vmatprep.subr.bf16.mxu0 0
    %2763 = vmatpush1.bf16.msra.mxu0 %v2303
    %2764 = vmatprep.subr.bf16.mxu0 0
    %2765 = vmatpush1.bf16.msra.mxu0 %v2304
    %2766 = vmatprep.subr.bf16.mxu0 0
    %2767 = vmatpush1.bf16.msra.mxu0 %v2305
    %2768 = vmatprep.subr.bf16.mxu0 0
    %2769 = vmatpush1.bf16.msra.mxu0 %v2306
    %2770 = vmatprep.subr.bf16.mxu0 0
    %2771 = vmatpush1.bf16.msra.mxu0 %v2307
    %2772 = vmatprep.mubr.bf16.mxu0 %v1291
    %2773 = vmatmul.mubr.bf16.gmra.mrb[0].mxu0 %v1227
    %v2774 = vpop.f32.mrb[0].mxu0
    %v2775 = vadd.f32 %v2727, %v2774
    %v2776 = vpop.f32.mrb[0].mxu0
    %v2777 = vpop.f32.mrb[0].mxu0
    %v2778 = vadd.f32 %v2730, %v2777
    %v2779 = vpop.f32.mrb[0].mxu0
    %2780 = vmatprep.mubr.bf16.mxu0 %v1292
    %2781 = vmatmul.mubr.bf16.gmra.mrb[0].mxu0 %v1228
    %v2782 = vpop.f32.mrb[0].mxu0
    %v2783 = vadd.f32 %v2735, %v2782
    %v2784 = vpop.f32.mrb[0].mxu0
    %v2785 = vpop.f32.mrb[0].mxu0
    %v2786 = vpop.f32.mrb[0].mxu0
    %2787 = vdwg.mxu0
    %2788 = vmatprep.subr.bf16.mxu0 0
    %2789 = vmatpush1.bf16.msra.mxu0 %v2308
    %2790 = vmatprep.subr.bf16.mxu0 0
    %2791 = vmatpush1.bf16.msra.mxu0 %v2309
    %2792 = vmatprep.subr.bf16.mxu0 0
    %2793 = vmatpush1.bf16.msra.mxu0 %v2310
    %2794 = vmatprep.subr.bf16.mxu0 0
    %2795 = vmatpush1.bf16.msra.mxu0 %v2311
    %2796 = vmatprep.subr.bf16.mxu0 0
    %2797 = vmatpush1.bf16.msra.mxu0 %v2312
    %2798 = vmatprep.subr.bf16.mxu0 0
    %2799 = vmatpush1.bf16.msra.mxu0 %v2313
    %2800 = vmatprep.subr.bf16.mxu0 0
    %2801 = vmatpush1.bf16.msra.mxu0 %v2314
    %2802 = vmatprep.subr.bf16.mxu0 0
    %2803 = vmatpush1.bf16.msra.mxu0 %v2315
    %2804 = vmatprep.subr.bf16.mxu0 0
    %2805 = vmatpush1.bf16.msra.mxu0 %v2316
    %2806 = vmatprep.subr.bf16.mxu0 0
    %2807 = vmatpush1.bf16.msra.mxu0 %v2317
    %2808 = vmatprep.subr.bf16.mxu0 0
    %2809 = vmatpush1.bf16.msra.mxu0 %v2318
    %2810 = vmatprep.subr.bf16.mxu0 0
    %2811 = vmatpush1.bf16.msra.mxu0 %v2319
    %2812 = vmatprep.subr.bf16.mxu0 0
    %2813 = vmatpush1.bf16.msra.mxu0 %v2320
    %2814 = vmatprep.subr.bf16.mxu0 0
    %2815 = vmatpush1.bf16.msra.mxu0 %v2321
    %2816 = vmatprep.subr.bf16.mxu0 0
    %2817 = vmatpush1.bf16.msra.mxu0 %v2322
    %2818 = vmatprep.subr.bf16.mxu0 0
    %2819 = vmatpush1.bf16.msra.mxu0 %v2323
    %2820 = vmatprep.mubr.bf16.mxu0 %v1419
    %2821 = vmatmul.mubr.bf16.gmra.mrb[0].mxu0 %v1355
    %v2822 = vpop.f32.mrb[0].mxu0
    %v2823 = vadd.f32 %v2775, %v2822
    %v2824 = vpop.f32.mrb[0].mxu0
    %v2825 = vpop.f32.mrb[0].mxu0
    %v2826 = vadd.f32 %v2778, %v2825
    %v2827 = vpop.f32.mrb[0].mxu0
    %2828 = vmatprep.mubr.bf16.mxu0 %v1420
    %2829 = vmatmul.mubr.bf16.gmra.mrb[0].mxu0 %v1356
    %v2830 = vpop.f32.mrb[0].mxu0
    %v2831 = vadd.f32 %v2783, %v2830
    %v2832 = vpop.f32.mrb[0].mxu0
    %v2833 = vpop.f32.mrb[0].mxu0
    %v2834 = vpop.f32.mrb[0].mxu0
    %2835 = vdwg.mxu0
    %v2836 = vmax.f32 %v2823, 0.0
    %v2837 = vmax.f32 %v2826, 0.0
    %v2838 = vmax.f32 %v2831, 0.0
    %v2839 = vpack.c.bf16 %v2837, %v2836
    %v2840 = vpack.c.bf16 %v2838, %v2838
    %v2841 = vld [vmem:[%s6] sm:$0x1]
    %vm2842 = vcmask 195584
    %v2844 = vsel %vm2842, %v2841, 0
    %vm2846 = vcmask 1043456
    %v2848 = vsel %vm2846, %v2840, 0
    %2850 = vmatprep.subr.bf16.mxu0 0
    %2851 = vmatpush1.bf16.msra.mxu0 %v2839
    %2852 = vmatprep.subr.bf16.mxu0 0
    %2853 = vmatpush1.bf16.msra.mxu0 %v2848
    %2854 = vmatprep.subr.bf16.mxu0 0
    %2855 = vmatpush1.bf16.msra.mxu0 0
    %2856 = vmatprep.subr.bf16.mxu0 0
    %2857 = vmatpush1.bf16.msra.mxu0 0
    %2858 = vmatprep.subr.bf16.mxu0 0
    %2859 = vmatpush1.bf16.msra.mxu0 0
    %2860 = vmatprep.subr.bf16.mxu0 0
    %2861 = vmatpush1.bf16.msra.mxu0 0
    %2862 = vmatprep.subr.bf16.mxu0 0
    %2863 = vmatpush1.bf16.msra.mxu0 0
    %2864 = vmatprep.subr.bf16.mxu0 0
    %2865 = vmatpush1.bf16.msra.mxu0 0
    %2866 = vmatprep.subr.bf16.mxu0 0
    %2867 = vmatpush1.bf16.msra.mxu0 0
    %2868 = vmatprep.subr.bf16.mxu0 0
    %2869 = vmatpush1.bf16.msra.mxu0 0
    %2870 = vmatprep.subr.bf16.mxu0 0
    %2871 = vmatpush1.bf16.msra.mxu0 0
    %2872 = vmatprep.subr.bf16.mxu0 0
    %2873 = vmatpush1.bf16.msra.mxu0 0
    %2874 = vmatprep.subr.bf16.mxu0 0
    %2875 = vmatpush1.bf16.msra.mxu0 0
    %2876 = vmatprep.subr.bf16.mxu0 0
    %2877 = vmatpush1.bf16.msra.mxu0 0
    %2878 = vmatprep.subr.bf16.mxu0 0
    %2879 = vmatpush1.bf16.msra.mxu0 0
    %2880 = vmatprep.subr.bf16.mxu0 0
    %2881 = vmatpush1.bf16.msra.mxu0 0
    %2882 = vmatprep.mubr.bf16.mxu0 0
    %2883 = vmatmul.mubr.bf16.gmra.mrb[0].mxu0 %v2844
    %v2884 = vpop.f32.mrb[0].mxu0
    %v2885 = vadd.f32 0.0, %v2884
    %v2886 = vpop.f32.mrb[0].mxu0
    %v2887 = vpop.f32.mrb[0].mxu0
    %v2888 = vpop.f32.mrb[0].mxu0
    %2889 = vdwg.mxu0
    %v2890 = vpack.c.bf16 %v2885, %v2885
    %s2891 = scalar_lea.vmem %s6, 1
    %v2892 = vld [vmem:[%s2891] sm:$0x1]
    %v2894 = vsel %vm2842, %v2892, 0
    %2896 = vmatprep.subr.bf16.mxu0 0
    %2897 = vmatpush1.bf16.msra.mxu0 %v2839
    %2898 = vmatprep.subr.bf16.mxu0 0
    %2899 = vmatpush1.bf16.msra.mxu0 %v2848
    %2900 = vmatprep.subr.bf16.mxu0 0
    %2901 = vmatpush1.bf16.msra.mxu0 0
    %2902 = vmatprep.subr.bf16.mxu0 0
    %2903 = vmatpush1.bf16.msra.mxu0 0
    %2904 = vmatprep.subr.bf16.mxu0 0
    %2905 = vmatpush1.bf16.msra.mxu0 0
    %2906 = vmatprep.subr.bf16.mxu0 0
    %2907 = vmatpush1.bf16.msra.mxu0 0
    %2908 = vmatprep.subr.bf16.mxu0 0
    %2909 = vmatpush1.bf16.msra.mxu0 0
    %2910 = vmatprep.subr.bf16.mxu0 0
    %2911 = vmatpush1.bf16.msra.mxu0 0
    %2912 = vmatprep.subr.bf16.mxu0 0
    %2913 = vmatpush1.bf16.msra.mxu0 0
    %2914 = vmatprep.subr.bf16.mxu0 0
    %2915 = vmatpush1.bf16.msra.mxu0 0
    %2916 = vmatprep.subr.bf16.mxu0 0
    %2917 = vmatpush1.bf16.msra.mxu0 0
    %2918 = vmatprep.subr.bf16.mxu0 0
    %2919 = vmatpush1.bf16.msra.mxu0 0
    %2920 = vmatprep.subr.bf16.mxu0 0
    %2921 = vmatpush1.bf16.msra.mxu0 0
    %2922 = vmatprep.subr.bf16.mxu0 0
    %2923 = vmatpush1.bf16.msra.mxu0 0
    %2924 = vmatprep.subr.bf16.mxu0 0
    %2925 = vmatpush1.bf16.msra.mxu0 0
    %2926 = vmatprep.subr.bf16.mxu0 0
    %2927 = vmatpush1.bf16.msra.mxu0 0
    %2928 = vmatprep.mubr.bf16.mxu0 0
    %2929 = vmatmul.mubr.bf16.gmra.mrb[0].mxu0 %v2894
    %v2930 = vpop.f32.mrb[0].mxu0
    %v2931 = vadd.f32 0.0, %v2930
    %v2932 = vpop.f32.mrb[0].mxu0
    %v2933 = vpop.f32.mrb[0].mxu0
    %v2934 = vpop.f32.mrb[0].mxu0
    %2935 = vdwg.mxu0
    %v2936 = vpack.c.bf16 %v2931, %v2931
    %s2937 = scalar_lea.vmem %s6, 2
    %v2938 = vld [vmem:[%s2937] sm:$0x1]
    %v2940 = vsel %vm2842, %v2938, 0
    %2942 = vmatprep.subr.bf16.mxu0 0
    %2943 = vmatpush1.bf16.msra.mxu0 %v2839
    %2944 = vmatprep.subr.bf16.mxu0 0
    %2945 = vmatpush1.bf16.msra.mxu0 %v2848
    %2946 = vmatprep.subr.bf16.mxu0 0
    %2947 = vmatpush1.bf16.msra.mxu0 0
    %2948 = vmatprep.subr.bf16.mxu0 0
    %2949 = vmatpush1.bf16.msra.mxu0 0
    %2950 = vmatprep.subr.bf16.mxu0 0
    %2951 = vmatpush1.bf16.msra.mxu0 0
    %2952 = vmatprep.subr.bf16.mxu0 0
    %2953 = vmatpush1.bf16.msra.mxu0 0
    %2954 = vmatprep.subr.bf16.mxu0 0
    %2955 = vmatpush1.bf16.msra.mxu0 0
    %2956 = vmatprep.subr.bf16.mxu0 0
    %2957 = vmatpush1.bf16.msra.mxu0 0
    %2958 = vmatprep.subr.bf16.mxu0 0
    %2959 = vmatpush1.bf16.msra.mxu0 0
    %2960 = vmatprep.subr.bf16.mxu0 0
    %2961 = vmatpush1.bf16.msra.mxu0 0
    %2962 = vmatprep.subr.bf16.mxu0 0
    %2963 = vmatpush1.bf16.msra.mxu0 0
    %2964 = vmatprep.subr.bf16.mxu0 0
    %2965 = vmatpush1.bf16.msra.mxu0 0
    %2966 = vmatprep.subr.bf16.mxu0 0
    %2967 = vmatpush1.bf16.msra.mxu0 0
    %2968 = vmatprep.subr.bf16.mxu0 0
    %2969 = vmatpush1.bf16.msra.mxu0 0
    %2970 = vmatprep.subr.bf16.mxu0 0
    %2971 = vmatpush1.bf16.msra.mxu0 0
    %2972 = vmatprep.subr.bf16.mxu0 0
    %2973 = vmatpush1.bf16.msra.mxu0 0
    %2974 = vmatprep.mubr.bf16.mxu0 0
    %2975 = vmatmul.mubr.bf16.gmra.mrb[0].mxu0 %v2940
    %v2976 = vpop.f32.mrb[0].mxu0
    %v2977 = vadd.f32 0.0, %v2976
    %v2978 = vpop.f32.mrb[0].mxu0
    %v2979 = vpop.f32.mrb[0].mxu0
    %v2980 = vpop.f32.mrb[0].mxu0
    %2981 = vdwg.mxu0
    %v2982 = vpack.c.bf16 %v2977, %v2977
    %s2983 = scalar_lea.vmem %s6, 3
    %v2984 = vld [vmem:[%s2983] sm:$0x1]
    %v2986 = vsel %vm2842, %v2984, 0
    %2988 = vmatprep.subr.bf16.mxu0 0
    %2989 = vmatpush1.bf16.msra.mxu0 %v2839
    %2990 = vmatprep.subr.bf16.mxu0 0
    %2991 = vmatpush1.bf16.msra.mxu0 %v2848
    %2992 = vmatprep.subr.bf16.mxu0 0
    %2993 = vmatpush1.bf16.msra.mxu0 0
    %2994 = vmatprep.subr.bf16.mxu0 0
    %2995 = vmatpush1.bf16.msra.mxu0 0
    %2996 = vmatprep.subr.bf16.mxu0 0
    %2997 = vmatpush1.bf16.msra.mxu0 0
    %2998 = vmatprep.subr.bf16.mxu0 0
    %2999 = vmatpush1.bf16.msra.mxu0 0
    %3000 = vmatprep.subr.bf16.mxu0 0
    %3001 = vmatpush1.bf16.msra.mxu0 0
    %3002 = vmatprep.subr.bf16.mxu0 0
    %3003 = vmatpush1.bf16.msra.mxu0 0
    %3004 = vmatprep.subr.bf16.mxu0 0
    %3005 = vmatpush1.bf16.msra.mxu0 0
    %3006 = vmatprep.subr.bf16.mxu0 0
    %3007 = vmatpush1.bf16.msra.mxu0 0
    %3008 = vmatprep.subr.bf16.mxu0 0
    %3009 = vmatpush1.bf16.msra.mxu0 0
    %3010 = vmatprep.subr.bf16.mxu0 0
    %3011 = vmatpush1.bf16.msra.mxu0 0
    %3012 = vmatprep.subr.bf16.mxu0 0
    %3013 = vmatpush1.bf16.msra.mxu0 0
    %3014 = vmatprep.subr.bf16.mxu0 0
    %3015 = vmatpush1.bf16.msra.mxu0 0
    %3016 = vmatprep.subr.bf16.mxu0 0
    %3017 = vmatpush1.bf16.msra.mxu0 0
    %3018 = vmatprep.subr.bf16.mxu0 0
    %3019 = vmatpush1.bf16.msra.mxu0 0
    %3020 = vmatprep.mubr.bf16.mxu0 0
    %3021 = vmatmul.mubr.bf16.gmra.mrb[0].mxu0 %v2986
    %v3022 = vpop.f32.mrb[0].mxu0
    %v3023 = vadd.f32 0.0, %v3022
    %v3024 = vpop.f32.mrb[0].mxu0
    %v3025 = vpop.f32.mrb[0].mxu0
    %v3026 = vpop.f32.mrb[0].mxu0
    %3027 = vdwg.mxu0
    %v3028 = vpack.c.bf16 %v3023, %v3023
    %s3029 = scalar_lea.vmem %s6, 4
    %v3030 = vld [vmem:[%s3029] sm:$0x1]
    %v3032 = vsel %vm2842, %v3030, 0
    %3034 = vmatprep.subr.bf16.mxu0 0
    %3035 = vmatpush1.bf16.msra.mxu0 %v2839
    %3036 = vmatprep.subr.bf16.mxu0 0
    %3037 = vmatpush1.bf16.msra.mxu0 %v2848
    %3038 = vmatprep.subr.bf16.mxu0 0
    %3039 = vmatpush1.bf16.msra.mxu0 0
    %3040 = vmatprep.subr.bf16.mxu0 0
    %3041 = vmatpush1.bf16.msra.mxu0 0
    %3042 = vmatprep.subr.bf16.mxu0 0
    %3043 = vmatpush1.bf16.msra.mxu0 0
    %3044 = vmatprep.subr.bf16.mxu0 0
    %3045 = vmatpush1.bf16.msra.mxu0 0
    %3046 = vmatprep.subr.bf16.mxu0 0
    %3047 = vmatpush1.bf16.msra.mxu0 0
    %3048 = vmatprep.subr.bf16.mxu0 0
    %3049 = vmatpush1.bf16.msra.mxu0 0
    %3050 = vmatprep.subr.bf16.mxu0 0
    %3051 = vmatpush1.bf16.msra.mxu0 0
    %3052 = vmatprep.subr.bf16.mxu0 0
    %3053 = vmatpush1.bf16.msra.mxu0 0
    %3054 = vmatprep.subr.bf16.mxu0 0
    %3055 = vmatpush1.bf16.msra.mxu0 0
    %3056 = vmatprep.subr.bf16.mxu0 0
    %3057 = vmatpush1.bf16.msra.mxu0 0
    %3058 = vmatprep.subr.bf16.mxu0 0
    %3059 = vmatpush1.bf16.msra.mxu0 0
    %3060 = vmatprep.subr.bf16.mxu0 0
    %3061 = vmatpush1.bf16.msra.mxu0 0
    %3062 = vmatprep.subr.bf16.mxu0 0
    %3063 = vmatpush1.bf16.msra.mxu0 0
    %3064 = vmatprep.subr.bf16.mxu0 0
    %3065 = vmatpush1.bf16.msra.mxu0 0
    %3066 = vmatprep.mubr.bf16.mxu0 0
    %3067 = vmatmul.mubr.bf16.gmra.mrb[0].mxu0 %v3032
    %v3068 = vpop.f32.mrb[0].mxu0
    %v3069 = vadd.f32 0.0, %v3068
    %v3070 = vpop.f32.mrb[0].mxu0
    %v3071 = vpop.f32.mrb[0].mxu0
    %v3072 = vpop.f32.mrb[0].mxu0
    %3073 = vdwg.mxu0
    %v3074 = vpack.c.bf16 %v3069, %v3069
    %s3075 = scalar_lea.vmem %s6, 5
    %v3076 = vld [vmem:[%s3075] sm:$0x1]
    %v3078 = vsel %vm2842, %v3076, 0
    %3080 = vmatprep.subr.bf16.mxu0 0
    %3081 = vmatpush1.bf16.msra.mxu0 %v2839
    %3082 = vmatprep.subr.bf16.mxu0 0
    %3083 = vmatpush1.bf16.msra.mxu0 %v2848
    %3084 = vmatprep.subr.bf16.mxu0 0
    %3085 = vmatpush1.bf16.msra.mxu0 0
    %3086 = vmatprep.subr.bf16.mxu0 0
    %3087 = vmatpush1.bf16.msra.mxu0 0
    %3088 = vmatprep.subr.bf16.mxu0 0
    %3089 = vmatpush1.bf16.msra.mxu0 0
    %3090 = vmatprep.subr.bf16.mxu0 0
    %3091 = vmatpush1.bf16.msra.mxu0 0
    %3092 = vmatprep.subr.bf16.mxu0 0
    %3093 = vmatpush1.bf16.msra.mxu0 0
    %3094 = vmatprep.subr.bf16.mxu0 0
    %3095 = vmatpush1.bf16.msra.mxu0 0
    %3096 = vmatprep.subr.bf16.mxu0 0
    %3097 = vmatpush1.bf16.msra.mxu0 0
    %3098 = vmatprep.subr.bf16.mxu0 0
    %3099 = vmatpush1.bf16.msra.mxu0 0
    %3100 = vmatprep.subr.bf16.mxu0 0
    %3101 = vmatpush1.bf16.msra.mxu0 0
    %3102 = vmatprep.subr.bf16.mxu0 0
    %3103 = vmatpush1.bf16.msra.mxu0 0
    %3104 = vmatprep.subr.bf16.mxu0 0
    %3105 = vmatpush1.bf16.msra.mxu0 0
    %3106 = vmatprep.subr.bf16.mxu0 0
    %3107 = vmatpush1.bf16.msra.mxu0 0
    %3108 = vmatprep.subr.bf16.mxu0 0
    %3109 = vmatpush1.bf16.msra.mxu0 0
    %3110 = vmatprep.subr.bf16.mxu0 0
    %3111 = vmatpush1.bf16.msra.mxu0 0
    %3112 = vmatprep.mubr.bf16.mxu0 0
    %3113 = vmatmul.mubr.bf16.gmra.mrb[0].mxu0 %v3078
    %v3114 = vpop.f32.mrb[0].mxu0
    %v3115 = vadd.f32 0.0, %v3114
    %v3116 = vpop.f32.mrb[0].mxu0
    %v3117 = vpop.f32.mrb[0].mxu0
    %v3118 = vpop.f32.mrb[0].mxu0
    %3119 = vdwg.mxu0
    %v3120 = vpack.c.bf16 %v3115, %v3115
    %s3121 = scalar_lea.vmem %s6, 6
    %v3122 = vld [vmem:[%s3121] sm:$0x1]
    %v3124 = vsel %vm2842, %v3122, 0
    %3126 = vmatprep.subr.bf16.mxu0 0
    %3127 = vmatpush1.bf16.msra.mxu0 %v2839
    %3128 = vmatprep.subr.bf16.mxu0 0
    %3129 = vmatpush1.bf16.msra.mxu0 %v2848
    %3130 = vmatprep.subr.bf16.mxu0 0
    %3131 = vmatpush1.bf16.msra.mxu0 0
    %3132 = vmatprep.subr.bf16.mxu0 0
    %3133 = vmatpush1.bf16.msra.mxu0 0
    %3134 = vmatprep.subr.bf16.mxu0 0
    %3135 = vmatpush1.bf16.msra.mxu0 0
    %3136 = vmatprep.subr.bf16.mxu0 0
    %3137 = vmatpush1.bf16.msra.mxu0 0
    %3138 = vmatprep.subr.bf16.mxu0 0
    %3139 = vmatpush1.bf16.msra.mxu0 0
    %3140 = vmatprep.subr.bf16.mxu0 0
    %3141 = vmatpush1.bf16.msra.mxu0 0
    %3142 = vmatprep.subr.bf16.mxu0 0
    %3143 = vmatpush1.bf16.msra.mxu0 0
    %3144 = vmatprep.subr.bf16.mxu0 0
    %3145 = vmatpush1.bf16.msra.mxu0 0
    %3146 = vmatprep.subr.bf16.mxu0 0
    %3147 = vmatpush1.bf16.msra.mxu0 0
    %3148 = vmatprep.subr.bf16.mxu0 0
    %3149 = vmatpush1.bf16.msra.mxu0 0
    %3150 = vmatprep.subr.bf16.mxu0 0
    %3151 = vmatpush1.bf16.msra.mxu0 0
    %3152 = vmatprep.subr.bf16.mxu0 0
    %3153 = vmatpush1.bf16.msra.mxu0 0
    %3154 = vmatprep.subr.bf16.mxu0 0
    %3155 = vmatpush1.bf16.msra.mxu0 0
    %3156 = vmatprep.subr.bf16.mxu0 0
    %3157 = vmatpush1.bf16.msra.mxu0 0
    %3158 = vmatprep.mubr.bf16.mxu0 0
    %3159 = vmatmul.mubr.bf16.gmra.mrb[0].mxu0 %v3124
    %v3160 = vpop.f32.mrb[0].mxu0
    %v3161 = vadd.f32 0.0, %v3160
    %v3162 = vpop.f32.mrb[0].mxu0
    %v3163 = vpop.f32.mrb[0].mxu0
    %v3164 = vpop.f32.mrb[0].mxu0
    %3165 = vdwg.mxu0
    %v3166 = vpack.c.bf16 %v3161, %v3161
    %s3167 = scalar_lea.vmem %s6, 7
    %v3168 = vld [vmem:[%s3167] sm:$0x1]
    %v3170 = vsel %vm2842, %v3168, 0
    %3172 = vmatprep.subr.bf16.mxu0 0
    %3173 = vmatpush1.bf16.msra.mxu0 %v2839
    %3174 = vmatprep.subr.bf16.mxu0 0
    %3175 = vmatpush1.bf16.msra.mxu0 %v2848
    %3176 = vmatprep.subr.bf16.mxu0 0
    %3177 = vmatpush1.bf16.msra.mxu0 0
    %3178 = vmatprep.subr.bf16.mxu0 0
    %3179 = vmatpush1.bf16.msra.mxu0 0
    %3180 = vmatprep.subr.bf16.mxu0 0
    %3181 = vmatpush1.bf16.msra.mxu0 0
    %3182 = vmatprep.subr.bf16.mxu0 0
    %3183 = vmatpush1.bf16.msra.mxu0 0
    %3184 = vmatprep.subr.bf16.mxu0 0
    %3185 = vmatpush1.bf16.msra.mxu0 0
    %3186 = vmatprep.subr.bf16.mxu0 0
    %3187 = vmatpush1.bf16.msra.mxu0 0
    %3188 = vmatprep.subr.bf16.mxu0 0
    %3189 = vmatpush1.bf16.msra.mxu0 0
    %3190 = vmatprep.subr.bf16.mxu0 0
    %3191 = vmatpush1.bf16.msra.mxu0 0
    %3192 = vmatprep.subr.bf16.mxu0 0
    %3193 = vmatpush1.bf16.msra.mxu0 0
    %3194 = vmatprep.subr.bf16.mxu0 0
    %3195 = vmatpush1.bf16.msra.mxu0 0
    %3196 = vmatprep.subr.bf16.mxu0 0
    %3197 = vmatpush1.bf16.msra.mxu0 0
    %3198 = vmatprep.subr.bf16.mxu0 0
    %3199 = vmatpush1.bf16.msra.mxu0 0
    %3200 = vmatprep.subr.bf16.mxu0 0
    %3201 = vmatpush1.bf16.msra.mxu0 0
    %3202 = vmatprep.subr.bf16.mxu0 0
    %3203 = vmatpush1.bf16.msra.mxu0 0
    %3204 = vmatprep.mubr.bf16.mxu0 0
    %3205 = vmatmul.mubr.bf16.gmra.mrb[0].mxu0 %v3170
    %v3206 = vpop.f32.mrb[0].mxu0
    %v3207 = vadd.f32 0.0, %v3206
    %v3208 = vpop.f32.mrb[0].mxu0
    %v3209 = vpop.f32.mrb[0].mxu0
    %v3210 = vpop.f32.mrb[0].mxu0
    %3211 = vdwg.mxu0
    %v3212 = vpack.c.bf16 %v3207, %v3207
    %s3213 = scalar_lea.vmem %s6, 8
    %v3214 = vld [vmem:[%s3213] sm:$0x1]
    %v3216 = vsel %vm2842, %v3214, 0
    %3218 = vmatprep.subr.bf16.mxu0 0
    %3219 = vmatpush1.bf16.msra.mxu0 %v2839
    %3220 = vmatprep.subr.bf16.mxu0 0
    %3221 = vmatpush1.bf16.msra.mxu0 %v2848
    %3222 = vmatprep.subr.bf16.mxu0 0
    %3223 = vmatpush1.bf16.msra.mxu0 0
    %3224 = vmatprep.subr.bf16.mxu0 0
    %3225 = vmatpush1.bf16.msra.mxu0 0
    %3226 = vmatprep.subr.bf16.mxu0 0
    %3227 = vmatpush1.bf16.msra.mxu0 0
    %3228 = vmatprep.subr.bf16.mxu0 0
    %3229 = vmatpush1.bf16.msra.mxu0 0
    %3230 = vmatprep.subr.bf16.mxu0 0
    %3231 = vmatpush1.bf16.msra.mxu0 0
    %3232 = vmatprep.subr.bf16.mxu0 0
    %3233 = vmatpush1.bf16.msra.mxu0 0
    %3234 = vmatprep.subr.bf16.mxu0 0
    %3235 = vmatpush1.bf16.msra.mxu0 0
    %3236 = vmatprep.subr.bf16.mxu0 0
    %3237 = vmatpush1.bf16.msra.mxu0 0
    %3238 = vmatprep.subr.bf16.mxu0 0
    %3239 = vmatpush1.bf16.msra.mxu0 0
    %3240 = vmatprep.subr.bf16.mxu0 0
    %3241 = vmatpush1.bf16.msra.mxu0 0
    %3242 = vmatprep.subr.bf16.mxu0 0
    %3243 = vmatpush1.bf16.msra.mxu0 0
    %3244 = vmatprep.subr.bf16.mxu0 0
    %3245 = vmatpush1.bf16.msra.mxu0 0
    %3246 = vmatprep.subr.bf16.mxu0 0
    %3247 = vmatpush1.bf16.msra.mxu0 0
    %3248 = vmatprep.subr.bf16.mxu0 0
    %3249 = vmatpush1.bf16.msra.mxu0 0
    %3250 = vmatprep.mubr.bf16.mxu0 0
    %3251 = vmatmul.mubr.bf16.gmra.mrb[0].mxu0 %v3216
    %v3252 = vpop.f32.mrb[0].mxu0
    %v3253 = vadd.f32 0.0, %v3252
    %v3254 = vpop.f32.mrb[0].mxu0
    %v3255 = vpop.f32.mrb[0].mxu0
    %v3256 = vpop.f32.mrb[0].mxu0
    %3257 = vdwg.mxu0
    %v3258 = vpack.c.bf16 %v3253, %v3253
    %v3259 = vld [vmem:[%s7] sm:$0xf]
    %v3260 = vld [vmem:[%s7 + $0x4] sm:$0xf]
    %v3261 = vld [vmem:[%s7 + $0x8] sm:$0xf]
    %v3262 = vld [vmem:[%s7 + $0xc] sm:$0xf]
    %v3263 = vld [vmem:[%s7 + $0x10] sm:$0xf]
    %v3264 = vld [vmem:[%s7 + $0x14] sm:$0xf]
    %v3265 = vld [vmem:[%s7 + $0x18] sm:$0xf]
    %v3266 = vld [vmem:[%s7 + $0x1c] sm:$0xf]
    %v3267 = vld [vmem:[%s7 + $0x20] sm:$0xf]
    %v3268 = vld [vmem:[%s7 + $0x24] sm:$0xf]
    %v3269 = vld [vmem:[%s7 + $0x28] sm:$0xf]
    %v3270 = vld [vmem:[%s7 + $0x2c] sm:$0xf]
    %v3271 = vld [vmem:[%s7 + $0x30] sm:$0xf]
    %v3272 = vld [vmem:[%s7 + $0x34] sm:$0xf]
    %v3273 = vld [vmem:[%s7 + $0x38] sm:$0xf]
    %v3274 = vld [vmem:[%s7 + $0x3c] sm:$0xf]
    %v3275 = vld [vmem:[%s7 + $0x40] sm:$0xf]
    %v3276 = vld [vmem:[%s7 + $0x44] sm:$0xf]
    %v3277 = vld [vmem:[%s7 + $0x48] sm:$0xf]
    %v3278 = vld [vmem:[%s7 + $0x4c] sm:$0xf]
    %v3279 = vld [vmem:[%s7 + $0x50] sm:$0xf]
    %v3280 = vld [vmem:[%s7 + $0x54] sm:$0xf]
    %v3281 = vld [vmem:[%s7 + $0x58] sm:$0xf]
    %v3282 = vld [vmem:[%s7 + $0x5c] sm:$0xf]
    %v3283 = vld [vmem:[%s7 + $0x60] sm:$0xf]
    %v3284 = vld [vmem:[%s7 + $0x64] sm:$0xf]
    %v3285 = vld [vmem:[%s7 + $0x68] sm:$0xf]
    %v3286 = vld [vmem:[%s7 + $0x6c] sm:$0xf]
    %v3287 = vld [vmem:[%s7 + $0x70] sm:$0xf]
    %v3288 = vld [vmem:[%s7 + $0x74] sm:$0xf]
    %v3289 = vld [vmem:[%s7 + $0x78] sm:$0xf]
    %v3290 = vld [vmem:[%s7 + $0x7c] sm:$0xf]
    %v3291 = vld [vmem:[%s7 + $0x80] sm:$0xf]
    %v3292 = vld [vmem:[%s7 + $0x84] sm:$0xf]
    %v3293 = vld [vmem:[%s7 + $0x88] sm:$0xf]
    %v3294 = vld [vmem:[%s7 + $0x8c] sm:$0xf]
    %v3295 = vld [vmem:[%s7 + $0x90] sm:$0xf]
    %v3296 = vld [vmem:[%s7 + $0x94] sm:$0xf]
    %v3297 = vld [vmem:[%s7 + $0x98] sm:$0xf]
    %v3298 = vld [vmem:[%s7 + $0x9c] sm:$0xf]
    %v3299 = vld [vmem:[%s7 + $0xa0] sm:$0xf]
    %v3300 = vld [vmem:[%s7 + $0xa4] sm:$0xf]
    %v3301 = vld [vmem:[%s7 + $0xa8] sm:$0xf]
    %v3302 = vld [vmem:[%s7 + $0xac] sm:$0xf]
    %v3303 = vld [vmem:[%s7 + $0xb0] sm:$0xf]
    %v3304 = vld [vmem:[%s7 + $0xb4] sm:$0xf]
    %v3305 = vld [vmem:[%s7 + $0xb8] sm:$0xf]
    %v3306 = vld [vmem:[%s7 + $0xbc] sm:$0xf]
    %v3307 = vld [vmem:[%s7 + $0xc0] sm:$0xf]
    %v3308 = vld [vmem:[%s7 + $0xc4] sm:$0xf]
    %v3309 = vld [vmem:[%s7 + $0xc8] sm:$0xf]
    %v3310 = vld [vmem:[%s7 + $0xcc] sm:$0xf]
    %v3311 = vld [vmem:[%s7 + $0xd0] sm:$0xf]
    %v3312 = vld [vmem:[%s7 + $0xd4] sm:$0xf]
    %v3313 = vld [vmem:[%s7 + $0xd8] sm:$0xf]
    %v3314 = vld [vmem:[%s7 + $0xdc] sm:$0xf]
    %v3315 = vld [vmem:[%s7 + $0xe0] sm:$0xf]
    %v3316 = vld [vmem:[%s7 + $0xe4] sm:$0xf]
    %v3317 = vld [vmem:[%s7 + $0xe8] sm:$0xf]
    %v3318 = vld [vmem:[%s7 + $0xec] sm:$0xf]
    %v3319 = vld [vmem:[%s7 + $0xf0] sm:$0xf]
    %v3320 = vld [vmem:[%s7 + $0xf4] sm:$0xf]
    %v3321 = vld [vmem:[%s7 + $0xf8] sm:$0xf]
    %v3322 = vld [vmem:[%s7 + $0xfc] sm:$0xf]
    %v3323 = vld [vmem:[%s7 + $0x100] sm:$0xf]
    %v3324 = vld [vmem:[%s7 + $0x104] sm:$0xf]
    %v3325 = vld [vmem:[%s7 + $0x108] sm:$0xf]
    %v3326 = vld [vmem:[%s7 + $0x10c] sm:$0xf]
    %v3327 = vld [vmem:[%s7 + $0x110] sm:$0xf]
    %v3328 = vld [vmem:[%s7 + $0x114] sm:$0xf]
    %v3329 = vld [vmem:[%s7 + $0x118] sm:$0xf]
    %v3330 = vld [vmem:[%s7 + $0x11c] sm:$0xf]
    %v3331 = vld [vmem:[%s7 + $0x120] sm:$0xf]
    %v3332 = vld [vmem:[%s7 + $0x124] sm:$0xf]
    %v3333 = vld [vmem:[%s7 + $0x128] sm:$0xf]
    %v3334 = vld [vmem:[%s7 + $0x12c] sm:$0xf]
    %v3335 = vld [vmem:[%s7 + $0x130] sm:$0xf]
    %v3336 = vld [vmem:[%s7 + $0x134] sm:$0xf]
    %v3337 = vld [vmem:[%s7 + $0x138] sm:$0xf]
    %v3338 = vld [vmem:[%s7 + $0x13c] sm:$0xf]
    %v3339 = vld [vmem:[%s7 + $0x140] sm:$0xf]
    %v3340 = vld [vmem:[%s7 + $0x144] sm:$0xf]
    %v3341 = vld [vmem:[%s7 + $0x148] sm:$0xf]
    %v3342 = vld [vmem:[%s7 + $0x14c] sm:$0xf]
    %v3343 = vld [vmem:[%s7 + $0x150] sm:$0xf]
    %v3344 = vld [vmem:[%s7 + $0x154] sm:$0xf]
    %v3345 = vld [vmem:[%s7 + $0x158] sm:$0xf]
    %v3346 = vld [vmem:[%s7 + $0x15c] sm:$0xf]
    %v3347 = vld [vmem:[%s7 + $0x160] sm:$0xf]
    %v3348 = vld [vmem:[%s7 + $0x164] sm:$0xf]
    %v3349 = vld [vmem:[%s7 + $0x168] sm:$0xf]
    %v3350 = vld [vmem:[%s7 + $0x16c] sm:$0xf]
    %v3351 = vld [vmem:[%s7 + $0x170] sm:$0xf]
    %v3352 = vld [vmem:[%s7 + $0x174] sm:$0xf]
    %v3353 = vld [vmem:[%s7 + $0x178] sm:$0xf]
    %v3354 = vld [vmem:[%s7 + $0x17c] sm:$0xf]
    %v3355 = vld [vmem:[%s7 + $0x180] sm:$0xf]
    %v3356 = vld [vmem:[%s7 + $0x184] sm:$0xf]
    %v3357 = vld [vmem:[%s7 + $0x188] sm:$0xf]
    %v3358 = vld [vmem:[%s7 + $0x18c] sm:$0xf]
    %v3359 = vld [vmem:[%s7 + $0x190] sm:$0xf]
    %v3360 = vld [vmem:[%s7 + $0x194] sm:$0xf]
    %v3361 = vld [vmem:[%s7 + $0x198] sm:$0xf]
    %v3362 = vld [vmem:[%s7 + $0x19c] sm:$0xf]
    %v3363 = vld [vmem:[%s7 + $0x1a0] sm:$0xf]
    %v3364 = vld [vmem:[%s7 + $0x1a4] sm:$0xf]
    %v3365 = vld [vmem:[%s7 + $0x1a8] sm:$0xf]
    %v3366 = vld [vmem:[%s7 + $0x1ac] sm:$0xf]
    %v3367 = vld [vmem:[%s7 + $0x1b0] sm:$0xf]
    %v3368 = vld [vmem:[%s7 + $0x1b4] sm:$0xf]
    %v3369 = vld [vmem:[%s7 + $0x1b8] sm:$0xf]
    %v3370 = vld [vmem:[%s7 + $0x1bc] sm:$0xf]
    %v3371 = vld [vmem:[%s7 + $0x1c0] sm:$0xf]
    %v3372 = vld [vmem:[%s7 + $0x1c4] sm:$0xf]
    %v3373 = vld [vmem:[%s7 + $0x1c8] sm:$0xf]
    %v3374 = vld [vmem:[%s7 + $0x1cc] sm:$0xf]
    %v3375 = vld [vmem:[%s7 + $0x1d0] sm:$0xf]
    %v3376 = vld [vmem:[%s7 + $0x1d4] sm:$0xf]
    %v3377 = vld [vmem:[%s7 + $0x1d8] sm:$0xf]
    %v3378 = vld [vmem:[%s7 + $0x1dc] sm:$0xf]
    %v3379 = vld [vmem:[%s7 + $0x1e0] sm:$0xf]
    %v3380 = vld [vmem:[%s7 + $0x1e4] sm:$0xf]
    %v3381 = vld [vmem:[%s7 + $0x1e8] sm:$0xf]
    %v3382 = vld [vmem:[%s7 + $0x1ec] sm:$0xf]
    %v3383 = vld [vmem:[%s7 + $0x1f0] sm:$0xf]
    %v3384 = vld [vmem:[%s7 + $0x1f4] sm:$0xf]
    %v3385 = vld [vmem:[%s7 + $0x1f8] sm:$0xf]
    %v3386 = vld [vmem:[%s7 + $0x1fc] sm:$0xf]
    %v3387 = vld [vmem:[%s7 + $0x200] sm:$0xf]
    %v3388 = vld [vmem:[%s7 + $0x204] sm:$0xf]
    %v3389 = vld [vmem:[%s7 + $0x208] sm:$0xf]
    %v3390 = vld [vmem:[%s7 + $0x20c] sm:$0xf]
    %v3391 = vld [vmem:[%s7 + $0x210] sm:$0xf]
    %v3392 = vld [vmem:[%s7 + $0x214] sm:$0xf]
    %v3393 = vld [vmem:[%s7 + $0x218] sm:$0xf]
    %v3394 = vld [vmem:[%s7 + $0x21c] sm:$0xf]
    %v3395 = vld [vmem:[%s7 + $0x220] sm:$0xf]
    %v3396 = vld [vmem:[%s7 + $0x224] sm:$0xf]
    %v3397 = vld [vmem:[%s7 + $0x228] sm:$0xf]
    %v3398 = vld [vmem:[%s7 + $0x22c] sm:$0xf]
    %v3399 = vld [vmem:[%s7 + $0x230] sm:$0xf]
    %v3400 = vld [vmem:[%s7 + $0x234] sm:$0xf]
    %v3401 = vld [vmem:[%s7 + $0x238] sm:$0xf]
    %v3402 = vld [vmem:[%s7 + $0x23c] sm:$0xf]
    %v3403 = vld [vmem:[%s8] sm:$0x1]
    %v3405 = vlaneseq
    %v3406 = vshrl.u32 %v3405, 7
    %v3407 = vsub.s32 0, %v3406
    %v3408 = vrot.slane %v3403, %v3407
    %v3554 = vunpack.c.l.b16 %v3259
    %v3555 = vunpack.c.l.b16 %v3260
    %v3556 = vunpack.c.l.b16 %v3261
    %v3557 = vunpack.c.l.b16 %v3262
    %v3558 = vunpack.c.l.b16 %v3263
    %v3559 = vunpack.c.l.b16 %v3264
    %v3560 = vunpack.c.l.b16 %v3265
    %v3561 = vunpack.c.l.b16 %v3266
    %v3562 = vunpack.c.l.b16 %v3267
    %v3563 = vunpack.c.l.b16 %v3268
    %v3564 = vunpack.c.l.b16 %v3269
    %v3565 = vunpack.c.l.b16 %v3270
    %v3566 = vunpack.c.l.b16 %v3271
    %v3567 = vunpack.c.l.b16 %v3272
    %v3568 = vunpack.c.l.b16 %v3273
    %v3569 = vunpack.c.l.b16 %v3274
    %v3570 = vunpack.c.l.b16 %v3275
    %v3571 = vunpack.c.l.b16 %v3276
    %v3572 = vunpack.c.l.b16 %v3277
    %v3573 = vunpack.c.l.b16 %v3278
    %v3574 = vunpack.c.l.b16 %v3279
    %v3575 = vunpack.c.l.b16 %v3280
    %v3576 = vunpack.c.l.b16 %v3281
    %v3577 = vunpack.c.l.b16 %v3282
    %v3578 = vunpack.c.l.b16 %v3283
    %v3579 = vunpack.c.l.b16 %v3284
    %v3580 = vunpack.c.l.b16 %v3285
    %v3581 = vunpack.c.l.b16 %v3286
    %v3582 = vunpack.c.l.b16 %v3287
    %v3583 = vunpack.c.l.b16 %v3288
    %v3584 = vunpack.c.l.b16 %v3289
    %v3585 = vunpack.c.l.b16 %v3290
    %v3586 = vunpack.c.l.b16 %v3291
    %v3587 = vunpack.c.l.b16 %v3292
    %v3588 = vunpack.c.l.b16 %v3293
    %v3589 = vunpack.c.l.b16 %v3294
    %v3590 = vunpack.c.l.b16 %v3295
    %v3591 = vunpack.c.l.b16 %v3296
    %v3592 = vunpack.c.l.b16 %v3297
    %v3593 = vunpack.c.l.b16 %v3298
    %v3594 = vunpack.c.l.b16 %v3299
    %v3595 = vunpack.c.l.b16 %v3300
    %v3596 = vunpack.c.l.b16 %v3301
    %v3597 = vunpack.c.l.b16 %v3302
    %v3598 = vunpack.c.l.b16 %v3303
    %v3599 = vunpack.c.l.b16 %v3304
    %v3600 = vunpack.c.l.b16 %v3305
    %v3601 = vunpack.c.l.b16 %v3306
    %v3602 = vunpack.c.l.b16 %v3307
    %v3603 = vunpack.c.l.b16 %v3308
    %v3604 = vunpack.c.l.b16 %v3309
    %v3605 = vunpack.c.l.b16 %v3310
    %v3606 = vunpack.c.l.b16 %v3311
    %v3607 = vunpack.c.l.b16 %v3312
    %v3608 = vunpack.c.l.b16 %v3313
    %v3609 = vunpack.c.l.b16 %v3314
    %v3610 = vunpack.c.l.b16 %v3315
    %v3611 = vunpack.c.l.b16 %v3316
    %v3612 = vunpack.c.l.b16 %v3317
    %v3613 = vunpack.c.l.b16 %v3318
    %v3614 = vunpack.c.l.b16 %v3319
    %v3615 = vunpack.c.l.b16 %v3320
    %v3616 = vunpack.c.l.b16 %v3321
    %v3617 = vunpack.c.l.b16 %v3322
    %v3618 = vunpack.c.l.b16 %v3323
    %v3619 = vunpack.c.l.b16 %v3324
    %v3620 = vunpack.c.l.b16 %v3325
    %v3621 = vunpack.c.l.b16 %v3326
    %v3622 = vunpack.c.l.b16 %v3327
    %v3623 = vunpack.c.l.b16 %v3328
    %v3624 = vunpack.c.l.b16 %v3329
    %v3625 = vunpack.c.l.b16 %v3330
    %v3626 = vunpack.c.l.b16 %v3331
    %v3627 = vunpack.c.l.b16 %v3332
    %v3628 = vunpack.c.l.b16 %v3333
    %v3629 = vunpack.c.l.b16 %v3334
    %v3630 = vunpack.c.l.b16 %v3335
    %v3631 = vunpack.c.l.b16 %v3336
    %v3632 = vunpack.c.l.b16 %v3337
    %v3633 = vunpack.c.l.b16 %v3338
    %v3634 = vunpack.c.l.b16 %v3339
    %v3635 = vunpack.c.l.b16 %v3340
    %v3636 = vunpack.c.l.b16 %v3341
    %v3637 = vunpack.c.l.b16 %v3342
    %v3638 = vunpack.c.l.b16 %v3343
    %v3639 = vunpack.c.l.b16 %v3344
    %v3640 = vunpack.c.l.b16 %v3345
    %v3641 = vunpack.c.l.b16 %v3346
    %v3642 = vunpack.c.l.b16 %v3347
    %v3643 = vunpack.c.l.b16 %v3348
    %v3644 = vunpack.c.l.b16 %v3349
    %v3645 = vunpack.c.l.b16 %v3350
    %v3646 = vunpack.c.l.b16 %v3351
    %v3647 = vunpack.c.l.b16 %v3352
    %v3648 = vunpack.c.l.b16 %v3353
    %v3649 = vunpack.c.l.b16 %v3354
    %v3650 = vunpack.c.l.b16 %v3355
    %v3651 = vunpack.c.l.b16 %v3356
    %v3652 = vunpack.c.l.b16 %v3357
    %v3653 = vunpack.c.l.b16 %v3358
    %v3654 = vunpack.c.l.b16 %v3359
    %v3655 = vunpack.c.l.b16 %v3360
    %v3656 = vunpack.c.l.b16 %v3361
    %v3657 = vunpack.c.l.b16 %v3362
    %v3658 = vunpack.c.l.b16 %v3363
    %v3659 = vunpack.c.l.b16 %v3364
    %v3660 = vunpack.c.l.b16 %v3365
    %v3661 = vunpack.c.l.b16 %v3366
    %v3662 = vunpack.c.l.b16 %v3367
    %v3663 = vunpack.c.l.b16 %v3368
    %v3664 = vunpack.c.l.b16 %v3369
    %v3665 = vunpack.c.l.b16 %v3370
    %v3666 = vunpack.c.l.b16 %v3371
    %v3667 = vunpack.c.l.b16 %v3372
    %v3668 = vunpack.c.l.b16 %v3373
    %v3669 = vunpack.c.l.b16 %v3374
    %v3670 = vunpack.c.l.b16 %v3375
    %v3671 = vunpack.c.l.b16 %v3376
    %v3672 = vunpack.c.l.b16 %v3377
    %v3673 = vunpack.c.l.b16 %v3378
    %v3674 = vunpack.c.l.b16 %v3379
    %v3675 = vunpack.c.l.b16 %v3380
    %v3676 = vunpack.c.l.b16 %v3381
    %v3677 = vunpack.c.l.b16 %v3382
    %v3678 = vunpack.c.l.b16 %v3383
    %v3679 = vunpack.c.l.b16 %v3384
    %v3680 = vunpack.c.l.b16 %v3385
    %v3681 = vunpack.c.l.b16 %v3386
    %v3682 = vunpack.c.l.b16 %v3387
    %v3683 = vunpack.c.l.b16 %v3388
    %v3684 = vunpack.c.l.b16 %v3389
    %v3685 = vunpack.c.l.b16 %v3390
    %v3686 = vunpack.c.l.b16 %v3391
    %v3687 = vunpack.c.l.b16 %v3392
    %v3688 = vunpack.c.l.b16 %v3393
    %v3689 = vunpack.c.l.b16 %v3394
    %v3690 = vunpack.c.l.b16 %v3395
    %v3691 = vunpack.c.l.b16 %v3396
    %v3692 = vunpack.c.l.b16 %v3397
    %v3693 = vunpack.c.l.b16 %v3398
    %v3694 = vunpack.c.l.b16 %v3399
    %v3695 = vunpack.c.l.b16 %v3400
    %v3696 = vunpack.c.l.b16 %v3401
    %v3697 = vunpack.c.l.b16 %v3402
    %v3698 = vpack.c.b16 %v3555, %v3554
    %v3699 = vpack.c.b16 %v3557, %v3556
    %v3700 = vpack.c.b16 %v3559, %v3558
    %v3701 = vpack.c.b16 %v3561, %v3560
    %v3702 = vpack.c.b16 %v3563, %v3562
    %v3703 = vpack.c.b16 %v3565, %v3564
    %v3704 = vpack.c.b16 %v3567, %v3566
    %v3705 = vpack.c.b16 %v3569, %v3568
    %v3706 = vpack.c.b16 %v3571, %v3570
    %v3707 = vpack.c.b16 %v3573, %v3572
    %v3708 = vpack.c.b16 %v3575, %v3574
    %v3709 = vpack.c.b16 %v3577, %v3576
    %v3710 = vpack.c.b16 %v3579, %v3578
    %v3711 = vpack.c.b16 %v3581, %v3580
    %v3712 = vpack.c.b16 %v3583, %v3582
    %v3713 = vpack.c.b16 %v3585, %v3584
    %v3714 = vpack.c.b16 %v3587, %v3586
    %v3715 = vpack.c.b16 %v3589, %v3588
    %v3716 = vpack.c.b16 %v3591, %v3590
    %v3717 = vpack.c.b16 %v3593, %v3592
    %v3718 = vpack.c.b16 %v3595, %v3594
    %v3719 = vpack.c.b16 %v3597, %v3596
    %v3720 = vpack.c.b16 %v3599, %v3598
    %v3721 = vpack.c.b16 %v3601, %v3600
    %v3722 = vpack.c.b16 %v3603, %v3602
    %v3723 = vpack.c.b16 %v3605, %v3604
    %v3724 = vpack.c.b16 %v3607, %v3606
    %v3725 = vpack.c.b16 %v3609, %v3608
    %v3726 = vpack.c.b16 %v3611, %v3610
    %v3727 = vpack.c.b16 %v3613, %v3612
    %v3728 = vpack.c.b16 %v3615, %v3614
    %v3729 = vpack.c.b16 %v3617, %v3616
    %v3730 = vpack.c.b16 %v3619, %v3618
    %v3731 = vpack.c.b16 %v3621, %v3620
    %v3732 = vpack.c.b16 %v3623, %v3622
    %v3733 = vpack.c.b16 %v3625, %v3624
    %v3734 = vpack.c.b16 %v3627, %v3626
    %v3735 = vpack.c.b16 %v3629, %v3628
    %v3736 = vpack.c.b16 %v3631, %v3630
    %v3737 = vpack.c.b16 %v3633, %v3632
    %v3738 = vpack.c.b16 %v3635, %v3634
    %v3739 = vpack.c.b16 %v3637, %v3636
    %v3740 = vpack.c.b16 %v3639, %v3638
    %v3741 = vpack.c.b16 %v3641, %v3640
    %v3742 = vpack.c.b16 %v3643, %v3642
    %v3743 = vpack.c.b16 %v3645, %v3644
    %v3744 = vpack.c.b16 %v3647, %v3646
    %v3745 = vpack.c.b16 %v3649, %v3648
    %v3746 = vpack.c.b16 %v3651, %v3650
    %v3747 = vpack.c.b16 %v3653, %v3652
    %v3748 = vpack.c.b16 %v3655, %v3654
    %v3749 = vpack.c.b16 %v3657, %v3656
    %v3750 = vpack.c.b16 %v3659, %v3658
    %v3751 = vpack.c.b16 %v3661, %v3660
    %v3752 = vpack.c.b16 %v3663, %v3662
    %v3753 = vpack.c.b16 %v3665, %v3664
    %v3754 = vpack.c.b16 %v3667, %v3666
    %v3755 = vpack.c.b16 %v3669, %v3668
    %v3756 = vpack.c.b16 %v3671, %v3670
    %v3757 = vpack.c.b16 %v3673, %v3672
    %v3758 = vpack.c.b16 %v3675, %v3674
    %v3759 = vpack.c.b16 %v3677, %v3676
    %v3760 = vpack.c.b16 %v3679, %v3678
    %v3761 = vpack.c.b16 %v3681, %v3680
    %v3762 = vpack.c.b16 %v3683, %v3682
    %v3763 = vpack.c.b16 %v3685, %v3684
    %v3764 = vpack.c.b16 %v3687, %v3686
    %v3765 = vpack.c.b16 %v3689, %v3688
    %v3766 = vpack.c.b16 %v3691, %v3690
    %v3767 = vpack.c.b16 %v3693, %v3692
    %v3768 = vpack.c.b16 %v3695, %v3694
    %v3769 = vpack.c.b16 %v3697, %v3696
    %3842 = vmatprep.subr.bf16.mxu0 0
    %3843 = vmatpush1.bf16.msra.mxu0 %v3698
    %3844 = vmatprep.subr.bf16.mxu0 0
    %3845 = vmatpush1.bf16.msra.mxu0 %v3699
    %3846 = vmatprep.subr.bf16.mxu0 0
    %3847 = vmatpush1.bf16.msra.mxu0 %v3700
    %3848 = vmatprep.subr.bf16.mxu0 0
    %3849 = vmatpush1.bf16.msra.mxu0 %v3701
    %3850 = vmatprep.subr.bf16.mxu0 0
    %3851 = vmatpush1.bf16.msra.mxu0 %v3702
    %3852 = vmatprep.subr.bf16.mxu0 0
    %3853 = vmatpush1.bf16.msra.mxu0 %v3703
    %3854 = vmatprep.subr.bf16.mxu0 0
    %3855 = vmatpush1.bf16.msra.mxu0 %v3704
    %3856 = vmatprep.subr.bf16.mxu0 0
    %3857 = vmatpush1.bf16.msra.mxu0 %v3705
    %3858 = vmatprep.subr.bf16.mxu0 0
    %3859 = vmatpush1.bf16.msra.mxu0 %v3706
    %3860 = vmatprep.subr.bf16.mxu0 0
    %3861 = vmatpush1.bf16.msra.mxu0 %v3707
    %3862 = vmatprep.subr.bf16.mxu0 0
    %3863 = vmatpush1.bf16.msra.mxu0 %v3708
    %3864 = vmatprep.subr.bf16.mxu0 0
    %3865 = vmatpush1.bf16.msra.mxu0 %v3709
    %3866 = vmatprep.subr.bf16.mxu0 0
    %3867 = vmatpush1.bf16.msra.mxu0 %v3710
    %3868 = vmatprep.subr.bf16.mxu0 0
    %3869 = vmatpush1.bf16.msra.mxu0 %v3711
    %3870 = vmatprep.subr.bf16.mxu0 0
    %3871 = vmatpush1.bf16.msra.mxu0 %v3712
    %3872 = vmatprep.subr.bf16.mxu0 0
    %3873 = vmatpush1.bf16.msra.mxu0 %v3713
    %3874 = vmatprep.mubr.bf16.mxu0 %v2936
    %3875 = vmatmul.mubr.bf16.gmra.mrb[0].mxu0 %v2890
    %v3876 = vpop.f32.mrb[0].mxu0
    %v3877 = vadd.f32 %v3408, %v3876
    %v3878 = vpop.f32.mrb[0].mxu0
    %v3879 = vpop.f32.mrb[0].mxu0
    %v3880 = vpop.f32.mrb[0].mxu0
    %3881 = vdwg.mxu0
    %3882 = vmatprep.subr.bf16.mxu0 0
    %3883 = vmatpush1.bf16.msra.mxu0 %v3714
    %3884 = vmatprep.subr.bf16.mxu0 0
    %3885 = vmatpush1.bf16.msra.mxu0 %v3715
    %3886 = vmatprep.subr.bf16.mxu0 0
    %3887 = vmatpush1.bf16.msra.mxu0 %v3716
    %3888 = vmatprep.subr.bf16.mxu0 0
    %3889 = vmatpush1.bf16.msra.mxu0 %v3717
    %3890 = vmatprep.subr.bf16.mxu0 0
    %3891 = vmatpush1.bf16.msra.mxu0 %v3718
    %3892 = vmatprep.subr.bf16.mxu0 0
    %3893 = vmatpush1.bf16.msra.mxu0 %v3719
    %3894 = vmatprep.subr.bf16.mxu0 0
    %3895 = vmatpush1.bf16.msra.mxu0 %v3720
    %3896 = vmatprep.subr.bf16.mxu0 0
    %3897 = vmatpush1.bf16.msra.mxu0 %v3721
    %3898 = vmatprep.subr.bf16.mxu0 0
    %3899 = vmatpush1.bf16.msra.mxu0 %v3722
    %3900 = vmatprep.subr.bf16.mxu0 0
    %3901 = vmatpush1.bf16.msra.mxu0 %v3723
    %3902 = vmatprep.subr.bf16.mxu0 0
    %3903 = vmatpush1.bf16.msra.mxu0 %v3724
    %3904 = vmatprep.subr.bf16.mxu0 0
    %3905 = vmatpush1.bf16.msra.mxu0 %v3725
    %3906 = vmatprep.subr.bf16.mxu0 0
    %3907 = vmatpush1.bf16.msra.mxu0 %v3726
    %3908 = vmatprep.subr.bf16.mxu0 0
    %3909 = vmatpush1.bf16.msra.mxu0 %v3727
    %3910 = vmatprep.subr.bf16.mxu0 0
    %3911 = vmatpush1.bf16.msra.mxu0 %v3728
    %3912 = vmatprep.subr.bf16.mxu0 0
    %3913 = vmatpush1.bf16.msra.mxu0 %v3729
    %3914 = vmatprep.mubr.bf16.mxu0 %v3028
    %3915 = vmatmul.mubr.bf16.gmra.mrb[0].mxu0 %v2982
    %v3916 = vpop.f32.mrb[0].mxu0
    %v3917 = vadd.f32 %v3877, %v3916
    %v3918 = vpop.f32.mrb[0].mxu0
    %v3919 = vpop.f32.mrb[0].mxu0
    %v3920 = vpop.f32.mrb[0].mxu0
    %3921 = vdwg.mxu0
    %3922 = vmatprep.subr.bf16.mxu0 0
    %3923 = vmatpush1.bf16.msra.mxu0 %v3730
    %3924 = vmatprep.subr.bf16.mxu0 0
    %3925 = vmatpush1.bf16.msra.mxu0 %v3731
    %3926 = vmatprep.subr.bf16.mxu0 0
    %3927 = vmatpush1.bf16.msra.mxu0 %v3732
    %3928 = vmatprep.subr.bf16.mxu0 0
    %3929 = vmatpush1.bf16.msra.mxu0 %v3733
    %3930 = vmatprep.subr.bf16.mxu0 0
    %3931 = vmatpush1.bf16.msra.mxu0 %v3734
    %3932 = vmatprep.subr.bf16.mxu0 0
    %3933 = vmatpush1.bf16.msra.mxu0 %v3735
    %3934 = vmatprep.subr.bf16.mxu0 0
    %3935 = vmatpush1.bf16.msra.mxu0 %v3736
    %3936 = vmatprep.subr.bf16.mxu0 0
    %3937 = vmatpush1.bf16.msra.mxu0 %v3737
    %3938 = vmatprep.subr.bf16.mxu0 0
    %3939 = vmatpush1.bf16.msra.mxu0 %v3738
    %3940 = vmatprep.subr.bf16.mxu0 0
    %3941 = vmatpush1.bf16.msra.mxu0 %v3739
    %3942 = vmatprep.subr.bf16.mxu0 0
    %3943 = vmatpush1.bf16.msra.mxu0 %v3740
    %3944 = vmatprep.subr.bf16.mxu0 0
    %3945 = vmatpush1.bf16.msra.mxu0 %v3741
    %3946 = vmatprep.subr.bf16.mxu0 0
    %3947 = vmatpush1.bf16.msra.mxu0 %v3742
    %3948 = vmatprep.subr.bf16.mxu0 0
    %3949 = vmatpush1.bf16.msra.mxu0 %v3743
    %3950 = vmatprep.subr.bf16.mxu0 0
    %3951 = vmatpush1.bf16.msra.mxu0 %v3744
    %3952 = vmatprep.subr.bf16.mxu0 0
    %3953 = vmatpush1.bf16.msra.mxu0 %v3745
    %3954 = vmatprep.mubr.bf16.mxu0 %v3120
    %3955 = vmatmul.mubr.bf16.gmra.mrb[0].mxu0 %v3074
    %v3956 = vpop.f32.mrb[0].mxu0
    %v3957 = vadd.f32 %v3917, %v3956
    %v3958 = vpop.f32.mrb[0].mxu0
    %v3959 = vpop.f32.mrb[0].mxu0
    %v3960 = vpop.f32.mrb[0].mxu0
    %3961 = vdwg.mxu0
    %3962 = vmatprep.subr.bf16.mxu0 0
    %3963 = vmatpush1.bf16.msra.mxu0 %v3746
    %3964 = vmatprep.subr.bf16.mxu0 0
    %3965 = vmatpush1.bf16.msra.mxu0 %v3747
    %3966 = vmatprep.subr.bf16.mxu0 0
    %3967 = vmatpush1.bf16.msra.mxu0 %v3748
    %3968 = vmatprep.subr.bf16.mxu0 0
    %3969 = vmatpush1.bf16.msra.mxu0 %v3749
    %3970 = vmatprep.subr.bf16.mxu0 0
    %3971 = vmatpush1.bf16.msra.mxu0 %v3750
    %3972 = vmatprep.subr.bf16.mxu0 0
    %3973 = vmatpush1.bf16.msra.mxu0 %v3751
    %3974 = vmatprep.subr.bf16.mxu0 0
    %3975 = vmatpush1.bf16.msra.mxu0 %v3752
    %3976 = vmatprep.subr.bf16.mxu0 0
    %3977 = vmatpush1.bf16.msra.mxu0 %v3753
    %3978 = vmatprep.subr.bf16.mxu0 0
    %3979 = vmatpush1.bf16.msra.mxu0 %v3754
    %3980 = vmatprep.subr.bf16.mxu0 0
    %3981 = vmatpush1.bf16.msra.mxu0 %v3755
    %3982 = vmatprep.subr.bf16.mxu0 0
    %3983 = vmatpush1.bf16.msra.mxu0 %v3756
    %3984 = vmatprep.subr.bf16.mxu0 0
    %3985 = vmatpush1.bf16.msra.mxu0 %v3757
    %3986 = vmatprep.subr.bf16.mxu0 0
    %3987 = vmatpush1.bf16.msra.mxu0 %v3758
    %3988 = vmatprep.subr.bf16.mxu0 0
    %3989 = vmatpush1.bf16.msra.mxu0 %v3759
    %3990 = vmatprep.subr.bf16.mxu0 0
    %3991 = vmatpush1.bf16.msra.mxu0 %v3760
    %3992 = vmatprep.subr.bf16.mxu0 0
    %3993 = vmatpush1.bf16.msra.mxu0 %v3761
    %3994 = vmatprep.mubr.bf16.mxu0 %v3212
    %3995 = vmatmul.mubr.bf16.gmra.mrb[0].mxu0 %v3166
    %v3996 = vpop.f32.mrb[0].mxu0
    %v3997 = vadd.f32 %v3957, %v3996
    %v3998 = vpop.f32.mrb[0].mxu0
    %v3999 = vpop.f32.mrb[0].mxu0
    %v4000 = vpop.f32.mrb[0].mxu0
    %4001 = vdwg.mxu0
    %4002 = vmatprep.subr.bf16.mxu0 0
    %4003 = vmatpush1.bf16.msra.mxu0 %v3762
    %4004 = vmatprep.subr.bf16.mxu0 0
    %4005 = vmatpush1.bf16.msra.mxu0 %v3763
    %4006 = vmatprep.subr.bf16.mxu0 0
    %4007 = vmatpush1.bf16.msra.mxu0 %v3764
    %4008 = vmatprep.subr.bf16.mxu0 0
    %4009 = vmatpush1.bf16.msra.mxu0 %v3765
    %4010 = vmatprep.subr.bf16.mxu0 0
    %4011 = vmatpush1.bf16.msra.mxu0 %v3766
    %4012 = vmatprep.subr.bf16.mxu0 0
    %4013 = vmatpush1.bf16.msra.mxu0 %v3767
    %4014 = vmatprep.subr.bf16.mxu0 0
    %4015 = vmatpush1.bf16.msra.mxu0 %v3768
    %4016 = vmatprep.subr.bf16.mxu0 0
    %4017 = vmatpush1.bf16.msra.mxu0 %v3769
    %4018 = vmatprep.subr.bf16.mxu0 0
    %4019 = vmatpush1.bf16.msra.mxu0 0
    %4020 = vmatprep.subr.bf16.mxu0 0
    %4021 = vmatpush1.bf16.msra.mxu0 0
    %4022 = vmatprep.subr.bf16.mxu0 0
    %4023 = vmatpush1.bf16.msra.mxu0 0
    %4024 = vmatprep.subr.bf16.mxu0 0
    %4025 = vmatpush1.bf16.msra.mxu0 0
    %4026 = vmatprep.subr.bf16.mxu0 0
    %4027 = vmatpush1.bf16.msra.mxu0 0
    %4028 = vmatprep.subr.bf16.mxu0 0
    %4029 = vmatpush1.bf16.msra.mxu0 0
    %4030 = vmatprep.subr.bf16.mxu0 0
    %4031 = vmatpush1.bf16.msra.mxu0 0
    %4032 = vmatprep.subr.bf16.mxu0 0
    %4033 = vmatpush1.bf16.msra.mxu0 0
    %4034 = vmatprep.mubr.bf16.mxu0 0
    %4035 = vmatmul.mubr.bf16.gmra.mrb[0].mxu0 %v3258
    %v4036 = vpop.f32.mrb[0].mxu0
    %v4037 = vadd.f32 %v3997, %v4036
    %v4038 = vpop.f32.mrb[0].mxu0
    %v4039 = vpop.f32.mrb[0].mxu0
    %v4040 = vpop.f32.mrb[0].mxu0
    %4041 = vdwg.mxu0
    %v4042 = vmax.f32 %v4037, 0.0
    %v4043 = vpack.c.bf16 %v4042, %v4042
    %v4044 = vld [vmem:[%s9] sm:$0xff]
    %v4045 = vld [vmem:[%s9 + $0x8] sm:$0xff]
    %v4046 = vld [vmem:[%s9 + $0x10] sm:$0xff]
    %v4047 = vld [vmem:[%s9 + $0x18] sm:$0xff]
    %v4048 = vld [vmem:[%s9 + $0x20] sm:$0xff]
    %v4049 = vld [vmem:[%s9 + $0x28] sm:$0xff]
    %v4050 = vld [vmem:[%s9 + $0x30] sm:$0xff]
    %v4051 = vld [vmem:[%s9 + $0x38] sm:$0xff]
    %v4052 = vld [vmem:[%s9 + $0x40] sm:$0xff]
    %v4053 = vld [vmem:[%s9 + $0x48] sm:$0xff]
    %v4054 = vld [vmem:[%s9 + $0x50] sm:$0xff]
    %v4055 = vld [vmem:[%s9 + $0x58] sm:$0xff]
    %v4056 = vld [vmem:[%s9 + $0x60] sm:$0xff]
    %v4057 = vld [vmem:[%s9 + $0x68] sm:$0xff]
    %v4058 = vld [vmem:[%s9 + $0x70] sm:$0xff]
    %v4059 = vld [vmem:[%s9 + $0x78] sm:$0xff]
    %v4060 = vld [vmem:[%s9 + $0x80] sm:$0xff]
    %v4061 = vld [vmem:[%s9 + $0x88] sm:$0xff]
    %v4062 = vld [vmem:[%s9 + $0x90] sm:$0xff]
    %v4063 = vld [vmem:[%s9 + $0x98] sm:$0xff]
    %v4064 = vld [vmem:[%s9 + $0xa0] sm:$0xff]
    %v4065 = vld [vmem:[%s9 + $0xa8] sm:$0xff]
    %v4066 = vld [vmem:[%s9 + $0xb0] sm:$0xff]
    %v4067 = vld [vmem:[%s9 + $0xb8] sm:$0xff]
    %v4068 = vld [vmem:[%s9 + $0xc0] sm:$0xff]
    %v4069 = vld [vmem:[%s9 + $0xc8] sm:$0xff]
    %v4070 = vld [vmem:[%s9 + $0xd0] sm:$0xff]
    %v4071 = vld [vmem:[%s9 + $0xd8] sm:$0xff]
    %v4072 = vld [vmem:[%s9 + $0xe0] sm:$0xff]
    %v4073 = vld [vmem:[%s9 + $0xe8] sm:$0xff]
    %v4074 = vld [vmem:[%s9 + $0xf0] sm:$0xff]
    %v4075 = vld [vmem:[%s9 + $0xf8] sm:$0xff]
    %v4076 = vld [vmem:[%s10] sm:$0xf]
    %v4078 = vlaneseq
    %v4079 = vshrl.u32 %v4078, 7
    %v4080 = vsub.s32 0, %v4079
    %v4081 = vrot.slane %v4076, %v4080
    %v4082 = vlaneseq
    %v4083 = vshrl.u32 %v4082, 7
    %v4084 = vsub.s32 1, %v4083
    %v4085 = vrot.slane %v4076, %v4084
    %v4086 = vlaneseq
    %v4087 = vshrl.u32 %v4086, 7
    %v4088 = vsub.s32 2, %v4087
    %v4089 = vrot.slane %v4076, %v4088
    %v4090 = vlaneseq
    %v4091 = vshrl.u32 %v4090, 7
    %v4092 = vsub.s32 3, %v4091
    %v4093 = vrot.slane %v4076, %v4092
    %v4130 = vunpack.c.l.b16 %v4044
    %v4131 = vunpack.c.h.b16 %v4044
    %v4132 = vunpack.c.l.b16 %v4045
    %v4133 = vunpack.c.h.b16 %v4045
    %v4134 = vunpack.c.l.b16 %v4046
    %v4135 = vunpack.c.h.b16 %v4046
    %v4136 = vunpack.c.l.b16 %v4047
    %v4137 = vunpack.c.h.b16 %v4047
    %v4138 = vunpack.c.l.b16 %v4048
    %v4139 = vunpack.c.h.b16 %v4048
    %v4140 = vunpack.c.l.b16 %v4049
    %v4141 = vunpack.c.h.b16 %v4049
    %v4142 = vunpack.c.l.b16 %v4050
    %v4143 = vunpack.c.h.b16 %v4050
    %v4144 = vunpack.c.l.b16 %v4051
    %v4145 = vunpack.c.h.b16 %v4051
    %v4146 = vunpack.c.l.b16 %v4052
    %v4147 = vunpack.c.h.b16 %v4052
    %v4148 = vunpack.c.l.b16 %v4053
    %v4149 = vunpack.c.h.b16 %v4053
    %v4150 = vunpack.c.l.b16 %v4054
    %v4151 = vunpack.c.h.b16 %v4054
    %v4152 = vunpack.c.l.b16 %v4055
    %v4153 = vunpack.c.h.b16 %v4055
    %v4154 = vunpack.c.l.b16 %v4056
    %v4155 = vunpack.c.h.b16 %v4056
    %v4156 = vunpack.c.l.b16 %v4057
    %v4157 = vunpack.c.h.b16 %v4057
    %v4158 = vunpack.c.l.b16 %v4058
    %v4159 = vunpack.c.h.b16 %v4058
    %v4160 = vunpack.c.l.b16 %v4059
    %v4161 = vunpack.c.h.b16 %v4059
    %v4162 = vunpack.c.l.b16 %v4060
    %v4163 = vunpack.c.h.b16 %v4060
    %v4164 = vunpack.c.l.b16 %v4061
    %v4165 = vunpack.c.h.b16 %v4061
    %v4166 = vunpack.c.l.b16 %v4062
    %v4167 = vunpack.c.h.b16 %v4062
    %v4168 = vunpack.c.l.b16 %v4063
    %v4169 = vunpack.c.h.b16 %v4063
    %v4170 = vunpack.c.l.b16 %v4064
    %v4171 = vunpack.c.h.b16 %v4064
    %v4172 = vunpack.c.l.b16 %v4065
    %v4173 = vunpack.c.h.b16 %v4065
    %v4174 = vunpack.c.l.b16 %v4066
    %v4175 = vunpack.c.h.b16 %v4066
    %v4176 = vunpack.c.l.b16 %v4067
    %v4177 = vunpack.c.h.b16 %v4067
    %v4178 = vunpack.c.l.b16 %v4068
    %v4179 = vunpack.c.h.b16 %v4068
    %v4180 = vunpack.c.l.b16 %v4069
    %v4181 = vunpack.c.h.b16 %v4069
    %v4182 = vunpack.c.l.b16 %v4070
    %v4183 = vunpack.c.h.b16 %v4070
    %v4184 = vunpack.c.l.b16 %v4071
    %v4185 = vunpack.c.h.b16 %v4071
    %v4186 = vunpack.c.l.b16 %v4072
    %v4187 = vunpack.c.h.b16 %v4072
    %v4188 = vunpack.c.l.b16 %v4073
    %v4189 = vunpack.c.h.b16 %v4073
    %v4190 = vunpack.c.l.b16 %v4074
    %v4191 = vunpack.c.h.b16 %v4074
    %v4192 = vunpack.c.l.b16 %v4075
    %v4193 = vunpack.c.h.b16 %v4075
    %v4194 = vpack.c.b16 %v4134, %v4130
    %v4195 = vpack.c.b16 %v4135, %v4131
    %v4196 = vpack.c.b16 %v4136, %v4132
    %v4197 = vpack.c.b16 %v4137, %v4133
    %v4198 = vpack.c.b16 %v4142, %v4138
    %v4199 = vpack.c.b16 %v4143, %v4139
    %v4200 = vpack.c.b16 %v4144, %v4140
    %v4201 = vpack.c.b16 %v4145, %v4141
    %v4202 = vpack.c.b16 %v4150, %v4146
    %v4203 = vpack.c.b16 %v4151, %v4147
    %v4204 = vpack.c.b16 %v4152, %v4148
    %v4205 = vpack.c.b16 %v4153, %v4149
    %v4206 = vpack.c.b16 %v4158, %v4154
    %v4207 = vpack.c.b16 %v4159, %v4155
    %v4208 = vpack.c.b16 %v4160, %v4156
    %v4209 = vpack.c.b16 %v4161, %v4157
    %v4210 = vpack.c.b16 %v4166, %v4162
    %v4211 = vpack.c.b16 %v4167, %v4163
    %v4212 = vpack.c.b16 %v4168, %v4164
    %v4213 = vpack.c.b16 %v4169, %v4165
    %v4214 = vpack.c.b16 %v4174, %v4170
    %v4215 = vpack.c.b16 %v4175, %v4171
    %v4216 = vpack.c.b16 %v4176, %v4172
    %v4217 = vpack.c.b16 %v4177, %v4173
    %v4218 = vpack.c.b16 %v4182, %v4178
    %v4219 = vpack.c.b16 %v4183, %v4179
    %v4220 = vpack.c.b16 %v4184, %v4180
    %v4221 = vpack.c.b16 %v4185, %v4181
    %v4222 = vpack.c.b16 %v4190, %v4186
    %v4223 = vpack.c.b16 %v4191, %v4187
    %v4224 = vpack.c.b16 %v4192, %v4188
    %v4225 = vpack.c.b16 %v4193, %v4189
    %4258 = vmatprep.subr.bf16.mxu0 %v4195
    %4259 = vmatpush1.bf16.msra.mxu0 %v4194
    %4260 = vmatprep.subr.bf16.mxu0 %v4199
    %4261 = vmatpush1.bf16.msra.mxu0 %v4198
    %4262 = vmatprep.subr.bf16.mxu0 %v4203
    %4263 = vmatpush1.bf16.msra.mxu0 %v4202
    %4264 = vmatprep.subr.bf16.mxu0 %v4207
    %4265 = vmatpush1.bf16.msra.mxu0 %v4206
    %4266 = vmatprep.subr.bf16.mxu0 %v4211
    %4267 = vmatpush1.bf16.msra.mxu0 %v4210
    %4268 = vmatprep.subr.bf16.mxu0 %v4215
    %4269 = vmatpush1.bf16.msra.mxu0 %v4214
    %4270 = vmatprep.subr.bf16.mxu0 %v4219
    %4271 = vmatpush1.bf16.msra.mxu0 %v4218
    %4272 = vmatprep.subr.bf16.mxu0 %v4223
    %4273 = vmatpush1.bf16.msra.mxu0 %v4222
    %4274 = vmatprep.subr.bf16.mxu0 0
    %4275 = vmatpush1.bf16.msra.mxu0 0
    %4276 = vmatprep.subr.bf16.mxu0 0
    %4277 = vmatpush1.bf16.msra.mxu0 0
    %4278 = vmatprep.subr.bf16.mxu0 0
    %4279 = vmatpush1.bf16.msra.mxu0 0
    %4280 = vmatprep.subr.bf16.mxu0 0
    %4281 = vmatpush1.bf16.msra.mxu0 0
    %4282 = vmatprep.subr.bf16.mxu0 0
    %4283 = vmatpush1.bf16.msra.mxu0 0
    %4284 = vmatprep.subr.bf16.mxu0 0
    %4285 = vmatpush1.bf16.msra.mxu0 0
    %4286 = vmatprep.subr.bf16.mxu0 0
    %4287 = vmatpush1.bf16.msra.mxu0 0
    %4288 = vmatprep.subr.bf16.mxu0 0
    %4289 = vmatpush1.bf16.msra.mxu0 0
    %4290 = vmatprep.mubr.bf16.mxu0 0
    %4291 = vmatmul.mubr.bf16.gmra.mrb[0].mxu0 %v4043
    %v4292 = vpop.f32.mrb[0].mxu0
    %v4293 = vadd.f32 %v4081, %v4292
    %v4294 = vpop.f32.mrb[0].mxu0
    %v4295 = vadd.f32 %v4085, %v4294
    %v4296 = vpop.f32.mrb[0].mxu0
    %v4297 = vpop.f32.mrb[0].mxu0
    %4298 = vdwg.mxu0
    %4299 = vmatprep.subr.bf16.mxu0 %v4197
    %4300 = vmatpush1.bf16.msra.mxu0 %v4196
    %4301 = vmatprep.subr.bf16.mxu0 %v4201
    %4302 = vmatpush1.bf16.msra.mxu0 %v4200
    %4303 = vmatprep.subr.bf16.mxu0 %v4205
    %4304 = vmatpush1.bf16.msra.mxu0 %v4204
    %4305 = vmatprep.subr.bf16.mxu0 %v4209
    %4306 = vmatpush1.bf16.msra.mxu0 %v4208
    %4307 = vmatprep.subr.bf16.mxu0 %v4213
    %4308 = vmatpush1.bf16.msra.mxu0 %v4212
    %4309 = vmatprep.subr.bf16.mxu0 %v4217
    %4310 = vmatpush1.bf16.msra.mxu0 %v4216
    %4311 = vmatprep.subr.bf16.mxu0 %v4221
    %4312 = vmatpush1.bf16.msra.mxu0 %v4220
    %4313 = vmatprep.subr.bf16.mxu0 %v4225
    %4314 = vmatpush1.bf16.msra.mxu0 %v4224
    %4315 = vmatprep.subr.bf16.mxu0 0
    %4316 = vmatpush1.bf16.msra.mxu0 0
    %4317 = vmatprep.subr.bf16.mxu0 0
    %4318 = vmatpush1.bf16.msra.mxu0 0
    %4319 = vmatprep.subr.bf16.mxu0 0
    %4320 = vmatpush1.bf16.msra.mxu0 0
    %4321 = vmatprep.subr.bf16.mxu0 0
    %4322 = vmatpush1.bf16.msra.mxu0 0
    %4323 = vmatprep.subr.bf16.mxu0 0
    %4324 = vmatpush1.bf16.msra.mxu0 0
    %4325 = vmatprep.subr.bf16.mxu0 0
    %4326 = vmatpush1.bf16.msra.mxu0 0
    %4327 = vmatprep.subr.bf16.mxu0 0
    %4328 = vmatpush1.bf16.msra.mxu0 0
    %4329 = vmatprep.subr.bf16.mxu0 0
    %4330 = vmatpush1.bf16.msra.mxu0 0
    %4331 = vmatprep.mubr.bf16.mxu0 0
    %4332 = vmatmul.mubr.bf16.gmra.mrb[0].mxu0 %v4043
    %v4333 = vpop.f32.mrb[0].mxu0
    %v4334 = vadd.f32 %v4089, %v4333
    %v4335 = vpop.f32.mrb[0].mxu0
    %v4336 = vadd.f32 %v4093, %v4335
    %v4337 = vpop.f32.mrb[0].mxu0
    %v4338 = vpop.f32.mrb[0].mxu0
    %4339 = vdwg.mxu0
    %v4340 = vmax.f32 %v4293, 0.0
    %v4341 = vmax.f32 %v4295, 0.0
    %v4342 = vmax.f32 %v4334, 0.0
    %v4343 = vmax.f32 %v4336, 0.0
    %v4344 = vpack.c.bf16 %v4340, %v4340
    %v4345 = vpack.c.bf16 %v4341, %v4341
    %v4346 = vpack.c.bf16 %v4342, %v4342
    %v4347 = vpack.c.bf16 %v4343, %v4343
    %v4348 = vld [vmem:[%s11] sm:$0xff]
    %v4349 = vld [vmem:[%s11 + $0x8] sm:$0xff]
    %v4350 = vld [vmem:[%s11 + $0x10] sm:$0xff]
    %v4351 = vld [vmem:[%s11 + $0x18] sm:$0xff]
    %v4352 = vld [vmem:[%s11 + $0x20] sm:$0xff]
    %v4353 = vld [vmem:[%s11 + $0x28] sm:$0xff]
    %v4354 = vld [vmem:[%s11 + $0x30] sm:$0xff]
    %v4355 = vld [vmem:[%s11 + $0x38] sm:$0xff]
    %v4356 = vld [vmem:[%s11 + $0x40] sm:$0xff]
    %v4357 = vld [vmem:[%s11 + $0x48] sm:$0xff]
    %v4358 = vld [vmem:[%s11 + $0x50] sm:$0xff]
    %v4359 = vld [vmem:[%s11 + $0x58] sm:$0xff]
    %v4360 = vld [vmem:[%s11 + $0x60] sm:$0xff]
    %v4361 = vld [vmem:[%s11 + $0x68] sm:$0xff]
    %v4362 = vld [vmem:[%s11 + $0x70] sm:$0xff]
    %v4363 = vld [vmem:[%s11 + $0x78] sm:$0xff]
    %v4364 = vld [vmem:[%s11 + $0x80] sm:$0xff]
    %v4365 = vld [vmem:[%s11 + $0x88] sm:$0xff]
    %v4366 = vld [vmem:[%s11 + $0x90] sm:$0xff]
    %v4367 = vld [vmem:[%s11 + $0x98] sm:$0xff]
    %v4368 = vld [vmem:[%s11 + $0xa0] sm:$0xff]
    %v4369 = vld [vmem:[%s11 + $0xa8] sm:$0xff]
    %v4370 = vld [vmem:[%s11 + $0xb0] sm:$0xff]
    %v4371 = vld [vmem:[%s11 + $0xb8] sm:$0xff]
    %v4372 = vld [vmem:[%s11 + $0xc0] sm:$0xff]
    %v4373 = vld [vmem:[%s11 + $0xc8] sm:$0xff]
    %v4374 = vld [vmem:[%s11 + $0xd0] sm:$0xff]
    %v4375 = vld [vmem:[%s11 + $0xd8] sm:$0xff]
    %v4376 = vld [vmem:[%s11 + $0xe0] sm:$0xff]
    %v4377 = vld [vmem:[%s11 + $0xe8] sm:$0xff]
    %v4378 = vld [vmem:[%s11 + $0xf0] sm:$0xff]
    %v4379 = vld [vmem:[%s11 + $0xf8] sm:$0xff]
    %v4380 = vld [vmem:[%s11 + $0x100] sm:$0xff]
    %v4381 = vld [vmem:[%s11 + $0x108] sm:$0xff]
    %v4382 = vld [vmem:[%s11 + $0x110] sm:$0xff]
    %v4383 = vld [vmem:[%s11 + $0x118] sm:$0xff]
    %v4384 = vld [vmem:[%s11 + $0x120] sm:$0xff]
    %v4385 = vld [vmem:[%s11 + $0x128] sm:$0xff]
    %v4386 = vld [vmem:[%s11 + $0x130] sm:$0xff]
    %v4387 = vld [vmem:[%s11 + $0x138] sm:$0xff]
    %v4388 = vld [vmem:[%s11 + $0x140] sm:$0xff]
    %v4389 = vld [vmem:[%s11 + $0x148] sm:$0xff]
    %v4390 = vld [vmem:[%s11 + $0x150] sm:$0xff]
    %v4391 = vld [vmem:[%s11 + $0x158] sm:$0xff]
    %v4392 = vld [vmem:[%s11 + $0x160] sm:$0xff]
    %v4393 = vld [vmem:[%s11 + $0x168] sm:$0xff]
    %v4394 = vld [vmem:[%s11 + $0x170] sm:$0xff]
    %v4395 = vld [vmem:[%s11 + $0x178] sm:$0xff]
    %v4396 = vld [vmem:[%s11 + $0x180] sm:$0xff]
    %v4397 = vld [vmem:[%s11 + $0x188] sm:$0xff]
    %v4398 = vld [vmem:[%s11 + $0x190] sm:$0xff]
    %v4399 = vld [vmem:[%s11 + $0x198] sm:$0xff]
    %v4400 = vld [vmem:[%s11 + $0x1a0] sm:$0xff]
    %v4401 = vld [vmem:[%s11 + $0x1a8] sm:$0xff]
    %v4402 = vld [vmem:[%s11 + $0x1b0] sm:$0xff]
    %v4403 = vld [vmem:[%s11 + $0x1b8] sm:$0xff]
    %v4404 = vld [vmem:[%s11 + $0x1c0] sm:$0xff]
    %v4405 = vld [vmem:[%s11 + $0x1c8] sm:$0xff]
    %v4406 = vld [vmem:[%s11 + $0x1d0] sm:$0xff]
    %v4407 = vld [vmem:[%s11 + $0x1d8] sm:$0xff]
    %v4408 = vld [vmem:[%s11 + $0x1e0] sm:$0xff]
    %v4409 = vld [vmem:[%s11 + $0x1e8] sm:$0xff]
    %v4410 = vld [vmem:[%s11 + $0x1f0] sm:$0xff]
    %v4411 = vld [vmem:[%s11 + $0x1f8] sm:$0xff]
    %v4412 = vld [vmem:[%s11 + $0x200] sm:$0xff]
    %v4413 = vld [vmem:[%s11 + $0x208] sm:$0xff]
    %v4414 = vld [vmem:[%s11 + $0x210] sm:$0xff]
    %v4415 = vld [vmem:[%s11 + $0x218] sm:$0xff]
    %v4416 = vld [vmem:[%s11 + $0x220] sm:$0xff]
    %v4417 = vld [vmem:[%s11 + $0x228] sm:$0xff]
    %v4418 = vld [vmem:[%s11 + $0x230] sm:$0xff]
    %v4419 = vld [vmem:[%s11 + $0x238] sm:$0xff]
    %v4420 = vld [vmem:[%s11 + $0x240] sm:$0xff]
    %v4421 = vld [vmem:[%s11 + $0x248] sm:$0xff]
    %v4422 = vld [vmem:[%s11 + $0x250] sm:$0xff]
    %v4423 = vld [vmem:[%s11 + $0x258] sm:$0xff]
    %v4424 = vld [vmem:[%s11 + $0x260] sm:$0xff]
    %v4425 = vld [vmem:[%s11 + $0x268] sm:$0xff]
    %v4426 = vld [vmem:[%s11 + $0x270] sm:$0xff]
    %v4427 = vld [vmem:[%s11 + $0x278] sm:$0xff]
    %v4428 = vld [vmem:[%s11 + $0x280] sm:$0xff]
    %v4429 = vld [vmem:[%s11 + $0x288] sm:$0xff]
    %v4430 = vld [vmem:[%s11 + $0x290] sm:$0xff]
    %v4431 = vld [vmem:[%s11 + $0x298] sm:$0xff]
    %v4432 = vld [vmem:[%s11 + $0x2a0] sm:$0xff]
    %v4433 = vld [vmem:[%s11 + $0x2a8] sm:$0xff]
    %v4434 = vld [vmem:[%s11 + $0x2b0] sm:$0xff]
    %v4435 = vld [vmem:[%s11 + $0x2b8] sm:$0xff]
    %v4436 = vld [vmem:[%s11 + $0x2c0] sm:$0xff]
    %v4437 = vld [vmem:[%s11 + $0x2c8] sm:$0xff]
    %v4438 = vld [vmem:[%s11 + $0x2d0] sm:$0xff]
    %v4439 = vld [vmem:[%s11 + $0x2d8] sm:$0xff]
    %v4440 = vld [vmem:[%s11 + $0x2e0] sm:$0xff]
    %v4441 = vld [vmem:[%s11 + $0x2e8] sm:$0xff]
    %v4442 = vld [vmem:[%s11 + $0x2f0] sm:$0xff]
    %v4443 = vld [vmem:[%s11 + $0x2f8] sm:$0xff]
    %v4444 = vld [vmem:[%s11 + $0x300] sm:$0xff]
    %v4445 = vld [vmem:[%s11 + $0x308] sm:$0xff]
    %v4446 = vld [vmem:[%s11 + $0x310] sm:$0xff]
    %v4447 = vld [vmem:[%s11 + $0x318] sm:$0xff]
    %v4448 = vld [vmem:[%s11 + $0x320] sm:$0xff]
    %v4449 = vld [vmem:[%s11 + $0x328] sm:$0xff]
    %v4450 = vld [vmem:[%s11 + $0x330] sm:$0xff]
    %v4451 = vld [vmem:[%s11 + $0x338] sm:$0xff]
    %v4452 = vld [vmem:[%s11 + $0x340] sm:$0xff]
    %v4453 = vld [vmem:[%s11 + $0x348] sm:$0xff]
    %v4454 = vld [vmem:[%s11 + $0x350] sm:$0xff]
    %v4455 = vld [vmem:[%s11 + $0x358] sm:$0xff]
    %v4456 = vld [vmem:[%s11 + $0x360] sm:$0xff]
    %v4457 = vld [vmem:[%s11 + $0x368] sm:$0xff]
    %v4458 = vld [vmem:[%s11 + $0x370] sm:$0xff]
    %v4459 = vld [vmem:[%s11 + $0x378] sm:$0xff]
    %v4460 = vld [vmem:[%s11 + $0x380] sm:$0xff]
    %v4461 = vld [vmem:[%s11 + $0x388] sm:$0xff]
    %v4462 = vld [vmem:[%s11 + $0x390] sm:$0xff]
    %v4463 = vld [vmem:[%s11 + $0x398] sm:$0xff]
    %v4464 = vld [vmem:[%s11 + $0x3a0] sm:$0xff]
    %v4465 = vld [vmem:[%s11 + $0x3a8] sm:$0xff]
    %v4466 = vld [vmem:[%s11 + $0x3b0] sm:$0xff]
    %v4467 = vld [vmem:[%s11 + $0x3b8] sm:$0xff]
    %v4468 = vld [vmem:[%s11 + $0x3c0] sm:$0xff]
    %v4469 = vld [vmem:[%s11 + $0x3c8] sm:$0xff]
    %v4470 = vld [vmem:[%s11 + $0x3d0] sm:$0xff]
    %v4471 = vld [vmem:[%s11 + $0x3d8] sm:$0xff]
    %v4472 = vld [vmem:[%s11 + $0x3e0] sm:$0xff]
    %v4473 = vld [vmem:[%s11 + $0x3e8] sm:$0xff]
    %v4474 = vld [vmem:[%s11 + $0x3f0] sm:$0xff]
    %v4475 = vld [vmem:[%s11 + $0x3f8] sm:$0xff]
    %v4476 = vld [vmem:[%s12] sm:$0xf]
    %v4478 = vlaneseq
    %v4479 = vshrl.u32 %v4478, 7
    %v4480 = vsub.s32 0, %v4479
    %v4481 = vrot.slane %v4476, %v4480
    %v4482 = vlaneseq
    %v4483 = vshrl.u32 %v4482, 7
    %v4484 = vsub.s32 1, %v4483
    %v4485 = vrot.slane %v4476, %v4484
    %v4486 = vlaneseq
    %v4487 = vshrl.u32 %v4486, 7
    %v4488 = vsub.s32 2, %v4487
    %v4489 = vrot.slane %v4476, %v4488
    %v4490 = vlaneseq
    %v4491 = vshrl.u32 %v4490, 7
    %v4492 = vsub.s32 3, %v4491
    %v4493 = vrot.slane %v4476, %v4492
    %v4626 = vunpack.c.l.b16 %v4348
    %v4627 = vunpack.c.h.b16 %v4348
    %v4628 = vunpack.c.l.b16 %v4349
    %v4629 = vunpack.c.h.b16 %v4349
    %v4630 = vunpack.c.l.b16 %v4350
    %v4631 = vunpack.c.h.b16 %v4350
    %v4632 = vunpack.c.l.b16 %v4351
    %v4633 = vunpack.c.h.b16 %v4351
    %v4634 = vunpack.c.l.b16 %v4352
    %v4635 = vunpack.c.h.b16 %v4352
    %v4636 = vunpack.c.l.b16 %v4353
    %v4637 = vunpack.c.h.b16 %v4353
    %v4638 = vunpack.c.l.b16 %v4354
    %v4639 = vunpack.c.h.b16 %v4354
    %v4640 = vunpack.c.l.b16 %v4355
    %v4641 = vunpack.c.h.b16 %v4355
    %v4642 = vunpack.c.l.b16 %v4356
    %v4643 = vunpack.c.h.b16 %v4356
    %v4644 = vunpack.c.l.b16 %v4357
    %v4645 = vunpack.c.h.b16 %v4357
    %v4646 = vunpack.c.l.b16 %v4358
    %v4647 = vunpack.c.h.b16 %v4358
    %v4648 = vunpack.c.l.b16 %v4359
    %v4649 = vunpack.c.h.b16 %v4359
    %v4650 = vunpack.c.l.b16 %v4360
    %v4651 = vunpack.c.h.b16 %v4360
    %v4652 = vunpack.c.l.b16 %v4361
    %v4653 = vunpack.c.h.b16 %v4361
    %v4654 = vunpack.c.l.b16 %v4362
    %v4655 = vunpack.c.h.b16 %v4362
    %v4656 = vunpack.c.l.b16 %v4363
    %v4657 = vunpack.c.h.b16 %v4363
    %v4658 = vunpack.c.l.b16 %v4364
    %v4659 = vunpack.c.h.b16 %v4364
    %v4660 = vunpack.c.l.b16 %v4365
    %v4661 = vunpack.c.h.b16 %v4365
    %v4662 = vunpack.c.l.b16 %v4366
    %v4663 = vunpack.c.h.b16 %v4366
    %v4664 = vunpack.c.l.b16 %v4367
    %v4665 = vunpack.c.h.b16 %v4367
    %v4666 = vunpack.c.l.b16 %v4368
    %v4667 = vunpack.c.h.b16 %v4368
    %v4668 = vunpack.c.l.b16 %v4369
    %v4669 = vunpack.c.h.b16 %v4369
    %v4670 = vunpack.c.l.b16 %v4370
    %v4671 = vunpack.c.h.b16 %v4370
    %v4672 = vunpack.c.l.b16 %v4371
    %v4673 = vunpack.c.h.b16 %v4371
    %v4674 = vunpack.c.l.b16 %v4372
    %v4675 = vunpack.c.h.b16 %v4372
    %v4676 = vunpack.c.l.b16 %v4373
    %v4677 = vunpack.c.h.b16 %v4373
    %v4678 = vunpack.c.l.b16 %v4374
    %v4679 = vunpack.c.h.b16 %v4374
    %v4680 = vunpack.c.l.b16 %v4375
    %v4681 = vunpack.c.h.b16 %v4375
    %v4682 = vunpack.c.l.b16 %v4376
    %v4683 = vunpack.c.h.b16 %v4376
    %v4684 = vunpack.c.l.b16 %v4377
    %v4685 = vunpack.c.h.b16 %v4377
    %v4686 = vunpack.c.l.b16 %v4378
    %v4687 = vunpack.c.h.b16 %v4378
    %v4688 = vunpack.c.l.b16 %v4379
    %v4689 = vunpack.c.h.b16 %v4379
    %v4690 = vunpack.c.l.b16 %v4380
    %v4691 = vunpack.c.h.b16 %v4380
    %v4692 = vunpack.c.l.b16 %v4381
    %v4693 = vunpack.c.h.b16 %v4381
    %v4694 = vunpack.c.l.b16 %v4382
    %v4695 = vunpack.c.h.b16 %v4382
    %v4696 = vunpack.c.l.b16 %v4383
    %v4697 = vunpack.c.h.b16 %v4383
    %v4698 = vunpack.c.l.b16 %v4384
    %v4699 = vunpack.c.h.b16 %v4384
    %v4700 = vunpack.c.l.b16 %v4385
    %v4701 = vunpack.c.h.b16 %v4385
    %v4702 = vunpack.c.l.b16 %v4386
    %v4703 = vunpack.c.h.b16 %v4386
    %v4704 = vunpack.c.l.b16 %v4387
    %v4705 = vunpack.c.h.b16 %v4387
    %v4706 = vunpack.c.l.b16 %v4388
    %v4707 = vunpack.c.h.b16 %v4388
    %v4708 = vunpack.c.l.b16 %v4389
    %v4709 = vunpack.c.h.b16 %v4389
    %v4710 = vunpack.c.l.b16 %v4390
    %v4711 = vunpack.c.h.b16 %v4390
    %v4712 = vunpack.c.l.b16 %v4391
    %v4713 = vunpack.c.h.b16 %v4391
    %v4714 = vunpack.c.l.b16 %v4392
    %v4715 = vunpack.c.h.b16 %v4392
    %v4716 = vunpack.c.l.b16 %v4393
    %v4717 = vunpack.c.h.b16 %v4393
    %v4718 = vunpack.c.l.b16 %v4394
    %v4719 = vunpack.c.h.b16 %v4394
    %v4720 = vunpack.c.l.b16 %v4395
    %v4721 = vunpack.c.h.b16 %v4395
    %v4722 = vunpack.c.l.b16 %v4396
    %v4723 = vunpack.c.h.b16 %v4396
    %v4724 = vunpack.c.l.b16 %v4397
    %v4725 = vunpack.c.h.b16 %v4397
    %v4726 = vunpack.c.l.b16 %v4398
    %v4727 = vunpack.c.h.b16 %v4398
    %v4728 = vunpack.c.l.b16 %v4399
    %v4729 = vunpack.c.h.b16 %v4399
    %v4730 = vunpack.c.l.b16 %v4400
    %v4731 = vunpack.c.h.b16 %v4400
    %v4732 = vunpack.c.l.b16 %v4401
    %v4733 = vunpack.c.h.b16 %v4401
    %v4734 = vunpack.c.l.b16 %v4402
    %v4735 = vunpack.c.h.b16 %v4402
    %v4736 = vunpack.c.l.b16 %v4403
    %v4737 = vunpack.c.h.b16 %v4403
    %v4738 = vunpack.c.l.b16 %v4404
    %v4739 = vunpack.c.h.b16 %v4404
    %v4740 = vunpack.c.l.b16 %v4405
    %v4741 = vunpack.c.h.b16 %v4405
    %v4742 = vunpack.c.l.b16 %v4406
    %v4743 = vunpack.c.h.b16 %v4406
    %v4744 = vunpack.c.l.b16 %v4407
    %v4745 = vunpack.c.h.b16 %v4407
    %v4746 = vunpack.c.l.b16 %v4408
    %v4747 = vunpack.c.h.b16 %v4408
    %v4748 = vunpack.c.l.b16 %v4409
    %v4749 = vunpack.c.h.b16 %v4409
    %v4750 = vunpack.c.l.b16 %v4410
    %v4751 = vunpack.c.h.b16 %v4410
    %v4752 = vunpack.c.l.b16 %v4411
    %v4753 = vunpack.c.h.b16 %v4411
    %v4754 = vunpack.c.l.b16 %v4412
    %v4755 = vunpack.c.h.b16 %v4412
    %v4756 = vunpack.c.l.b16 %v4413
    %v4757 = vunpack.c.h.b16 %v4413
    %v4758 = vunpack.c.l.b16 %v4414
    %v4759 = vunpack.c.h.b16 %v4414
    %v4760 = vunpack.c.l.b16 %v4415
    %v4761 = vunpack.c.h.b16 %v4415
    %v4762 = vunpack.c.l.b16 %v4416
    %v4763 = vunpack.c.h.b16 %v4416
    %v4764 = vunpack.c.l.b16 %v4417
    %v4765 = vunpack.c.h.b16 %v4417
    %v4766 = vunpack.c.l.b16 %v4418
    %v4767 = vunpack.c.h.b16 %v4418
    %v4768 = vunpack.c.l.b16 %v4419
    %v4769 = vunpack.c.h.b16 %v4419
    %v4770 = vunpack.c.l.b16 %v4420
    %v4771 = vunpack.c.h.b16 %v4420
    %v4772 = vunpack.c.l.b16 %v4421
    %v4773 = vunpack.c.h.b16 %v4421
    %v4774 = vunpack.c.l.b16 %v4422
    %v4775 = vunpack.c.h.b16 %v4422
    %v4776 = vunpack.c.l.b16 %v4423
    %v4777 = vunpack.c.h.b16 %v4423
    %v4778 = vunpack.c.l.b16 %v4424
    %v4779 = vunpack.c.h.b16 %v4424
    %v4780 = vunpack.c.l.b16 %v4425
    %v4781 = vunpack.c.h.b16 %v4425
    %v4782 = vunpack.c.l.b16 %v4426
    %v4783 = vunpack.c.h.b16 %v4426
    %v4784 = vunpack.c.l.b16 %v4427
    %v4785 = vunpack.c.h.b16 %v4427
    %v4786 = vunpack.c.l.b16 %v4428
    %v4787 = vunpack.c.h.b16 %v4428
    %v4788 = vunpack.c.l.b16 %v4429
    %v4789 = vunpack.c.h.b16 %v4429
    %v4790 = vunpack.c.l.b16 %v4430
    %v4791 = vunpack.c.h.b16 %v4430
    %v4792 = vunpack.c.l.b16 %v4431
    %v4793 = vunpack.c.h.b16 %v4431
    %v4794 = vunpack.c.l.b16 %v4432
    %v4795 = vunpack.c.h.b16 %v4432
    %v4796 = vunpack.c.l.b16 %v4433
    %v4797 = vunpack.c.h.b16 %v4433
    %v4798 = vunpack.c.l.b16 %v4434
    %v4799 = vunpack.c.h.b16 %v4434
    %v4800 = vunpack.c.l.b16 %v4435
    %v4801 = vunpack.c.h.b16 %v4435
    %v4802 = vunpack.c.l.b16 %v4436
    %v4803 = vunpack.c.h.b16 %v4436
    %v4804 = vunpack.c.l.b16 %v4437
    %v4805 = vunpack.c.h.b16 %v4437
    %v4806 = vunpack.c.l.b16 %v4438
    %v4807 = vunpack.c.h.b16 %v4438
    %v4808 = vunpack.c.l.b16 %v4439
    %v4809 = vunpack.c.h.b16 %v4439
    %v4810 = vunpack.c.l.b16 %v4440
    %v4811 = vunpack.c.h.b16 %v4440
    %v4812 = vunpack.c.l.b16 %v4441
    %v4813 = vunpack.c.h.b16 %v4441
    %v4814 = vunpack.c.l.b16 %v4442
    %v4815 = vunpack.c.h.b16 %v4442
    %v4816 = vunpack.c.l.b16 %v4443
    %v4817 = vunpack.c.h.b16 %v4443
    %v4818 = vunpack.c.l.b16 %v4444
    %v4819 = vunpack.c.h.b16 %v4444
    %v4820 = vunpack.c.l.b16 %v4445
    %v4821 = vunpack.c.h.b16 %v4445
    %v4822 = vunpack.c.l.b16 %v4446
    %v4823 = vunpack.c.h.b16 %v4446
    %v4824 = vunpack.c.l.b16 %v4447
    %v4825 = vunpack.c.h.b16 %v4447
    %v4826 = vunpack.c.l.b16 %v4448
    %v4827 = vunpack.c.h.b16 %v4448
    %v4828 = vunpack.c.l.b16 %v4449
    %v4829 = vunpack.c.h.b16 %v4449
    %v4830 = vunpack.c.l.b16 %v4450
    %v4831 = vunpack.c.h.b16 %v4450
    %v4832 = vunpack.c.l.b16 %v4451
    %v4833 = vunpack.c.h.b16 %v4451
    %v4834 = vunpack.c.l.b16 %v4452
    %v4835 = vunpack.c.h.b16 %v4452
    %v4836 = vunpack.c.l.b16 %v4453
    %v4837 = vunpack.c.h.b16 %v4453
    %v4838 = vunpack.c.l.b16 %v4454
    %v4839 = vunpack.c.h.b16 %v4454
    %v4840 = vunpack.c.l.b16 %v4455
    %v4841 = vunpack.c.h.b16 %v4455
    %v4842 = vunpack.c.l.b16 %v4456
    %v4843 = vunpack.c.h.b16 %v4456
    %v4844 = vunpack.c.l.b16 %v4457
    %v4845 = vunpack.c.h.b16 %v4457
    %v4846 = vunpack.c.l.b16 %v4458
    %v4847 = vunpack.c.h.b16 %v4458
    %v4848 = vunpack.c.l.b16 %v4459
    %v4849 = vunpack.c.h.b16 %v4459
    %v4850 = vunpack.c.l.b16 %v4460
    %v4851 = vunpack.c.h.b16 %v4460
    %v4852 = vunpack.c.l.b16 %v4461
    %v4853 = vunpack.c.h.b16 %v4461
    %v4854 = vunpack.c.l.b16 %v4462
    %v4855 = vunpack.c.h.b16 %v4462
    %v4856 = vunpack.c.l.b16 %v4463
    %v4857 = vunpack.c.h.b16 %v4463
    %v4858 = vunpack.c.l.b16 %v4464
    %v4859 = vunpack.c.h.b16 %v4464
    %v4860 = vunpack.c.l.b16 %v4465
    %v4861 = vunpack.c.h.b16 %v4465
    %v4862 = vunpack.c.l.b16 %v4466
    %v4863 = vunpack.c.h.b16 %v4466
    %v4864 = vunpack.c.l.b16 %v4467
    %v4865 = vunpack.c.h.b16 %v4467
    %v4866 = vunpack.c.l.b16 %v4468
    %v4867 = vunpack.c.h.b16 %v4468
    %v4868 = vunpack.c.l.b16 %v4469
    %v4869 = vunpack.c.h.b16 %v4469
    %v4870 = vunpack.c.l.b16 %v4470
    %v4871 = vunpack.c.h.b16 %v4470
    %v4872 = vunpack.c.l.b16 %v4471
    %v4873 = vunpack.c.h.b16 %v4471
    %v4874 = vunpack.c.l.b16 %v4472
    %v4875 = vunpack.c.h.b16 %v4472
    %v4876 = vunpack.c.l.b16 %v4473
    %v4877 = vunpack.c.h.b16 %v4473
    %v4878 = vunpack.c.l.b16 %v4474
    %v4879 = vunpack.c.h.b16 %v4474
    %v4880 = vunpack.c.l.b16 %v4475
    %v4881 = vunpack.c.h.b16 %v4475
    %v4882 = vpack.c.b16 %v4630, %v4626
    %v4883 = vpack.c.b16 %v4631, %v4627
    %v4884 = vpack.c.b16 %v4632, %v4628
    %v4885 = vpack.c.b16 %v4633, %v4629
    %v4886 = vpack.c.b16 %v4638, %v4634
    %v4887 = vpack.c.b16 %v4639, %v4635
    %v4888 = vpack.c.b16 %v4640, %v4636
    %v4889 = vpack.c.b16 %v4641, %v4637
    %v4890 = vpack.c.b16 %v4646, %v4642
    %v4891 = vpack.c.b16 %v4647, %v4643
    %v4892 = vpack.c.b16 %v4648, %v4644
    %v4893 = vpack.c.b16 %v4649, %v4645
    %v4894 = vpack.c.b16 %v4654, %v4650
    %v4895 = vpack.c.b16 %v4655, %v4651
    %v4896 = vpack.c.b16 %v4656, %v4652
    %v4897 = vpack.c.b16 %v4657, %v4653
    %v4898 = vpack.c.b16 %v4662, %v4658
    %v4899 = vpack.c.b16 %v4663, %v4659
    %v4900 = vpack.c.b16 %v4664, %v4660
    %v4901 = vpack.c.b16 %v4665, %v4661
    %v4902 = vpack.c.b16 %v4670, %v4666
    %v4903 = vpack.c.b16 %v4671, %v4667
    %v4904 = vpack.c.b16 %v4672, %v4668
    %v4905 = vpack.c.b16 %v4673, %v4669
    %v4906 = vpack.c.b16 %v4678, %v4674
    %v4907 = vpack.c.b16 %v4679, %v4675
    %v4908 = vpack.c.b16 %v4680, %v4676
    %v4909 = vpack.c.b16 %v4681, %v4677
    %v4910 = vpack.c.b16 %v4686, %v4682
    %v4911 = vpack.c.b16 %v4687, %v4683
    %v4912 = vpack.c.b16 %v4688, %v4684
    %v4913 = vpack.c.b16 %v4689, %v4685
    %v4914 = vpack.c.b16 %v4694, %v4690
    %v4915 = vpack.c.b16 %v4695, %v4691
    %v4916 = vpack.c.b16 %v4696, %v4692
    %v4917 = vpack.c.b16 %v4697, %v4693
    %v4918 = vpack.c.b16 %v4702, %v4698
    %v4919 = vpack.c.b16 %v4703, %v4699
    %v4920 = vpack.c.b16 %v4704, %v4700
    %v4921 = vpack.c.b16 %v4705, %v4701
    %v4922 = vpack.c.b16 %v4710, %v4706
    %v4923 = vpack.c.b16 %v4711, %v4707
    %v4924 = vpack.c.b16 %v4712, %v4708
    %v4925 = vpack.c.b16 %v4713, %v4709
    %v4926 = vpack.c.b16 %v4718, %v4714
    %v4927 = vpack.c.b16 %v4719, %v4715
    %v4928 = vpack.c.b16 %v4720, %v4716
    %v4929 = vpack.c.b16 %v4721, %v4717
    %v4930 = vpack.c.b16 %v4726, %v4722
    %v4931 = vpack.c.b16 %v4727, %v4723
    %v4932 = vpack.c.b16 %v4728, %v4724
    %v4933 = vpack.c.b16 %v4729, %v4725
    %v4934 = vpack.c.b16 %v4734, %v4730
    %v4935 = vpack.c.b16 %v4735, %v4731
    %v4936 = vpack.c.b16 %v4736, %v4732
    %v4937 = vpack.c.b16 %v4737, %v4733
    %v4938 = vpack.c.b16 %v4742, %v4738
    %v4939 = vpack.c.b16 %v4743, %v4739
    %v4940 = vpack.c.b16 %v4744, %v4740
    %v4941 = vpack.c.b16 %v4745, %v4741
    %v4942 = vpack.c.b16 %v4750, %v4746
    %v4943 = vpack.c.b16 %v4751, %v4747
    %v4944 = vpack.c.b16 %v4752, %v4748
    %v4945 = vpack.c.b16 %v4753, %v4749
    %v4946 = vpack.c.b16 %v4758, %v4754
    %v4947 = vpack.c.b16 %v4759, %v4755
    %v4948 = vpack.c.b16 %v4760, %v4756
    %v4949 = vpack.c.b16 %v4761, %v4757
    %v4950 = vpack.c.b16 %v4766, %v4762
    %v4951 = vpack.c.b16 %v4767, %v4763
    %v4952 = vpack.c.b16 %v4768, %v4764
    %v4953 = vpack.c.b16 %v4769, %v4765
    %v4954 = vpack.c.b16 %v4774, %v4770
    %v4955 = vpack.c.b16 %v4775, %v4771
    %v4956 = vpack.c.b16 %v4776, %v4772
    %v4957 = vpack.c.b16 %v4777, %v4773
    %v4958 = vpack.c.b16 %v4782, %v4778
    %v4959 = vpack.c.b16 %v4783, %v4779
    %v4960 = vpack.c.b16 %v4784, %v4780
    %v4961 = vpack.c.b16 %v4785, %v4781
    %v4962 = vpack.c.b16 %v4790, %v4786
    %v4963 = vpack.c.b16 %v4791, %v4787
    %v4964 = vpack.c.b16 %v4792, %v4788
    %v4965 = vpack.c.b16 %v4793, %v4789
    %v4966 = vpack.c.b16 %v4798, %v4794
    %v4967 = vpack.c.b16 %v4799, %v4795
    %v4968 = vpack.c.b16 %v4800, %v4796
    %v4969 = vpack.c.b16 %v4801, %v4797
    %v4970 = vpack.c.b16 %v4806, %v4802
    %v4971 = vpack.c.b16 %v4807, %v4803
    %v4972 = vpack.c.b16 %v4808, %v4804
    %v4973 = vpack.c.b16 %v4809, %v4805
    %v4974 = vpack.c.b16 %v4814, %v4810
    %v4975 = vpack.c.b16 %v4815, %v4811
    %v4976 = vpack.c.b16 %v4816, %v4812
    %v4977 = vpack.c.b16 %v4817, %v4813
    %v4978 = vpack.c.b16 %v4822, %v4818
    %v4979 = vpack.c.b16 %v4823, %v4819
    %v4980 = vpack.c.b16 %v4824, %v4820
    %v4981 = vpack.c.b16 %v4825, %v4821
    %v4982 = vpack.c.b16 %v4830, %v4826
    %v4983 = vpack.c.b16 %v4831, %v4827
    %v4984 = vpack.c.b16 %v4832, %v4828
    %v4985 = vpack.c.b16 %v4833, %v4829
    %v4986 = vpack.c.b16 %v4838, %v4834
    %v4987 = vpack.c.b16 %v4839, %v4835
    %v4988 = vpack.c.b16 %v4840, %v4836
    %v4989 = vpack.c.b16 %v4841, %v4837
    %v4990 = vpack.c.b16 %v4846, %v4842
    %v4991 = vpack.c.b16 %v4847, %v4843
    %v4992 = vpack.c.b16 %v4848, %v4844
    %v4993 = vpack.c.b16 %v4849, %v4845
    %v4994 = vpack.c.b16 %v4854, %v4850
    %v4995 = vpack.c.b16 %v4855, %v4851
    %v4996 = vpack.c.b16 %v4856, %v4852
    %v4997 = vpack.c.b16 %v4857, %v4853
    %v4998 = vpack.c.b16 %v4862, %v4858
    %v4999 = vpack.c.b16 %v4863, %v4859
    %v5000 = vpack.c.b16 %v4864, %v4860
    %v5001 = vpack.c.b16 %v4865, %v4861
    %v5002 = vpack.c.b16 %v4870, %v4866
    %v5003 = vpack.c.b16 %v4871, %v4867
    %v5004 = vpack.c.b16 %v4872, %v4868
    %v5005 = vpack.c.b16 %v4873, %v4869
    %v5006 = vpack.c.b16 %v4878, %v4874
    %v5007 = vpack.c.b16 %v4879, %v4875
    %v5008 = vpack.c.b16 %v4880, %v4876
    %v5009 = vpack.c.b16 %v4881, %v4877
    %5138 = vmatprep.subr.bf16.mxu0 %v4883
    %5139 = vmatpush1.bf16.msra.mxu0 %v4882
    %5140 = vmatprep.subr.bf16.mxu0 %v4887
    %5141 = vmatpush1.bf16.msra.mxu0 %v4886
    %5142 = vmatprep.subr.bf16.mxu0 %v4891
    %5143 = vmatpush1.bf16.msra.mxu0 %v4890
    %5144 = vmatprep.subr.bf16.mxu0 %v4895
    %5145 = vmatpush1.bf16.msra.mxu0 %v4894
    %5146 = vmatprep.subr.bf16.mxu0 %v4899
    %5147 = vmatpush1.bf16.msra.mxu0 %v4898
    %5148 = vmatprep.subr.bf16.mxu0 %v4903
    %5149 = vmatpush1.bf16.msra.mxu0 %v4902
    %5150 = vmatprep.subr.bf16.mxu0 %v4907
    %5151 = vmatpush1.bf16.msra.mxu0 %v4906
    %5152 = vmatprep.subr.bf16.mxu0 %v4911
    %5153 = vmatpush1.bf16.msra.mxu0 %v4910
    %5154 = vmatprep.subr.bf16.mxu0 %v4915
    %5155 = vmatpush1.bf16.msra.mxu0 %v4914
    %5156 = vmatprep.subr.bf16.mxu0 %v4919
    %5157 = vmatpush1.bf16.msra.mxu0 %v4918
    %5158 = vmatprep.subr.bf16.mxu0 %v4923
    %5159 = vmatpush1.bf16.msra.mxu0 %v4922
    %5160 = vmatprep.subr.bf16.mxu0 %v4927
    %5161 = vmatpush1.bf16.msra.mxu0 %v4926
    %5162 = vmatprep.subr.bf16.mxu0 %v4931
    %5163 = vmatpush1.bf16.msra.mxu0 %v4930
    %5164 = vmatprep.subr.bf16.mxu0 %v4935
    %5165 = vmatpush1.bf16.msra.mxu0 %v4934
    %5166 = vmatprep.subr.bf16.mxu0 %v4939
    %5167 = vmatpush1.bf16.msra.mxu0 %v4938
    %5168 = vmatprep.subr.bf16.mxu0 %v4943
    %5169 = vmatpush1.bf16.msra.mxu0 %v4942
    %5170 = vmatprep.mubr.bf16.mxu0 %v4345
    %5171 = vmatmul.mubr.bf16.gmra.mrb[0].mxu0 %v4344
    %v5172 = vpop.f32.mrb[0].mxu0
    %v5173 = vadd.f32 %v4481, %v5172
    %v5174 = vpop.f32.mrb[0].mxu0
    %v5175 = vadd.f32 %v4485, %v5174
    %v5176 = vpop.f32.mrb[0].mxu0
    %v5177 = vpop.f32.mrb[0].mxu0
    %5178 = vdwg.mxu0
    %5179 = vmatprep.subr.bf16.mxu0 %v4947
    %5180 = vmatpush1.bf16.msra.mxu0 %v4946
    %5181 = vmatprep.subr.bf16.mxu0 %v4951
    %5182 = vmatpush1.bf16.msra.mxu0 %v4950
    %5183 = vmatprep.subr.bf16.mxu0 %v4955
    %5184 = vmatpush1.bf16.msra.mxu0 %v4954
    %5185 = vmatprep.subr.bf16.mxu0 %v4959
    %5186 = vmatpush1.bf16.msra.mxu0 %v4958
    %5187 = vmatprep.subr.bf16.mxu0 %v4963
    %5188 = vmatpush1.bf16.msra.mxu0 %v4962
    %5189 = vmatprep.subr.bf16.mxu0 %v4967
    %5190 = vmatpush1.bf16.msra.mxu0 %v4966
    %5191 = vmatprep.subr.bf16.mxu0 %v4971
    %5192 = vmatpush1.bf16.msra.mxu0 %v4970
    %5193 = vmatprep.subr.bf16.mxu0 %v4975
    %5194 = vmatpush1.bf16.msra.mxu0 %v4974
    %5195 = vmatprep.subr.bf16.mxu0 %v4979
    %5196 = vmatpush1.bf16.msra.mxu0 %v4978
    %5197 = vmatprep.subr.bf16.mxu0 %v4983
    %5198 = vmatpush1.bf16.msra.mxu0 %v4982
    %5199 = vmatprep.subr.bf16.mxu0 %v4987
    %5200 = vmatpush1.bf16.msra.mxu0 %v4986
    %5201 = vmatprep.subr.bf16.mxu0 %v4991
    %5202 = vmatpush1.bf16.msra.mxu0 %v4990
    %5203 = vmatprep.subr.bf16.mxu0 %v4995
    %5204 = vmatpush1.bf16.msra.mxu0 %v4994
    %5205 = vmatprep.subr.bf16.mxu0 %v4999
    %5206 = vmatpush1.bf16.msra.mxu0 %v4998
    %5207 = vmatprep.subr.bf16.mxu0 %v5003
    %5208 = vmatpush1.bf16.msra.mxu0 %v5002
    %5209 = vmatprep.subr.bf16.mxu0 %v5007
    %5210 = vmatpush1.bf16.msra.mxu0 %v5006
    %5211 = vmatprep.mubr.bf16.mxu0 %v4347
    %5212 = vmatmul.mubr.bf16.gmra.mrb[0].mxu0 %v4346
    %v5213 = vpop.f32.mrb[0].mxu0
    %v5214 = vadd.f32 %v5173, %v5213
    %v5215 = vpop.f32.mrb[0].mxu0
    %v5216 = vadd.f32 %v5175, %v5215
    %v5217 = vpop.f32.mrb[0].mxu0
    %v5218 = vpop.f32.mrb[0].mxu0
    %5219 = vdwg.mxu0
    %5220 = vmatprep.subr.bf16.mxu0 %v4885
    %5221 = vmatpush1.bf16.msra.mxu0 %v4884
    %5222 = vmatprep.subr.bf16.mxu0 %v4889
    %5223 = vmatpush1.bf16.msra.mxu0 %v4888
    %5224 = vmatprep.subr.bf16.mxu0 %v4893
    %5225 = vmatpush1.bf16.msra.mxu0 %v4892
    %5226 = vmatprep.subr.bf16.mxu0 %v4897
    %5227 = vmatpush1.bf16.msra.mxu0 %v4896
    %5228 = vmatprep.subr.bf16.mxu0 %v4901
    %5229 = vmatpush1.bf16.msra.mxu0 %v4900
    %5230 = vmatprep.subr.bf16.mxu0 %v4905
    %5231 = vmatpush1.bf16.msra.mxu0 %v4904
    %5232 = vmatprep.subr.bf16.mxu0 %v4909
    %5233 = vmatpush1.bf16.msra.mxu0 %v4908
    %5234 = vmatprep.subr.bf16.mxu0 %v4913
    %5235 = vmatpush1.bf16.msra.mxu0 %v4912
    %5236 = vmatprep.subr.bf16.mxu0 %v4917
    %5237 = vmatpush1.bf16.msra.mxu0 %v4916
    %5238 = vmatprep.subr.bf16.mxu0 %v4921
    %5239 = vmatpush1.bf16.msra.mxu0 %v4920
    %5240 = vmatprep.subr.bf16.mxu0 %v4925
    %5241 = vmatpush1.bf16.msra.mxu0 %v4924
    %5242 = vmatprep.subr.bf16.mxu0 %v4929
    %5243 = vmatpush1.bf16.msra.mxu0 %v4928
    %5244 = vmatprep.subr.bf16.mxu0 %v4933
    %5245 = vmatpush1.bf16.msra.mxu0 %v4932
    %5246 = vmatprep.subr.bf16.mxu0 %v4937
    %5247 = vmatpush1.bf16.msra.mxu0 %v4936
    %5248 = vmatprep.subr.bf16.mxu0 %v4941
    %5249 = vmatpush1.bf16.msra.mxu0 %v4940
    %5250 = vmatprep.subr.bf16.mxu0 %v4945
    %5251 = vmatpush1.bf16.msra.mxu0 %v4944
    %5252 = vmatprep.mubr.bf16.mxu0 %v4345
    %5253 = vmatmul.mubr.bf16.gmra.mrb[0].mxu0 %v4344
    %v5254 = vpop.f32.mrb[0].mxu0
    %v5255 = vadd.f32 %v4489, %v5254
    %v5256 = vpop.f32.mrb[0].mxu0
    %v5257 = vadd.f32 %v4493, %v5256
    %v5258 = vpop.f32.mrb[0].mxu0
    %v5259 = vpop.f32.mrb[0].mxu0
    %5260 = vdwg.mxu0
    %5261 = vmatprep.subr.bf16.mxu0 %v4949
    %5262 = vmatpush1.bf16.msra.mxu0 %v4948
    %5263 = vmatprep.subr.bf16.mxu0 %v4953
    %5264 = vmatpush1.bf16.msra.mxu0 %v4952
    %5265 = vmatprep.subr.bf16.mxu0 %v4957
    %5266 = vmatpush1.bf16.msra.mxu0 %v4956
    %5267 = vmatprep.subr.bf16.mxu0 %v4961
    %5268 = vmatpush1.bf16.msra.mxu0 %v4960
    %5269 = vmatprep.subr.bf16.mxu0 %v4965
    %5270 = vmatpush1.bf16.msra.mxu0 %v4964
    %5271 = vmatprep.subr.bf16.mxu0 %v4969
    %5272 = vmatpush1.bf16.msra.mxu0 %v4968
    %5273 = vmatprep.subr.bf16.mxu0 %v4973
    %5274 = vmatpush1.bf16.msra.mxu0 %v4972
    %5275 = vmatprep.subr.bf16.mxu0 %v4977
    %5276 = vmatpush1.bf16.msra.mxu0 %v4976
    %5277 = vmatprep.subr.bf16.mxu0 %v4981
    %5278 = vmatpush1.bf16.msra.mxu0 %v4980
    %5279 = vmatprep.subr.bf16.mxu0 %v4985
    %5280 = vmatpush1.bf16.msra.mxu0 %v4984
    %5281 = vmatprep.subr.bf16.mxu0 %v4989
    %5282 = vmatpush1.bf16.msra.mxu0 %v4988
    %5283 = vmatprep.subr.bf16.mxu0 %v4993
    %5284 = vmatpush1.bf16.msra.mxu0 %v4992
    %5285 = vmatprep.subr.bf16.mxu0 %v4997
    %5286 = vmatpush1.bf16.msra.mxu0 %v4996
    %5287 = vmatprep.subr.bf16.mxu0 %v5001
    %5288 = vmatpush1.bf16.msra.mxu0 %v5000
    %5289 = vmatprep.subr.bf16.mxu0 %v5005
    %5290 = vmatpush1.bf16.msra.mxu0 %v5004
    %5291 = vmatprep.subr.bf16.mxu0 %v5009
    %5292 = vmatpush1.bf16.msra.mxu0 %v5008
    %5293 = vmatprep.mubr.bf16.mxu0 %v4347
    %5294 = vmatmul.mubr.bf16.gmra.mrb[0].mxu0 %v4346
    %v5295 = vpop.f32.mrb[0].mxu0
    %v5296 = vadd.f32 %v5255, %v5295
    %v5297 = vpop.f32.mrb[0].mxu0
    %v5298 = vadd.f32 %v5257, %v5297
    %v5299 = vpop.f32.mrb[0].mxu0
    %v5300 = vpop.f32.mrb[0].mxu0
    %5301 = vdwg.mxu0
    %v5306 = vcombine.low %v5214, %v5216
    %v5307 = vcombine.low %v5296, %v5298
    %v5309 = vunpack.c.l.s4 1983009808
    %v5310 = vunpack.c.0.s8 %v5309
    %v5311 = vlaneseq
    %v5312 = vshrl.u32 %v5311, 7
    %v5313 = vsub.s32 %v5310, %v5312
    %v5314 = vrot.slane %v5306, %v5313
    %v5316 = vunpack.c.l.s4 1983009808
    %v5317 = vunpack.c.0.s8 %v5316
    %v5318 = vlaneseq
    %v5319 = vshrl.u32 %v5318, 7
    %v5320 = vsub.s32 %v5317, %v5319
    %v5321 = vrot.slane %v5307, %v5320
    %v5322 = vcombine.low %v5314, %v5321
    %5324 = vst [vmem:[#allocation2] sm:$0xff] %v5322
    // Predicated region
    $region54: #{rnd_forward.1} parent=1 // pred_check
      _
    $region55: #{rnd_forward.1} parent=1 // pred_check_branch
      %5326 = sbr.rel (0) target = $region57
    $region56: #{rnd_forward.1} parent=1 // pred_region
      %s5328 = ssub.s32 128, 128
      %5329 = vsyncadd [#allocation3], %s5328
      %s5331 = sshll.u32 [#allocation2], 4
      %s5332 = int_to_ptr.vmem [resolvable:$true] %s5331
      %5334 = dma.vmem_to_hbm [thread:$0]  %s5332, 128, %s13, [#allocation3]
    $region57: #{rnd_forward.1} parent=1 // pred_fallthru
      _
    // Predicated region
    $region58: #{rnd_forward.1} parent=1 // pred_check
      _
    $region59: #{rnd_forward.1} parent=1 // pred_check_branch
      %5336 = sbr.rel (0) target = $region61
    $region60: #{rnd_forward.1} parent=1 // pred_region
      %5337 = dma.done [#allocation3], 128
    $region61: #{rnd_forward.1} parent=1 // pred_fallthru
      _
    %5338 = vsyncpa [#allocation3], 1

</llo_original>
